<compile_context>
chip_gen: v7x
topology: tpu7x:2x2x1
jax: 0.10.0
libtpu: 0.0.40
codegen_flags: <defaults>
</compile_context>

<pallas_src>
import jax
import jax.numpy as jnp
from jax import lax
from jax.experimental import pallas as pl
from jax.experimental.pallas import tpu as pltpu

# ----------------------------- small ViT config ------------------------------
IMG = 16          # img_size
PATCH = 4         # patch_size
IN_CHANS = 3
DIM = 32          # embedding dim
HEADS = 4
DEPTH = 2
MLP_RATIO = 4
NUM_CLASSES = 10
BATCH = 2

NP_SIDE = IMG // PATCH
NUM_PATCHES = NP_SIDE * NP_SIDE          # 16
SEQ = NUM_PATCHES + 1                    # 17 (cls token)
SEQ_PAD = 24                             # padded to a multiple of 8 sublanes
PATCH_DIM = IN_CHANS * PATCH * PATCH     # 48
HEAD_DIM = DIM // HEADS                  # 8
MLP_HIDDEN = DIM * MLP_RATIO             # 128
LN_EPS = 1e-5
ATTN_SCALE = HEAD_DIM ** (-0.5)
INV_SQRT2 = 0.7071067811865476
NEG_BIG = -1e30

N_TOK = BATCH * SEQ_PAD                  # 48 rows in the fused token slab


# --------------------------------- kernel ------------------------------------
def _layernorm(v, w, b):
    mu = jnp.mean(v, axis=-1, keepdims=True)
    var = jnp.mean((v - mu) ** 2, axis=-1, keepdims=True)
    return (v - mu) * lax.rsqrt(var + LN_EPS) * w + b


def vit_kernel(xp_ref, fcw_ref, tmpl_ref, bias_ref,
               ln1w_ref, ln1b_ref, wq_ref, wk_ref, wv_ref, wo_ref, bo_ref,
               ln2w_ref, ln2b_ref, w1_ref, b1_ref, w2_ref, b2_ref,
               hlnw_ref, hlnb_ref, hw_ref, hb_ref, out_ref):
    """Single-invocation fused ViT forward.

    xp_ref   : (N_TOK, PATCH_DIM) bf16  zero rows at cls/pad positions
    fcw_ref  : (PATCH_DIM, DIM)   bf16
    tmpl_ref : (N_TOK, DIM)       f32   [cls+pos0 ; fc_b+pos[1:] ; zeros] x B
    bias_ref : (N_TOK, N_TOK)     f32   0 (same batch, real key) else -1e30
    wq/wk/wv : (DEPTH, HEADS, DIM, HEAD_DIM) bf16  (Q pre-scaled)
    wo_ref   : (DEPTH, HEADS, HEAD_DIM, DIM) bf16
    out_ref  : (BATCH, NUM_CLASSES) f32
    """
    # ---- patch-embed + CLS + positional embedding: one aligned matmul+add ----
    x = jnp.dot(xp_ref[...], fcw_ref[...],
                preferred_element_type=jnp.float32) + tmpl_ref[...]   # (N, DIM) f32
    bias = bias_ref[...]                                              # (N, N)   f32

    # ---- DEPTH transformer blocks, weights indexed from VMEM-resident stacks ----
    def block(d, x):
        # attention branch: x + Proj(Attn(LN1(x)))
        h = _layernorm(x, ln1w_ref[d], ln1b_ref[d]).astype(jnp.bfloat16)
        hb = jnp.broadcast_to(h, (HEADS,) + h.shape)                  # (H, N, DIM)
        q = jnp.einsum('hnc,hcd->hnd', hb, wq_ref[d],
                       preferred_element_type=jnp.float32).astype(jnp.bfloat16)
        k = jnp.einsum('hnc,hcd->hnd', hb, wk_ref[d],
                       preferred_element_type=jnp.float32).astype(jnp.bfloat16)
        v = jnp.einsum('hnc,hcd->hnd', hb, wv_ref[d],
                       preferred_element_type=jnp.float32).astype(jnp.bfloat16)
        # scores over ALL rows (batch separation + pad-key masking via bias)
        s = jnp.einsum('hnd,hmd->hnm', q, k,
                       preferred_element_type=jnp.float32) + bias[None]   # (H, N, N)
        p = jnp.exp(s - jnp.max(s, axis=-1, keepdims=True))
        p = p / jnp.sum(p, axis=-1, keepdims=True)                    # exact softmax
        av = jnp.einsum('hnm,hmd->hnd', p.astype(jnp.bfloat16), v,
                        preferred_element_type=jnp.float32).astype(jnp.bfloat16)
        # per-head projection then head-sum == concat(heads) @ Wproj^T
        o = jnp.einsum('hnd,hdo->hno', av, wo_ref[d],
                       preferred_element_type=jnp.float32)            # (H, N, DIM)
        x = x + jnp.sum(o, axis=0) + bo_ref[d]

        # MLP branch: x + FC2(GELU(FC1(LN2(x))))   (exact-erf GELU, f32 elementwise)
        h2 = _layernorm(x, ln2w_ref[d], ln2b_ref[d]).astype(jnp.bfloat16)
        h2 = jnp.dot(h2, w1_ref[d], preferred_element_type=jnp.float32) + b1_ref[d]
        h2 = 0.5 * h2 * (1.0 + lax.erf(h2 * INV_SQRT2))
        h2 = jnp.dot(h2.astype(jnp.bfloat16), w2_ref[d],
                     preferred_element_type=jnp.float32) + b2_ref[d]
        return x + h2

    x = lax.fori_loop(0, DEPTH, block, x, unroll=True)

    # ---- classifier head on the CLS rows (rows b*SEQ_PAD, 8-aligned) ----
    cls_tok = jnp.concatenate(
        [x[b * SEQ_PAD:b * SEQ_PAD + 1, :] for b in range(BATCH)], axis=0)  # (B, DIM)
    hc = _layernorm(cls_tok, hlnw_ref[...], hlnb_ref[...]).astype(jnp.bfloat16)
    out_ref[...] = jnp.dot(hc, hw_ref[...],
                           preferred_element_type=jnp.float32) + hb_ref[...]


# ------------------------------ pallas wrapper --------------------------------
def vit_forward(packed, x):
    # x: (B, C, H, W) NCHW, same as PyTorch.
    B, C, H, W = x.shape
    H_, W_ = H // PATCH, W // PATCH
    # PatchEmbedding rearrangement (pure data movement — plain JAX glue):
    xp = x.reshape(B, C, H_, PATCH, W_, PATCH).transpose(0, 2, 4, 3, 5, 1)
    xp = xp.reshape(B, H_ * W_, C * PATCH * PATCH)
    # Pad each batch to SEQ_PAD rows: row 0 (cls) and rows SEQ.. (pad) are zero,
    # patch i goes to row 1+i.  Everything stays (8,128)-aligned in the kernel.
    xp_pad = jnp.pad(xp, ((0, 0), (1, SEQ_PAD - 1 - NUM_PATCHES), (0, 0)))
    xp_pad = xp_pad.reshape(B * SEQ_PAD, PATCH_DIM).astype(jnp.bfloat16)

    args = (xp_pad,
            packed['fc_w_t'], packed['tok_template'], packed['attn_bias'],
            packed['ln1w'], packed['ln1b'],
            packed['wq_h'], packed['wk_h'], packed['wv_h'],
            packed['wo_h'], packed['bproj'],
            packed['ln2w'], packed['ln2b'],
            packed['w1_t'], packed['b1'], packed['w2_t'], packed['b2'],
            packed['head_lnw'], packed['head_lnb'],
            packed['head_w_t'], packed['head_b'])

    return pl.pallas_call(
        vit_kernel,
        out_shape=jax.ShapeDtypeStruct((BATCH, NUM_CLASSES), jnp.float32),
        in_specs=[pl.BlockSpec(memory_space=pltpu.MemorySpace.VMEM) for _ in args],
        out_specs=pl.BlockSpec(memory_space=pltpu.MemorySpace.VMEM),
    )(*args)


# ----------------------------- parameter handling ------------------------------
def init_params(key):
    keys = iter(jax.random.split(key, 32))

    def nrm(shape, scale=0.02):
        return jax.random.normal(next(keys), shape, jnp.float32) * scale

    params = {
        # torch Linear stores (out, in); keep the transposed (in, out) copy.
        'fc_w_t': nrm((DIM, PATCH_DIM)).T,                 # (PATCH_DIM, DIM)
        'fc_b':   nrm((DIM,)).reshape(1, DIM),
        'cls':    nrm((1, 1, DIM)),                        # CLSToken
        'pos':    nrm((1, SEQ, DIM)),                      # AbsPosEmbedding
        'head_lnw': jnp.ones((1, DIM), jnp.float32),
        'head_lnb': jnp.zeros((1, DIM), jnp.float32),
        'head_w_t': nrm((NUM_CLASSES, DIM)).T,             # (DIM, NUM_CLASSES)
        'head_b':   nrm((NUM_CLASSES,)).reshape(1, NUM_CLASSES),
        'blocks': [],
    }
    for _ in range(DEPTH):
        params['blocks'].append({
            'ln1w': jnp.ones((1, DIM), jnp.float32),
            'ln1b': jnp.zeros((1, DIM), jnp.float32),
            'wqkv_t': nrm((3 * DIM, DIM)).T,               # (DIM, 3*DIM), no bias
            'wproj_t': nrm((DIM, DIM)).T,
            'bproj': nrm((DIM,)).reshape(1, DIM),
            'ln2w': jnp.ones((1, DIM), jnp.float32),
            'ln2b': jnp.zeros((1, DIM), jnp.float32),
            'w1_t': nrm((MLP_HIDDEN, DIM)).T,              # (DIM, MLP_HIDDEN)
            'b1':   nrm((MLP_HIDDEN,)).reshape(1, MLP_HIDDEN),
            'w2_t': nrm((DIM, MLP_HIDDEN)).T,              # (MLP_HIDDEN, DIM)
            'b2':   nrm((DIM,)).reshape(1, DIM),
        })
    return params


def pack_params(params):
    """Host-side packing: per-head attention weight stacks (Q pre-scaled),
    bf16 matmul weights, the padded token template, and the additive
    attention bias (batch block-diagonal + padded-key mask)."""
    bf16 = jnp.bfloat16

    def stk(name):
        return jnp.stack([blk[name] for blk in params['blocks']], axis=0)

    # per-head attention weights: (DEPTH, HEADS, DIM, HEAD_DIM) / (…, HEAD_DIM, DIM)
    def per_head(m):                                       # (DIM, DIM) -> (H, DIM, HD)
        return m.reshape(DIM, HEADS, HEAD_DIM).transpose(1, 0, 2)

    wq_l, wk_l, wv_l, wo_l = [], [], [], []
    for blk in params['blocks']:
        w = blk['wqkv_t']                                  # (DIM, 3*DIM)
        wq_l.append(per_head(w[:, :DIM] * ATTN_SCALE))     # fold 1/sqrt(head_dim)
        wk_l.append(per_head(w[:, DIM:2 * DIM]))
        wv_l.append(per_head(w[:, 2 * DIM:]))
        wo_l.append(blk['wproj_t'].reshape(HEADS, HEAD_DIM, DIM))

    # token template: row 0 = cls+pos[0]; rows 1..SEQ-1 = fc_b+pos[1:]; rest 0.
    tmpl = jnp.zeros((SEQ_PAD, DIM), jnp.float32)
    tmpl = tmpl.at[0, :].set(params['cls'][0, 0] + params['pos'][0, 0])
    tmpl = tmpl.at[1:SEQ, :].set(params['pos'][0, 1:] + params['fc_b'][0][None, :])
    tok_template = jnp.tile(tmpl, (BATCH, 1))              # (N_TOK, DIM)

    # additive attention bias: allow (same batch) & (key is a real token).
    idx = jnp.arange(N_TOK)
    same_batch = (idx[:, None] // SEQ_PAD) == (idx[None, :] // SEQ_PAD)
    key_real = (idx[None, :] % SEQ_PAD) < SEQ
    attn_bias = jnp.where(same_batch & key_real, 0.0, NEG_BIG).astype(jnp.float32)

    return {
        'fc_w_t': params['fc_w_t'].astype(bf16),
        'tok_template': tok_template,
        'attn_bias': attn_bias,
        'ln1w': stk('ln1w'), 'ln1b': stk('ln1b'),
        'wq_h': jnp.stack(wq_l).astype(bf16),
        'wk_h': jnp.stack(wk_l).astype(bf16),
        'wv_h': jnp.stack(wv_l).astype(bf16),
        'wo_h': jnp.stack(wo_l).astype(bf16),
        'bproj': stk('bproj'),
        'ln2w': stk('ln2w'), 'ln2b': stk('ln2b'),
        'w1_t': stk('w1_t').astype(bf16), 'b1': stk('b1'),
        'w2_t': stk('w2_t').astype(bf16), 'b2': stk('b2'),
        'head_lnw': params['head_lnw'], 'head_lnb': params['head_lnb'],
        'head_w_t': params['head_w_t'].astype(bf16), 'head_b': params['head_b'],
    }


# ----------------------------------- main --------------------------------------
if __name__ == "__main__":
    key = jax.random.PRNGKey(0)
    kx, kp = jax.random.split(key)
    x = jax.random.normal(kx, (BATCH, IN_CHANS, IMG, IMG), jnp.float32)
    params = init_params(kp)
    packed = pack_params(params)

    logits = jax.jit(vit_forward)(packed, x)
    logits = jax.block_until_ready(logits)
    assert logits.shape == (BATCH, NUM_CLASSES)
    assert bool(jnp.all(jnp.isfinite(logits)))
    print("KERNEL_OK")
</pallas_src>

<mosaic_0001>
module attributes {stable_mosaic.version = 11 : i64} {
  func.func @vit_kernel(%arg0: memref<48x48xbf16, #tpu.memory_space<vmem>>, %arg1: memref<48x32xbf16, #tpu.memory_space<vmem>>, %arg2: memref<48x32xf32, #tpu.memory_space<vmem>>, %arg3: memref<48x48xf32, #tpu.memory_space<vmem>>, %arg4: memref<2x1x32xf32, #tpu.memory_space<vmem>>, %arg5: memref<2x1x32xf32, #tpu.memory_space<vmem>>, %arg6: memref<2x4x32x8xbf16, #tpu.memory_space<vmem>>, %arg7: memref<2x4x32x8xbf16, #tpu.memory_space<vmem>>, %arg8: memref<2x4x32x8xbf16, #tpu.memory_space<vmem>>, %arg9: memref<2x4x8x32xbf16, #tpu.memory_space<vmem>>, %arg10: memref<2x1x32xf32, #tpu.memory_space<vmem>>, %arg11: memref<2x1x32xf32, #tpu.memory_space<vmem>>, %arg12: memref<2x1x32xf32, #tpu.memory_space<vmem>>, %arg13: memref<2x32x128xbf16, #tpu.memory_space<vmem>>, %arg14: memref<2x1x128xf32, #tpu.memory_space<vmem>>, %arg15: memref<2x128x32xbf16, #tpu.memory_space<vmem>>, %arg16: memref<2x1x32xf32, #tpu.memory_space<vmem>>, %arg17: memref<1x32xf32, #tpu.memory_space<vmem>>, %arg18: memref<1x32xf32, #tpu.memory_space<vmem>>, %arg19: memref<32x10xbf16, #tpu.memory_space<vmem>>, %arg20: memref<1x10xf32, #tpu.memory_space<vmem>>, %arg21: memref<2x10xf32, #tpu.memory_space<vmem>>) attributes {dimension_semantics = [], scalar_prefetch = 0 : i64, scratch_operands = 0 : i64, tpu.core_type = #tpu.core_type<tc>} {
    %c0 = arith.constant 0 : index
    %c0_0 = arith.constant 0 : index
    %0 = vector.load %arg0[%c0, %c0_0] : memref<48x48xbf16, #tpu.memory_space<vmem>>, vector<48x48xbf16>
    %c0_1 = arith.constant 0 : index
    %c0_2 = arith.constant 0 : index
    %1 = vector.load %arg1[%c0_1, %c0_2] : memref<48x32xbf16, #tpu.memory_space<vmem>>, vector<48x32xbf16>
    %cst = arith.constant dense<0.000000e+00> : vector<48x32xf32>
    %2 = tpu.matmul %0, %1, %cst {dimension_numbers = #tpu.dot_dimension_numbers<[1], [0], [0], [1], [0, 0, 1, 1], [], []>} : vector<48x48xbf16>, vector<48x32xbf16>, vector<48x32xf32> -> vector<48x32xf32>
    %c0_3 = arith.constant 0 : index
    %c0_4 = arith.constant 0 : index
    %3 = vector.load %arg2[%c0_3, %c0_4] : memref<48x32xf32, #tpu.memory_space<vmem>>, vector<48x32xf32>
    %4 = arith.addf %2, %3 : vector<48x32xf32>
    %c0_5 = arith.constant 0 : index
    %c0_6 = arith.constant 0 : index
    %5 = vector.load %arg3[%c0_5, %c0_6] : memref<48x48xf32, #tpu.memory_space<vmem>>, vector<48x48xf32>
    %c0_i32 = arith.constant 0 : i32
    %6 = arith.index_cast %c0_i32 : i32 to index
    %c0_7 = arith.constant 0 : index
    %c0_8 = arith.constant 0 : index
    %7 = vector.load %arg4[%6, %c0_7, %c0_8] : memref<2x1x32xf32, #tpu.memory_space<vmem>>, vector<1x1x32xf32>
    %8 = vector.shape_cast %7 : vector<1x1x32xf32> to vector<1x32xf32>
    %9 = arith.index_cast %c0_i32 : i32 to index
    %c0_9 = arith.constant 0 : index
    %c0_10 = arith.constant 0 : index
    %10 = vector.load %arg5[%9, %c0_9, %c0_10] : memref<2x1x32xf32, #tpu.memory_space<vmem>>, vector<1x1x32xf32>
    %11 = vector.shape_cast %10 : vector<1x1x32xf32> to vector<1x32xf32>
    %cst_11 = arith.constant dense<0.000000e+00> : vector<48xf32>
    %12 = vector.multi_reduction <add>, %4, %cst_11 [1] : vector<48x32xf32> to vector<48xf32>
    %13 = vector.shape_cast %12 : vector<48xf32> to vector<48x1xf32>
    %cst_12 = arith.constant 3.200000e+01 : f32
    %14 = vector.broadcast %cst_12 : f32 to vector<48x1xf32>
    %15 = arith.divf %13, %14 : vector<48x1xf32>
    %16 = vector.broadcast %15 : vector<48x1xf32> to vector<48x32xf32>
    %17 = arith.subf %4, %16 : vector<48x32xf32>
    %18 = arith.mulf %17, %17 : vector<48x32xf32>
    %cst_13 = arith.constant dense<0.000000e+00> : vector<48xf32>
    %19 = vector.multi_reduction <add>, %18, %cst_13 [1] : vector<48x32xf32> to vector<48xf32>
    %20 = vector.shape_cast %19 : vector<48xf32> to vector<48x1xf32>
    %cst_14 = arith.constant 3.200000e+01 : f32
    %21 = vector.broadcast %cst_14 : f32 to vector<48x1xf32>
    %22 = arith.divf %20, %21 : vector<48x1xf32>
    %23 = vector.broadcast %15 : vector<48x1xf32> to vector<48x32xf32>
    %24 = arith.subf %4, %23 : vector<48x32xf32>
    %cst_15 = arith.constant 9.99999974E-6 : f32
    %25 = vector.broadcast %cst_15 : f32 to vector<48x1xf32>
    %26 = arith.addf %22, %25 : vector<48x1xf32>
    %27 = math.rsqrt %26 : vector<48x1xf32>
    %28 = vector.broadcast %27 : vector<48x1xf32> to vector<48x32xf32>
    %29 = arith.mulf %24, %28 : vector<48x32xf32>
    %30 = vector.broadcast %8 : vector<1x32xf32> to vector<48x32xf32>
    %31 = arith.mulf %29, %30 : vector<48x32xf32>
    %32 = vector.broadcast %11 : vector<1x32xf32> to vector<48x32xf32>
    %33 = arith.addf %31, %32 : vector<48x32xf32>
    %34 = arith.truncf %33 : vector<48x32xf32> to vector<48x32xbf16>
    %35 = vector.shape_cast %34 : vector<48x32xbf16> to vector<1x48x32xbf16>
    %36 = vector.broadcast %35 : vector<1x48x32xbf16> to vector<4x48x32xbf16>
    %37 = arith.index_cast %c0_i32 : i32 to index
    %c0_16 = arith.constant 0 : index
    %c0_17 = arith.constant 0 : index
    %c0_18 = arith.constant 0 : index
    %38 = vector.load %arg6[%37, %c0_16, %c0_17, %c0_18] : memref<2x4x32x8xbf16, #tpu.memory_space<vmem>>, vector<1x4x32x8xbf16>
    %39 = vector.shape_cast %38 : vector<1x4x32x8xbf16> to vector<4x32x8xbf16>
    "tpu.trace_start"() <{level = 10 : i32, message = "hnc,hcd->hnd"}> : () -> ()
    %cst_19 = arith.constant dense<0.000000e+00> : vector<4x48x8xf32>
    %40 = tpu.matmul %36, %39, %cst_19 {dimension_numbers = #tpu.dot_dimension_numbers<[2], [1], [1], [2], [0, 0, 0, 1, 1, 2], [0], [0]>} : vector<4x48x32xbf16>, vector<4x32x8xbf16>, vector<4x48x8xf32> -> vector<4x48x8xf32>
    "tpu.trace_stop"() : () -> ()
    %41 = arith.truncf %40 : vector<4x48x8xf32> to vector<4x48x8xbf16>
    %42 = arith.index_cast %c0_i32 : i32 to index
    %c0_20 = arith.constant 0 : index
    %c0_21 = arith.constant 0 : index
    %c0_22 = arith.constant 0 : index
    %43 = vector.load %arg7[%42, %c0_20, %c0_21, %c0_22] : memref<2x4x32x8xbf16, #tpu.memory_space<vmem>>, vector<1x4x32x8xbf16>
    %44 = vector.shape_cast %43 : vector<1x4x32x8xbf16> to vector<4x32x8xbf16>
    "tpu.trace_start"() <{level = 10 : i32, message = "hnc,hcd->hnd"}> : () -> ()
    %cst_23 = arith.constant dense<0.000000e+00> : vector<4x48x8xf32>
    %45 = tpu.matmul %36, %44, %cst_23 {dimension_numbers = #tpu.dot_dimension_numbers<[2], [1], [1], [2], [0, 0, 0, 1, 1, 2], [0], [0]>} : vector<4x48x32xbf16>, vector<4x32x8xbf16>, vector<4x48x8xf32> -> vector<4x48x8xf32>
    "tpu.trace_stop"() : () -> ()
    %46 = arith.truncf %45 : vector<4x48x8xf32> to vector<4x48x8xbf16>
    %47 = arith.index_cast %c0_i32 : i32 to index
    %c0_24 = arith.constant 0 : index
    %c0_25 = arith.constant 0 : index
    %c0_26 = arith.constant 0 : index
    %48 = vector.load %arg8[%47, %c0_24, %c0_25, %c0_26] : memref<2x4x32x8xbf16, #tpu.memory_space<vmem>>, vector<1x4x32x8xbf16>
    %49 = vector.shape_cast %48 : vector<1x4x32x8xbf16> to vector<4x32x8xbf16>
    "tpu.trace_start"() <{level = 10 : i32, message = "hnc,hcd->hnd"}> : () -> ()
    %cst_27 = arith.constant dense<0.000000e+00> : vector<4x48x8xf32>
    %50 = tpu.matmul %36, %49, %cst_27 {dimension_numbers = #tpu.dot_dimension_numbers<[2], [1], [1], [2], [0, 0, 0, 1, 1, 2], [0], [0]>} : vector<4x48x32xbf16>, vector<4x32x8xbf16>, vector<4x48x8xf32> -> vector<4x48x8xf32>
    "tpu.trace_stop"() : () -> ()
    %51 = arith.truncf %50 : vector<4x48x8xf32> to vector<4x48x8xbf16>
    "tpu.trace_start"() <{level = 10 : i32, message = "hnd,hmd->hnm"}> : () -> ()
    %cst_28 = arith.constant dense<0.000000e+00> : vector<4x48x48xf32>
    %52 = tpu.matmul %41, %46, %cst_28 {dimension_numbers = #tpu.dot_dimension_numbers<[2], [2], [1], [1], [0, 0, 0, 1, 1, 1], [0], [0]>} : vector<4x48x8xbf16>, vector<4x48x8xbf16>, vector<4x48x48xf32> -> vector<4x48x48xf32>
    "tpu.trace_stop"() : () -> ()
    %53 = vector.shape_cast %5 : vector<48x48xf32> to vector<1x48x48xf32>
    %54 = vector.broadcast %53 : vector<1x48x48xf32> to vector<4x48x48xf32>
    %55 = arith.addf %52, %54 : vector<4x48x48xf32>
    %cst_29 = arith.constant dense<0xFF800000> : vector<4x48xf32>
    %56 = vector.multi_reduction <maximumf>, %55, %cst_29 [2] : vector<4x48x48xf32> to vector<4x48xf32>
    %57 = vector.shape_cast %56 : vector<4x48xf32> to vector<4x48x1xf32>
    %58 = vector.broadcast %57 : vector<4x48x1xf32> to vector<4x48x48xf32>
    %59 = arith.subf %55, %58 : vector<4x48x48xf32>
    %60 = math.exp %59 : vector<4x48x48xf32>
    %cst_30 = arith.constant dense<0.000000e+00> : vector<4x48xf32>
    %61 = vector.multi_reduction <add>, %60, %cst_30 [2] : vector<4x48x48xf32> to vector<4x48xf32>
    %62 = vector.shape_cast %61 : vector<4x48xf32> to vector<4x48x1xf32>
    %63 = vector.broadcast %62 : vector<4x48x1xf32> to vector<4x48x48xf32>
    %64 = arith.divf %60, %63 : vector<4x48x48xf32>
    %65 = arith.truncf %64 : vector<4x48x48xf32> to vector<4x48x48xbf16>
    "tpu.trace_start"() <{level = 10 : i32, message = "hnm,hmd->hnd"}> : () -> ()
    %cst_31 = arith.constant dense<0.000000e+00> : vector<4x48x8xf32>
    %66 = tpu.matmul %65, %51, %cst_31 {dimension_numbers = #tpu.dot_dimension_numbers<[2], [1], [1], [2], [0, 0, 0, 1, 1, 2], [0], [0]>} : vector<4x48x48xbf16>, vector<4x48x8xbf16>, vector<4x48x8xf32> -> vector<4x48x8xf32>
    "tpu.trace_stop"() : () -> ()
    %67 = arith.truncf %66 : vector<4x48x8xf32> to vector<4x48x8xbf16>
    %68 = arith.index_cast %c0_i32 : i32 to index
    %c0_32 = arith.constant 0 : index
    %c0_33 = arith.constant 0 : index
    %c0_34 = arith.constant 0 : index
    %69 = vector.load %arg9[%68, %c0_32, %c0_33, %c0_34] : memref<2x4x8x32xbf16, #tpu.memory_space<vmem>>, vector<1x4x8x32xbf16>
    %70 = vector.shape_cast %69 : vector<1x4x8x32xbf16> to vector<4x8x32xbf16>
    "tpu.trace_start"() <{level = 10 : i32, message = "hnd,hdo->hno"}> : () -> ()
    %cst_35 = arith.constant dense<0.000000e+00> : vector<4x48x32xf32>
    %71 = tpu.matmul %67, %70, %cst_35 {dimension_numbers = #tpu.dot_dimension_numbers<[2], [1], [1], [2], [0, 0, 0, 1, 1, 2], [0], [0]>} : vector<4x48x8xbf16>, vector<4x8x32xbf16>, vector<4x48x32xf32> -> vector<4x48x32xf32>
    "tpu.trace_stop"() : () -> ()
    %cst_36 = arith.constant dense<0.000000e+00> : vector<48x32xf32>
    %72 = vector.multi_reduction <add>, %71, %cst_36 [0] : vector<4x48x32xf32> to vector<48x32xf32>
    %73 = arith.addf %4, %72 : vector<48x32xf32>
    %74 = arith.index_cast %c0_i32 : i32 to index
    %c0_37 = arith.constant 0 : index
    %c0_38 = arith.constant 0 : index
    %75 = vector.load %arg10[%74, %c0_37, %c0_38] : memref<2x1x32xf32, #tpu.memory_space<vmem>>, vector<1x1x32xf32>
    %76 = vector.shape_cast %75 : vector<1x1x32xf32> to vector<1x32xf32>
    %77 = vector.broadcast %76 : vector<1x32xf32> to vector<48x32xf32>
    %78 = arith.addf %73, %77 : vector<48x32xf32>
    %79 = arith.index_cast %c0_i32 : i32 to index
    %c0_39 = arith.constant 0 : index
    %c0_40 = arith.constant 0 : index
    %80 = vector.load %arg11[%79, %c0_39, %c0_40] : memref<2x1x32xf32, #tpu.memory_space<vmem>>, vector<1x1x32xf32>
    %81 = vector.shape_cast %80 : vector<1x1x32xf32> to vector<1x32xf32>
    %82 = arith.index_cast %c0_i32 : i32 to index
    %c0_41 = arith.constant 0 : index
    %c0_42 = arith.constant 0 : index
    %83 = vector.load %arg12[%82, %c0_41, %c0_42] : memref<2x1x32xf32, #tpu.memory_space<vmem>>, vector<1x1x32xf32>
    %84 = vector.shape_cast %83 : vector<1x1x32xf32> to vector<1x32xf32>
    %cst_43 = arith.constant dense<0.000000e+00> : vector<48xf32>
    %85 = vector.multi_reduction <add>, %78, %cst_43 [1] : vector<48x32xf32> to vector<48xf32>
    %86 = vector.shape_cast %85 : vector<48xf32> to vector<48x1xf32>
    %cst_44 = arith.constant 3.200000e+01 : f32
    %87 = vector.broadcast %cst_44 : f32 to vector<48x1xf32>
    %88 = arith.divf %86, %87 : vector<48x1xf32>
    %89 = vector.broadcast %88 : vector<48x1xf32> to vector<48x32xf32>
    %90 = arith.subf %78, %89 : vector<48x32xf32>
    %91 = arith.mulf %90, %90 : vector<48x32xf32>
    %cst_45 = arith.constant dense<0.000000e+00> : vector<48xf32>
    %92 = vector.multi_reduction <add>, %91, %cst_45 [1] : vector<48x32xf32> to vector<48xf32>
    %93 = vector.shape_cast %92 : vector<48xf32> to vector<48x1xf32>
    %cst_46 = arith.constant 3.200000e+01 : f32
    %94 = vector.broadcast %cst_46 : f32 to vector<48x1xf32>
    %95 = arith.divf %93, %94 : vector<48x1xf32>
    %96 = vector.broadcast %88 : vector<48x1xf32> to vector<48x32xf32>
    %97 = arith.subf %78, %96 : vector<48x32xf32>
    %cst_47 = arith.constant 9.99999974E-6 : f32
    %98 = vector.broadcast %cst_47 : f32 to vector<48x1xf32>
    %99 = arith.addf %95, %98 : vector<48x1xf32>
    %100 = math.rsqrt %99 : vector<48x1xf32>
    %101 = vector.broadcast %100 : vector<48x1xf32> to vector<48x32xf32>
    %102 = arith.mulf %97, %101 : vector<48x32xf32>
    %103 = vector.broadcast %81 : vector<1x32xf32> to vector<48x32xf32>
    %104 = arith.mulf %102, %103 : vector<48x32xf32>
    %105 = vector.broadcast %84 : vector<1x32xf32> to vector<48x32xf32>
    %106 = arith.addf %104, %105 : vector<48x32xf32>
    %107 = arith.truncf %106 : vector<48x32xf32> to vector<48x32xbf16>
    %108 = arith.index_cast %c0_i32 : i32 to index
    %c0_48 = arith.constant 0 : index
    %c0_49 = arith.constant 0 : index
    %109 = vector.load %arg13[%108, %c0_48, %c0_49] : memref<2x32x128xbf16, #tpu.memory_space<vmem>>, vector<1x32x128xbf16>
    %110 = vector.shape_cast %109 : vector<1x32x128xbf16> to vector<32x128xbf16>
    %cst_50 = arith.constant dense<0.000000e+00> : vector<48x128xf32>
    %111 = tpu.matmul %107, %110, %cst_50 {dimension_numbers = #tpu.dot_dimension_numbers<[1], [0], [0], [1], [0, 0, 1, 1], [], []>} : vector<48x32xbf16>, vector<32x128xbf16>, vector<48x128xf32> -> vector<48x128xf32>
    %112 = arith.index_cast %c0_i32 : i32 to index
    %c0_51 = arith.constant 0 : index
    %c0_52 = arith.constant 0 : index
    %113 = vector.load %arg14[%112, %c0_51, %c0_52] : memref<2x1x128xf32, #tpu.memory_space<vmem>>, vector<1x1x128xf32>
    %114 = vector.shape_cast %113 : vector<1x1x128xf32> to vector<1x128xf32>
    %115 = vector.broadcast %114 : vector<1x128xf32> to vector<48x128xf32>
    %116 = arith.addf %111, %115 : vector<48x128xf32>
    %cst_53 = arith.constant 5.000000e-01 : f32
    %117 = vector.broadcast %cst_53 : f32 to vector<48x128xf32>
    %118 = arith.mulf %117, %116 : vector<48x128xf32>
    %cst_54 = arith.constant 0.707106769 : f32
    %119 = vector.broadcast %cst_54 : f32 to vector<48x128xf32>
    %120 = arith.mulf %116, %119 : vector<48x128xf32>
    %121 = math.erf %120 : vector<48x128xf32>
    %cst_55 = arith.constant 1.000000e+00 : f32
    %122 = vector.broadcast %cst_55 : f32 to vector<48x128xf32>
    %123 = arith.addf %122, %121 : vector<48x128xf32>
    %124 = arith.mulf %118, %123 : vector<48x128xf32>
    %125 = arith.truncf %124 : vector<48x128xf32> to vector<48x128xbf16>
    %126 = arith.index_cast %c0_i32 : i32 to index
    %c0_56 = arith.constant 0 : index
    %c0_57 = arith.constant 0 : index
    %127 = vector.load %arg15[%126, %c0_56, %c0_57] : memref<2x128x32xbf16, #tpu.memory_space<vmem>>, vector<1x128x32xbf16>
    %128 = vector.shape_cast %127 : vector<1x128x32xbf16> to vector<128x32xbf16>
    %cst_58 = arith.constant dense<0.000000e+00> : vector<48x32xf32>
    %129 = tpu.matmul %125, %128, %cst_58 {dimension_numbers = #tpu.dot_dimension_numbers<[1], [0], [0], [1], [0, 0, 1, 1], [], []>} : vector<48x128xbf16>, vector<128x32xbf16>, vector<48x32xf32> -> vector<48x32xf32>
    %130 = arith.index_cast %c0_i32 : i32 to index
    %c0_59 = arith.constant 0 : index
    %c0_60 = arith.constant 0 : index
    %131 = vector.load %arg16[%130, %c0_59, %c0_60] : memref<2x1x32xf32, #tpu.memory_space<vmem>>, vector<1x1x32xf32>
    %132 = vector.shape_cast %131 : vector<1x1x32xf32> to vector<1x32xf32>
    %133 = vector.broadcast %132 : vector<1x32xf32> to vector<48x32xf32>
    %134 = arith.addf %129, %133 : vector<48x32xf32>
    %135 = arith.addf %78, %134 : vector<48x32xf32>
    %c1_i32 = arith.constant 1 : i32
    %136 = arith.index_cast %c1_i32 : i32 to index
    %c0_61 = arith.constant 0 : index
    %c0_62 = arith.constant 0 : index
    %137 = vector.load %arg4[%136, %c0_61, %c0_62] : memref<2x1x32xf32, #tpu.memory_space<vmem>>, vector<1x1x32xf32>
    %138 = vector.shape_cast %137 : vector<1x1x32xf32> to vector<1x32xf32>
    %139 = arith.index_cast %c1_i32 : i32 to index
    %c0_63 = arith.constant 0 : index
    %c0_64 = arith.constant 0 : index
    %140 = vector.load %arg5[%139, %c0_63, %c0_64] : memref<2x1x32xf32, #tpu.memory_space<vmem>>, vector<1x1x32xf32>
    %141 = vector.shape_cast %140 : vector<1x1x32xf32> to vector<1x32xf32>
    %cst_65 = arith.constant dense<0.000000e+00> : vector<48xf32>
    %142 = vector.multi_reduction <add>, %135, %cst_65 [1] : vector<48x32xf32> to vector<48xf32>
    %143 = vector.shape_cast %142 : vector<48xf32> to vector<48x1xf32>
    %cst_66 = arith.constant 3.200000e+01 : f32
    %144 = vector.broadcast %cst_66 : f32 to vector<48x1xf32>
    %145 = arith.divf %143, %144 : vector<48x1xf32>
    %146 = vector.broadcast %145 : vector<48x1xf32> to vector<48x32xf32>
    %147 = arith.subf %135, %146 : vector<48x32xf32>
    %148 = arith.mulf %147, %147 : vector<48x32xf32>
    %cst_67 = arith.constant dense<0.000000e+00> : vector<48xf32>
    %149 = vector.multi_reduction <add>, %148, %cst_67 [1] : vector<48x32xf32> to vector<48xf32>
    %150 = vector.shape_cast %149 : vector<48xf32> to vector<48x1xf32>
    %cst_68 = arith.constant 3.200000e+01 : f32
    %151 = vector.broadcast %cst_68 : f32 to vector<48x1xf32>
    %152 = arith.divf %150, %151 : vector<48x1xf32>
    %153 = vector.broadcast %145 : vector<48x1xf32> to vector<48x32xf32>
    %154 = arith.subf %135, %153 : vector<48x32xf32>
    %cst_69 = arith.constant 9.99999974E-6 : f32
    %155 = vector.broadcast %cst_69 : f32 to vector<48x1xf32>
    %156 = arith.addf %152, %155 : vector<48x1xf32>
    %157 = math.rsqrt %156 : vector<48x1xf32>
    %158 = vector.broadcast %157 : vector<48x1xf32> to vector<48x32xf32>
    %159 = arith.mulf %154, %158 : vector<48x32xf32>
    %160 = vector.broadcast %138 : vector<1x32xf32> to vector<48x32xf32>
    %161 = arith.mulf %159, %160 : vector<48x32xf32>
    %162 = vector.broadcast %141 : vector<1x32xf32> to vector<48x32xf32>
    %163 = arith.addf %161, %162 : vector<48x32xf32>
    %164 = arith.truncf %163 : vector<48x32xf32> to vector<48x32xbf16>
    %165 = vector.shape_cast %164 : vector<48x32xbf16> to vector<1x48x32xbf16>
    %166 = vector.broadcast %165 : vector<1x48x32xbf16> to vector<4x48x32xbf16>
    %167 = arith.index_cast %c1_i32 : i32 to index
    %c0_70 = arith.constant 0 : index
    %c0_71 = arith.constant 0 : index
    %c0_72 = arith.constant 0 : index
    %168 = vector.load %arg6[%167, %c0_70, %c0_71, %c0_72] : memref<2x4x32x8xbf16, #tpu.memory_space<vmem>>, vector<1x4x32x8xbf16>
    %169 = vector.shape_cast %168 : vector<1x4x32x8xbf16> to vector<4x32x8xbf16>
    "tpu.trace_start"() <{level = 10 : i32, message = "hnc,hcd->hnd"}> : () -> ()
    %cst_73 = arith.constant dense<0.000000e+00> : vector<4x48x8xf32>
    %170 = tpu.matmul %166, %169, %cst_73 {dimension_numbers = #tpu.dot_dimension_numbers<[2], [1], [1], [2], [0, 0, 0, 1, 1, 2], [0], [0]>} : vector<4x48x32xbf16>, vector<4x32x8xbf16>, vector<4x48x8xf32> -> vector<4x48x8xf32>
    "tpu.trace_stop"() : () -> ()
    %171 = arith.truncf %170 : vector<4x48x8xf32> to vector<4x48x8xbf16>
    %172 = arith.index_cast %c1_i32 : i32 to index
    %c0_74 = arith.constant 0 : index
    %c0_75 = arith.constant 0 : index
    %c0_76 = arith.constant 0 : index
    %173 = vector.load %arg7[%172, %c0_74, %c0_75, %c0_76] : memref<2x4x32x8xbf16, #tpu.memory_space<vmem>>, vector<1x4x32x8xbf16>
    %174 = vector.shape_cast %173 : vector<1x4x32x8xbf16> to vector<4x32x8xbf16>
    "tpu.trace_start"() <{level = 10 : i32, message = "hnc,hcd->hnd"}> : () -> ()
    %cst_77 = arith.constant dense<0.000000e+00> : vector<4x48x8xf32>
    %175 = tpu.matmul %166, %174, %cst_77 {dimension_numbers = #tpu.dot_dimension_numbers<[2], [1], [1], [2], [0, 0, 0, 1, 1, 2], [0], [0]>} : vector<4x48x32xbf16>, vector<4x32x8xbf16>, vector<4x48x8xf32> -> vector<4x48x8xf32>
    "tpu.trace_stop"() : () -> ()
    %176 = arith.truncf %175 : vector<4x48x8xf32> to vector<4x48x8xbf16>
    %177 = arith.index_cast %c1_i32 : i32 to index
    %c0_78 = arith.constant 0 : index
    %c0_79 = arith.constant 0 : index
    %c0_80 = arith.constant 0 : index
    %178 = vector.load %arg8[%177, %c0_78, %c0_79, %c0_80] : memref<2x4x32x8xbf16, #tpu.memory_space<vmem>>, vector<1x4x32x8xbf16>
    %179 = vector.shape_cast %178 : vector<1x4x32x8xbf16> to vector<4x32x8xbf16>
    "tpu.trace_start"() <{level = 10 : i32, message = "hnc,hcd->hnd"}> : () -> ()
    %cst_81 = arith.constant dense<0.000000e+00> : vector<4x48x8xf32>
    %180 = tpu.matmul %166, %179, %cst_81 {dimension_numbers = #tpu.dot_dimension_numbers<[2], [1], [1], [2], [0, 0, 0, 1, 1, 2], [0], [0]>} : vector<4x48x32xbf16>, vector<4x32x8xbf16>, vector<4x48x8xf32> -> vector<4x48x8xf32>
    "tpu.trace_stop"() : () -> ()
    %181 = arith.truncf %180 : vector<4x48x8xf32> to vector<4x48x8xbf16>
    "tpu.trace_start"() <{level = 10 : i32, message = "hnd,hmd->hnm"}> : () -> ()
    %cst_82 = arith.constant dense<0.000000e+00> : vector<4x48x48xf32>
    %182 = tpu.matmul %171, %176, %cst_82 {dimension_numbers = #tpu.dot_dimension_numbers<[2], [2], [1], [1], [0, 0, 0, 1, 1, 1], [0], [0]>} : vector<4x48x8xbf16>, vector<4x48x8xbf16>, vector<4x48x48xf32> -> vector<4x48x48xf32>
    "tpu.trace_stop"() : () -> ()
    %183 = vector.shape_cast %5 : vector<48x48xf32> to vector<1x48x48xf32>
    %184 = vector.broadcast %183 : vector<1x48x48xf32> to vector<4x48x48xf32>
    %185 = arith.addf %182, %184 : vector<4x48x48xf32>
    %cst_83 = arith.constant dense<0xFF800000> : vector<4x48xf32>
    %186 = vector.multi_reduction <maximumf>, %185, %cst_83 [2] : vector<4x48x48xf32> to vector<4x48xf32>
    %187 = vector.shape_cast %186 : vector<4x48xf32> to vector<4x48x1xf32>
    %188 = vector.broadcast %187 : vector<4x48x1xf32> to vector<4x48x48xf32>
    %189 = arith.subf %185, %188 : vector<4x48x48xf32>
    %190 = math.exp %189 : vector<4x48x48xf32>
    %cst_84 = arith.constant dense<0.000000e+00> : vector<4x48xf32>
    %191 = vector.multi_reduction <add>, %190, %cst_84 [2] : vector<4x48x48xf32> to vector<4x48xf32>
    %192 = vector.shape_cast %191 : vector<4x48xf32> to vector<4x48x1xf32>
    %193 = vector.broadcast %192 : vector<4x48x1xf32> to vector<4x48x48xf32>
    %194 = arith.divf %190, %193 : vector<4x48x48xf32>
    %195 = arith.truncf %194 : vector<4x48x48xf32> to vector<4x48x48xbf16>
    "tpu.trace_start"() <{level = 10 : i32, message = "hnm,hmd->hnd"}> : () -> ()
    %cst_85 = arith.constant dense<0.000000e+00> : vector<4x48x8xf32>
    %196 = tpu.matmul %195, %181, %cst_85 {dimension_numbers = #tpu.dot_dimension_numbers<[2], [1], [1], [2], [0, 0, 0, 1, 1, 2], [0], [0]>} : vector<4x48x48xbf16>, vector<4x48x8xbf16>, vector<4x48x8xf32> -> vector<4x48x8xf32>
    "tpu.trace_stop"() : () -> ()
    %197 = arith.truncf %196 : vector<4x48x8xf32> to vector<4x48x8xbf16>
    %198 = arith.index_cast %c1_i32 : i32 to index
    %c0_86 = arith.constant 0 : index
    %c0_87 = arith.constant 0 : index
    %c0_88 = arith.constant 0 : index
    %199 = vector.load %arg9[%198, %c0_86, %c0_87, %c0_88] : memref<2x4x8x32xbf16, #tpu.memory_space<vmem>>, vector<1x4x8x32xbf16>
    %200 = vector.shape_cast %199 : vector<1x4x8x32xbf16> to vector<4x8x32xbf16>
    "tpu.trace_start"() <{level = 10 : i32, message = "hnd,hdo->hno"}> : () -> ()
    %cst_89 = arith.constant dense<0.000000e+00> : vector<4x48x32xf32>
    %201 = tpu.matmul %197, %200, %cst_89 {dimension_numbers = #tpu.dot_dimension_numbers<[2], [1], [1], [2], [0, 0, 0, 1, 1, 2], [0], [0]>} : vector<4x48x8xbf16>, vector<4x8x32xbf16>, vector<4x48x32xf32> -> vector<4x48x32xf32>
    "tpu.trace_stop"() : () -> ()
    %cst_90 = arith.constant dense<0.000000e+00> : vector<48x32xf32>
    %202 = vector.multi_reduction <add>, %201, %cst_90 [0] : vector<4x48x32xf32> to vector<48x32xf32>
    %203 = arith.addf %135, %202 : vector<48x32xf32>
    %204 = arith.index_cast %c1_i32 : i32 to index
    %c0_91 = arith.constant 0 : index
    %c0_92 = arith.constant 0 : index
    %205 = vector.load %arg10[%204, %c0_91, %c0_92] : memref<2x1x32xf32, #tpu.memory_space<vmem>>, vector<1x1x32xf32>
    %206 = vector.shape_cast %205 : vector<1x1x32xf32> to vector<1x32xf32>
    %207 = vector.broadcast %206 : vector<1x32xf32> to vector<48x32xf32>
    %208 = arith.addf %203, %207 : vector<48x32xf32>
    %209 = arith.index_cast %c1_i32 : i32 to index
    %c0_93 = arith.constant 0 : index
    %c0_94 = arith.constant 0 : index
    %210 = vector.load %arg11[%209, %c0_93, %c0_94] : memref<2x1x32xf32, #tpu.memory_space<vmem>>, vector<1x1x32xf32>
    %211 = vector.shape_cast %210 : vector<1x1x32xf32> to vector<1x32xf32>
    %212 = arith.index_cast %c1_i32 : i32 to index
    %c0_95 = arith.constant 0 : index
    %c0_96 = arith.constant 0 : index
    %213 = vector.load %arg12[%212, %c0_95, %c0_96] : memref<2x1x32xf32, #tpu.memory_space<vmem>>, vector<1x1x32xf32>
    %214 = vector.shape_cast %213 : vector<1x1x32xf32> to vector<1x32xf32>
    %cst_97 = arith.constant dense<0.000000e+00> : vector<48xf32>
    %215 = vector.multi_reduction <add>, %208, %cst_97 [1] : vector<48x32xf32> to vector<48xf32>
    %216 = vector.shape_cast %215 : vector<48xf32> to vector<48x1xf32>
    %cst_98 = arith.constant 3.200000e+01 : f32
    %217 = vector.broadcast %cst_98 : f32 to vector<48x1xf32>
    %218 = arith.divf %216, %217 : vector<48x1xf32>
    %219 = vector.broadcast %218 : vector<48x1xf32> to vector<48x32xf32>
    %220 = arith.subf %208, %219 : vector<48x32xf32>
    %221 = arith.mulf %220, %220 : vector<48x32xf32>
    %cst_99 = arith.constant dense<0.000000e+00> : vector<48xf32>
    %222 = vector.multi_reduction <add>, %221, %cst_99 [1] : vector<48x32xf32> to vector<48xf32>
    %223 = vector.shape_cast %222 : vector<48xf32> to vector<48x1xf32>
    %cst_100 = arith.constant 3.200000e+01 : f32
    %224 = vector.broadcast %cst_100 : f32 to vector<48x1xf32>
    %225 = arith.divf %223, %224 : vector<48x1xf32>
    %226 = vector.broadcast %218 : vector<48x1xf32> to vector<48x32xf32>
    %227 = arith.subf %208, %226 : vector<48x32xf32>
    %cst_101 = arith.constant 9.99999974E-6 : f32
    %228 = vector.broadcast %cst_101 : f32 to vector<48x1xf32>
    %229 = arith.addf %225, %228 : vector<48x1xf32>
    %230 = math.rsqrt %229 : vector<48x1xf32>
    %231 = vector.broadcast %230 : vector<48x1xf32> to vector<48x32xf32>
    %232 = arith.mulf %227, %231 : vector<48x32xf32>
    %233 = vector.broadcast %211 : vector<1x32xf32> to vector<48x32xf32>
    %234 = arith.mulf %232, %233 : vector<48x32xf32>
    %235 = vector.broadcast %214 : vector<1x32xf32> to vector<48x32xf32>
    %236 = arith.addf %234, %235 : vector<48x32xf32>
    %237 = arith.truncf %236 : vector<48x32xf32> to vector<48x32xbf16>
    %238 = arith.index_cast %c1_i32 : i32 to index
    %c0_102 = arith.constant 0 : index
    %c0_103 = arith.constant 0 : index
    %239 = vector.load %arg13[%238, %c0_102, %c0_103] : memref<2x32x128xbf16, #tpu.memory_space<vmem>>, vector<1x32x128xbf16>
    %240 = vector.shape_cast %239 : vector<1x32x128xbf16> to vector<32x128xbf16>
    %cst_104 = arith.constant dense<0.000000e+00> : vector<48x128xf32>
    %241 = tpu.matmul %237, %240, %cst_104 {dimension_numbers = #tpu.dot_dimension_numbers<[1], [0], [0], [1], [0, 0, 1, 1], [], []>} : vector<48x32xbf16>, vector<32x128xbf16>, vector<48x128xf32> -> vector<48x128xf32>
    %242 = arith.index_cast %c1_i32 : i32 to index
    %c0_105 = arith.constant 0 : index
    %c0_106 = arith.constant 0 : index
    %243 = vector.load %arg14[%242, %c0_105, %c0_106] : memref<2x1x128xf32, #tpu.memory_space<vmem>>, vector<1x1x128xf32>
    %244 = vector.shape_cast %243 : vector<1x1x128xf32> to vector<1x128xf32>
    %245 = vector.broadcast %244 : vector<1x128xf32> to vector<48x128xf32>
    %246 = arith.addf %241, %245 : vector<48x128xf32>
    %cst_107 = arith.constant 5.000000e-01 : f32
    %247 = vector.broadcast %cst_107 : f32 to vector<48x128xf32>
    %248 = arith.mulf %247, %246 : vector<48x128xf32>
    %cst_108 = arith.constant 0.707106769 : f32
    %249 = vector.broadcast %cst_108 : f32 to vector<48x128xf32>
    %250 = arith.mulf %246, %249 : vector<48x128xf32>
    %251 = math.erf %250 : vector<48x128xf32>
    %cst_109 = arith.constant 1.000000e+00 : f32
    %252 = vector.broadcast %cst_109 : f32 to vector<48x128xf32>
    %253 = arith.addf %252, %251 : vector<48x128xf32>
    %254 = arith.mulf %248, %253 : vector<48x128xf32>
    %255 = arith.truncf %254 : vector<48x128xf32> to vector<48x128xbf16>
    %256 = arith.index_cast %c1_i32 : i32 to index
    %c0_110 = arith.constant 0 : index
    %c0_111 = arith.constant 0 : index
    %257 = vector.load %arg15[%256, %c0_110, %c0_111] : memref<2x128x32xbf16, #tpu.memory_space<vmem>>, vector<1x128x32xbf16>
    %258 = vector.shape_cast %257 : vector<1x128x32xbf16> to vector<128x32xbf16>
    %cst_112 = arith.constant dense<0.000000e+00> : vector<48x32xf32>
    %259 = tpu.matmul %255, %258, %cst_112 {dimension_numbers = #tpu.dot_dimension_numbers<[1], [0], [0], [1], [0, 0, 1, 1], [], []>} : vector<48x128xbf16>, vector<128x32xbf16>, vector<48x32xf32> -> vector<48x32xf32>
    %260 = arith.index_cast %c1_i32 : i32 to index
    %c0_113 = arith.constant 0 : index
    %c0_114 = arith.constant 0 : index
    %261 = vector.load %arg16[%260, %c0_113, %c0_114] : memref<2x1x32xf32, #tpu.memory_space<vmem>>, vector<1x1x32xf32>
    %262 = vector.shape_cast %261 : vector<1x1x32xf32> to vector<1x32xf32>
    %263 = vector.broadcast %262 : vector<1x32xf32> to vector<48x32xf32>
    %264 = arith.addf %259, %263 : vector<48x32xf32>
    %265 = arith.addf %208, %264 : vector<48x32xf32>
    %c2_i32 = arith.constant 2 : i32
    %266 = vector.extract_strided_slice %265 {offsets = [0, 0], sizes = [1, 32], strides = [1, 1]} : vector<48x32xf32> to vector<1x32xf32>
    %267 = vector.extract_strided_slice %265 {offsets = [24, 0], sizes = [1, 32], strides = [1, 1]} : vector<48x32xf32> to vector<1x32xf32>
    %268 = tpu.concatenate %266, %267 in 0 : vector<1x32xf32>, vector<1x32xf32> -> vector<2x32xf32>
    %c0_115 = arith.constant 0 : index
    %c0_116 = arith.constant 0 : index
    %269 = vector.load %arg17[%c0_115, %c0_116] : memref<1x32xf32, #tpu.memory_space<vmem>>, vector<1x32xf32>
    %c0_117 = arith.constant 0 : index
    %c0_118 = arith.constant 0 : index
    %270 = vector.load %arg18[%c0_117, %c0_118] : memref<1x32xf32, #tpu.memory_space<vmem>>, vector<1x32xf32>
    %cst_119 = arith.constant dense<0.000000e+00> : vector<2xf32>
    %271 = vector.multi_reduction <add>, %268, %cst_119 [1] : vector<2x32xf32> to vector<2xf32>
    %272 = vector.shape_cast %271 : vector<2xf32> to vector<2x1xf32>
    %cst_120 = arith.constant 3.200000e+01 : f32
    %273 = vector.broadcast %cst_120 : f32 to vector<2x1xf32>
    %274 = arith.divf %272, %273 : vector<2x1xf32>
    %275 = vector.broadcast %274 : vector<2x1xf32> to vector<2x32xf32>
    %276 = arith.subf %268, %275 : vector<2x32xf32>
    %277 = arith.mulf %276, %276 : vector<2x32xf32>
    %cst_121 = arith.constant dense<0.000000e+00> : vector<2xf32>
    %278 = vector.multi_reduction <add>, %277, %cst_121 [1] : vector<2x32xf32> to vector<2xf32>
    %279 = vector.shape_cast %278 : vector<2xf32> to vector<2x1xf32>
    %cst_122 = arith.constant 3.200000e+01 : f32
    %280 = vector.broadcast %cst_122 : f32 to vector<2x1xf32>
    %281 = arith.divf %279, %280 : vector<2x1xf32>
    %282 = vector.broadcast %274 : vector<2x1xf32> to vector<2x32xf32>
    %283 = arith.subf %268, %282 : vector<2x32xf32>
    %cst_123 = arith.constant 9.99999974E-6 : f32
    %284 = vector.broadcast %cst_123 : f32 to vector<2x1xf32>
    %285 = arith.addf %281, %284 : vector<2x1xf32>
    %286 = math.rsqrt %285 : vector<2x1xf32>
    %287 = vector.broadcast %286 : vector<2x1xf32> to vector<2x32xf32>
    %288 = arith.mulf %283, %287 : vector<2x32xf32>
    %289 = vector.broadcast %269 : vector<1x32xf32> to vector<2x32xf32>
    %290 = arith.mulf %288, %289 : vector<2x32xf32>
    %291 = vector.broadcast %270 : vector<1x32xf32> to vector<2x32xf32>
    %292 = arith.addf %290, %291 : vector<2x32xf32>
    %293 = arith.truncf %292 : vector<2x32xf32> to vector<2x32xbf16>
    %c0_124 = arith.constant 0 : index
    %c0_125 = arith.constant 0 : index
    %294 = vector.load %arg19[%c0_124, %c0_125] : memref<32x10xbf16, #tpu.memory_space<vmem>>, vector<32x10xbf16>
    %cst_126 = arith.constant dense<0.000000e+00> : vector<2x10xf32>
    %295 = tpu.matmul %293, %294, %cst_126 {dimension_numbers = #tpu.dot_dimension_numbers<[1], [0], [0], [1], [0, 0, 1, 1], [], []>} : vector<2x32xbf16>, vector<32x10xbf16>, vector<2x10xf32> -> vector<2x10xf32>
    %c0_127 = arith.constant 0 : index
    %c0_128 = arith.constant 0 : index
    %296 = vector.load %arg20[%c0_127, %c0_128] : memref<1x10xf32, #tpu.memory_space<vmem>>, vector<1x10xf32>
    %297 = vector.broadcast %296 : vector<1x10xf32> to vector<2x10xf32>
    %298 = arith.addf %295, %297 : vector<2x10xf32>
    %c0_129 = arith.constant 0 : index
    %c0_130 = arith.constant 0 : index
    %299 = vector.load %arg21[%c0_129, %c0_130] : memref<2x10xf32, #tpu.memory_space<vmem>>, vector<2x10xf32>
    tpu.vector_store %arg21[%c0_129, %c0_130], %298 {strides = array<i32>} : memref<2x10xf32, #tpu.memory_space<vmem>>, vector<2x10xf32>,
    return
  }
}

</mosaic_0001>

<llo_original>
// kernel: vit_forward.1
$region0: #{vit_forward.1}
  #allocation0 [shape = 'u32[]', space=smem, size = 0x4, offset = 0x4, fixed_abs, tag = 'smem constant byte address 0x4 - core index']
  #allocation1 [shape = 'u32[144,128]{1,0:T(1,128)}', space=vmem, size = 0x12000, scoped, tag = 'internal scratch']
  %s0 = inlined_call_operand.vmem [shape: bf16[48,48], index: 0, kind: input, shape index: {}]
  %s1 = inlined_call_operand.vmem [shape: bf16[48,32], index: 1, kind: input, shape index: {}]
  %s2 = inlined_call_operand.vmem [shape: f32[48,32], index: 2, kind: input, shape index: {}]
  %s3 = inlined_call_operand.vmem [shape: f32[48,48], index: 3, kind: input, shape index: {}]
  %s4 = inlined_call_operand.vmem [shape: f32[2,1,32], index: 4, kind: input, shape index: {}]
  %s5 = inlined_call_operand.vmem [shape: f32[2,1,32], index: 5, kind: input, shape index: {}]
  %s6 = inlined_call_operand.vmem [shape: bf16[2,4,32,8], index: 6, kind: input, shape index: {}]
  %s7 = inlined_call_operand.vmem [shape: bf16[2,4,32,8], index: 7, kind: input, shape index: {}]
  %s8 = inlined_call_operand.vmem [shape: bf16[2,4,32,8], index: 8, kind: input, shape index: {}]
  %s9 = inlined_call_operand.vmem [shape: bf16[2,4,8,32], index: 9, kind: input, shape index: {}]
  %s10 = inlined_call_operand.vmem [shape: f32[2,1,32], index: 10, kind: input, shape index: {}]
  %s11 = inlined_call_operand.vmem [shape: f32[2,1,32], index: 11, kind: input, shape index: {}]
  %s12 = inlined_call_operand.vmem [shape: f32[2,1,32], index: 12, kind: input, shape index: {}]
  %s13 = inlined_call_operand.vmem [shape: bf16[2,32,128], index: 13, kind: input, shape index: {}]
  %s14 = inlined_call_operand.vmem [shape: f32[2,1,128], index: 14, kind: input, shape index: {}]
  %s15 = inlined_call_operand.vmem [shape: bf16[2,128,32], index: 15, kind: input, shape index: {}]
  %s16 = inlined_call_operand.vmem [shape: f32[2,1,32], index: 16, kind: input, shape index: {}]
  %s17 = inlined_call_operand.vmem [shape: f32[1,32], index: 17, kind: input, shape index: {}]
  %s18 = inlined_call_operand.vmem [shape: f32[1,32], index: 18, kind: input, shape index: {}]
  %s19 = inlined_call_operand.vmem [shape: bf16[32,10], index: 19, kind: input, shape index: {}]
  %s20 = inlined_call_operand.vmem [shape: f32[1,10], index: 20, kind: input, shape index: {}]
  %s21 = inlined_call_operand.hbm [shape: f32[2,10], index: 21, kind: output, shape index: {}]
  %s22 = sld [smem:[#allocation0]]
  $region94: #{vit_forward.1} parent=0
    _
  %s24 = ssub.s32 1, %s22
  %s25 = scalar_select 0, %s24, %s22
  $region1: #{vit_forward.1} parent=0
    #allocation2 [shape = 'u8[1024]{0}', space=vmem, size = 0x400, scoped, tag = 'output window, operand 0, single buffered']
    #allocation3 [shape = 's32[1]{0}', space=sflag, size = 0x4, scoped, tag = 'scoped memory for vit_forward.1']
    %26 = vsyncpa [#allocation3], 0
    // Predicated region
    $region2: #{vit_forward.1} parent=1 // pred_check
      _
    $region3: #{vit_forward.1} parent=1 // pred_check_branch
      %28 = sbr.rel (0) target = $region5
    $region4: #{vit_forward.1} parent=1 // pred_region
      _
    $region5: #{vit_forward.1} parent=1 // pred_fallthru
      _
    // Predicated region
    $region6: #{vit_forward.1} parent=1 // pred_check
      _
    $region7: #{vit_forward.1} parent=1 // pred_check_branch
      %30 = sbr.rel (0) target = $region9
    $region8: #{vit_forward.1} parent=1 // pred_region
      _
    $region9: #{vit_forward.1} parent=1 // pred_fallthru
      _
    // Predicated region
    $region10: #{vit_forward.1} parent=1 // pred_check
      _
    $region11: #{vit_forward.1} parent=1 // pred_check_branch
      %32 = sbr.rel (0) target = $region13
    $region12: #{vit_forward.1} parent=1 // pred_region
      _
    $region13: #{vit_forward.1} parent=1 // pred_fallthru
      _
    // Predicated region
    $region14: #{vit_forward.1} parent=1 // pred_check
      _
    $region15: #{vit_forward.1} parent=1 // pred_check_branch
      %34 = sbr.rel (0) target = $region17
    $region16: #{vit_forward.1} parent=1 // pred_region
      _
    $region17: #{vit_forward.1} parent=1 // pred_fallthru
      _
    // Predicated region
    $region18: #{vit_forward.1} parent=1 // pred_check
      _
    $region19: #{vit_forward.1} parent=1 // pred_check_branch
      %36 = sbr.rel (0) target = $region21
    $region20: #{vit_forward.1} parent=1 // pred_region
      _
    $region21: #{vit_forward.1} parent=1 // pred_fallthru
      _
    // Predicated region
    $region22: #{vit_forward.1} parent=1 // pred_check
      _
    $region23: #{vit_forward.1} parent=1 // pred_check_branch
      %38 = sbr.rel (0) target = $region25
    $region24: #{vit_forward.1} parent=1 // pred_region
      _
    $region25: #{vit_forward.1} parent=1 // pred_fallthru
      _
    // Predicated region
    $region26: #{vit_forward.1} parent=1 // pred_check
      _
    $region27: #{vit_forward.1} parent=1 // pred_check_branch
      %40 = sbr.rel (0) target = $region29
    $region28: #{vit_forward.1} parent=1 // pred_region
      _
    $region29: #{vit_forward.1} parent=1 // pred_fallthru
      _
    // Predicated region
    $region30: #{vit_forward.1} parent=1 // pred_check
      _
    $region31: #{vit_forward.1} parent=1 // pred_check_branch
      %42 = sbr.rel (0) target = $region33
    $region32: #{vit_forward.1} parent=1 // pred_region
      _
    $region33: #{vit_forward.1} parent=1 // pred_fallthru
      _
    // Predicated region
    $region34: #{vit_forward.1} parent=1 // pred_check
      _
    $region35: #{vit_forward.1} parent=1 // pred_check_branch
      %44 = sbr.rel (0) target = $region37
    $region36: #{vit_forward.1} parent=1 // pred_region
      _
    $region37: #{vit_forward.1} parent=1 // pred_fallthru
      _
    // Predicated region
    $region38: #{vit_forward.1} parent=1 // pred_check
      _
    $region39: #{vit_forward.1} parent=1 // pred_check_branch
      %46 = sbr.rel (0) target = $region41
    $region40: #{vit_forward.1} parent=1 // pred_region
      _
    $region41: #{vit_forward.1} parent=1 // pred_fallthru
      _
    // Predicated region
    $region42: #{vit_forward.1} parent=1 // pred_check
      _
    $region43: #{vit_forward.1} parent=1 // pred_check_branch
      %48 = sbr.rel (0) target = $region45
    $region44: #{vit_forward.1} parent=1 // pred_region
      _
    $region45: #{vit_forward.1} parent=1 // pred_fallthru
      _
    // Predicated region
    $region46: #{vit_forward.1} parent=1 // pred_check
      _
    $region47: #{vit_forward.1} parent=1 // pred_check_branch
      %50 = sbr.rel (0) target = $region49
    $region48: #{vit_forward.1} parent=1 // pred_region
      _
    $region49: #{vit_forward.1} parent=1 // pred_fallthru
      _
    // Predicated region
    $region50: #{vit_forward.1} parent=1 // pred_check
      _
    $region51: #{vit_forward.1} parent=1 // pred_check_branch
      %52 = sbr.rel (0) target = $region53
    $region52: #{vit_forward.1} parent=1 // pred_region
      _
    $region53: #{vit_forward.1} parent=1 // pred_fallthru
      _
    // Predicated region
    $region54: #{vit_forward.1} parent=1 // pred_check
      _
    $region55: #{vit_forward.1} parent=1 // pred_check_branch
      %54 = sbr.rel (0) target = $region57
    $region56: #{vit_forward.1} parent=1 // pred_region
      _
    $region57: #{vit_forward.1} parent=1 // pred_fallthru
      _
    // Predicated region
    $region58: #{vit_forward.1} parent=1 // pred_check
      _
    $region59: #{vit_forward.1} parent=1 // pred_check_branch
      %56 = sbr.rel (0) target = $region61
    $region60: #{vit_forward.1} parent=1 // pred_region
      _
    $region61: #{vit_forward.1} parent=1 // pred_fallthru
      _
    // Predicated region
    $region62: #{vit_forward.1} parent=1 // pred_check
      _
    $region63: #{vit_forward.1} parent=1 // pred_check_branch
      %58 = sbr.rel (0) target = $region65
    $region64: #{vit_forward.1} parent=1 // pred_region
      _
    $region65: #{vit_forward.1} parent=1 // pred_fallthru
      _
    // Predicated region
    $region66: #{vit_forward.1} parent=1 // pred_check
      _
    $region67: #{vit_forward.1} parent=1 // pred_check_branch
      %60 = sbr.rel (0) target = $region69
    $region68: #{vit_forward.1} parent=1 // pred_region
      _
    $region69: #{vit_forward.1} parent=1 // pred_fallthru
      _
    // Predicated region
    $region70: #{vit_forward.1} parent=1 // pred_check
      _
    $region71: #{vit_forward.1} parent=1 // pred_check_branch
      %62 = sbr.rel (0) target = $region73
    $region72: #{vit_forward.1} parent=1 // pred_region
      _
    $region73: #{vit_forward.1} parent=1 // pred_fallthru
      _
    // Predicated region
    $region74: #{vit_forward.1} parent=1 // pred_check
      _
    $region75: #{vit_forward.1} parent=1 // pred_check_branch
      %64 = sbr.rel (0) target = $region77
    $region76: #{vit_forward.1} parent=1 // pred_region
      _
    $region77: #{vit_forward.1} parent=1 // pred_fallthru
      _
    // Predicated region
    $region78: #{vit_forward.1} parent=1 // pred_check
      _
    $region79: #{vit_forward.1} parent=1 // pred_check_branch
      %66 = sbr.rel (0) target = $region81
    $region80: #{vit_forward.1} parent=1 // pred_region
      _
    $region81: #{vit_forward.1} parent=1 // pred_fallthru
      _
    // Predicated region
    $region82: #{vit_forward.1} parent=1 // pred_check
      _
    $region83: #{vit_forward.1} parent=1 // pred_check_branch
      %68 = sbr.rel (0) target = $region85
    $region84: #{vit_forward.1} parent=1 // pred_region
      _
    $region85: #{vit_forward.1} parent=1 // pred_fallthru
      _
    %v70 = vld [vmem:[%s0] sm:$0xf]
    %v71 = vld [vmem:[%s0 + $0x4] sm:$0xf]
    %v72 = vld [vmem:[%s0 + $0x8] sm:$0xf]
    %v73 = vld [vmem:[%s0 + $0xc] sm:$0xf]
    %v74 = vld [vmem:[%s0 + $0x10] sm:$0xf]
    %v75 = vld [vmem:[%s0 + $0x14] sm:$0xf]
    %v76 = vld [vmem:[%s1] sm:$0xf]
    %v77 = vld [vmem:[%s1 + $0x4] sm:$0xf]
    %v78 = vld [vmem:[%s1 + $0x8] sm:$0xf]
    %v79 = vld [vmem:[%s1 + $0xc] sm:$0xf]
    %v80 = vld [vmem:[%s1 + $0x10] sm:$0xf]
    %v81 = vld [vmem:[%s1 + $0x14] sm:$0xf]
    %v82 = vld [vmem:[%s2] sm:$0xff]
    %v83 = vld [vmem:[%s2 + $0x8] sm:$0xff]
    %v84 = vld [vmem:[%s2 + $0x10] sm:$0xff]
    %v85 = vld [vmem:[%s2 + $0x18] sm:$0xff]
    %v86 = vld [vmem:[%s2 + $0x20] sm:$0xff]
    %v87 = vld [vmem:[%s2 + $0x28] sm:$0xff]
    %v94 = vunpack.c.l.b16 %v70
    %v95 = vunpack.c.l.b16 %v71
    %v96 = vunpack.c.l.b16 %v72
    %v97 = vunpack.c.l.b16 %v73
    %v98 = vunpack.c.l.b16 %v74
    %v99 = vunpack.c.l.b16 %v75
    %v100 = vpack.c.b16 %v95, %v94
    %v101 = vpack.c.b16 %v97, %v96
    %v102 = vpack.c.b16 %v99, %v98
    %v109 = vunpack.c.l.b16 %v76
    %v110 = vunpack.c.l.b16 %v77
    %v111 = vunpack.c.l.b16 %v78
    %v112 = vunpack.c.l.b16 %v79
    %v113 = vunpack.c.l.b16 %v80
    %v114 = vunpack.c.l.b16 %v81
    %v115 = vpack.c.b16 %v110, %v109
    %v116 = vpack.c.b16 %v112, %v111
    %v117 = vpack.c.b16 %v114, %v113
    %vm121 = vcmask 392192
    %v123 = vsel %vm121, %v100, 0
    %v126 = vsel %vm121, %v101, 0
    %v129 = vsel %vm121, %v102, 0
    %131 = vmatprep.subr.bf16.mxu0 0
    %132 = vmatpush1.bf16.msra.mxu0 %v115
    %133 = vmatprep.subr.bf16.mxu0 0
    %134 = vmatpush1.bf16.msra.mxu0 %v116
    %135 = vmatprep.subr.bf16.mxu0 0
    %136 = vmatpush1.bf16.msra.mxu0 %v117
    %137 = vmatprep.subr.bf16.mxu0 0
    %138 = vmatpush1.bf16.msra.mxu0 0
    %139 = vmatprep.subr.bf16.mxu0 0
    %140 = vmatpush1.bf16.msra.mxu0 0
    %141 = vmatprep.subr.bf16.mxu0 0
    %142 = vmatpush1.bf16.msra.mxu0 0
    %143 = vmatprep.subr.bf16.mxu0 0
    %144 = vmatpush1.bf16.msra.mxu0 0
    %145 = vmatprep.subr.bf16.mxu0 0
    %146 = vmatpush1.bf16.msra.mxu0 0
    %147 = vmatprep.subr.bf16.mxu0 0
    %148 = vmatpush1.bf16.msra.mxu0 0
    %149 = vmatprep.subr.bf16.mxu0 0
    %150 = vmatpush1.bf16.msra.mxu0 0
    %151 = vmatprep.subr.bf16.mxu0 0
    %152 = vmatpush1.bf16.msra.mxu0 0
    %153 = vmatprep.subr.bf16.mxu0 0
    %154 = vmatpush1.bf16.msra.mxu0 0
    %155 = vmatprep.subr.bf16.mxu0 0
    %156 = vmatpush1.bf16.msra.mxu0 0
    %157 = vmatprep.subr.bf16.mxu0 0
    %158 = vmatpush1.bf16.msra.mxu0 0
    %159 = vmatprep.subr.bf16.mxu0 0
    %160 = vmatpush1.bf16.msra.mxu0 0
    %161 = vmatprep.subr.bf16.mxu0 0
    %162 = vmatpush1.bf16.msra.mxu0 0
    %163 = vmatprep.mubr.bf16.mxu0 0
    %164 = vmatmul.mubr.bf16.gmra.mrb[0].mxu0 %v123
    %v165 = vpop.f32.mrb[0].mxu0
    %v166 = vadd.f32 %v82, %v165
    %v167 = vpop.f32.mrb[0].mxu0
    %v168 = vpop.f32.mrb[0].mxu0
    %v169 = vadd.f32 %v83, %v168
    %v170 = vpop.f32.mrb[0].mxu0
    %171 = vmatprep.mubr.bf16.mxu0 0
    %172 = vmatmul.mubr.bf16.gmra.mrb[0].mxu0 %v126
    %v173 = vpop.f32.mrb[0].mxu0
    %v174 = vadd.f32 %v84, %v173
    %v175 = vpop.f32.mrb[0].mxu0
    %v176 = vpop.f32.mrb[0].mxu0
    %v177 = vadd.f32 %v85, %v176
    %v178 = vpop.f32.mrb[0].mxu0
    %179 = vmatprep.mubr.bf16.mxu0 0
    %180 = vmatmul.mubr.bf16.gmra.mrb[0].mxu0 %v129
    %v181 = vpop.f32.mrb[0].mxu0
    %v182 = vadd.f32 %v86, %v181
    %v183 = vpop.f32.mrb[0].mxu0
    %v184 = vpop.f32.mrb[0].mxu0
    %v185 = vadd.f32 %v87, %v184
    %v186 = vpop.f32.mrb[0].mxu0
    %187 = vdwg.mxu0
    %v188 = vld [vmem:[%s3] sm:$0xff]
    %v189 = vld [vmem:[%s3 + $0x8] sm:$0xff]
    %v190 = vld [vmem:[%s3 + $0x10] sm:$0xff]
    %v191 = vld [vmem:[%s3 + $0x18] sm:$0xff]
    %v192 = vld [vmem:[%s3 + $0x20] sm:$0xff]
    %v193 = vld [vmem:[%s3 + $0x28] sm:$0xff]
    %v194 = vld [vmem:[%s4] sm:$0x1]
    %v195 = vld [vmem:[%s5] sm:$0x1]
    %vm196 = vcmask 261120
    %v197 = vsel %vm196, %v166, 0.0
    %198 = vadd.xlane.f32.xlu0 %v197
    %v199 = vpop.xlane.xlu0 %198
    %v200 = vsel %vm196, %v169, 0.0
    %201 = vadd.xlane.f32.xlu0 %v200
    %v202 = vpop.xlane.xlu0 %201
    %v203 = vsel %vm196, %v174, 0.0
    %204 = vadd.xlane.f32.xlu0 %v203
    %v205 = vpop.xlane.xlu0 %204
    %v206 = vsel %vm196, %v177, 0.0
    %207 = vadd.xlane.f32.xlu0 %v206
    %v208 = vpop.xlane.xlu0 %207
    %v209 = vsel %vm196, %v182, 0.0
    %210 = vadd.xlane.f32.xlu0 %v209
    %v211 = vpop.xlane.xlu0 %210
    %v212 = vsel %vm196, %v185, 0.0
    %213 = vadd.xlane.f32.xlu0 %v212
    %v214 = vpop.xlane.xlu0 %213
    %v215 = vrcp.pop 32.0
    %v216 = vmul.f32 %v199, %v215
    %v217 = vmul.f32 %v202, %v215
    %v218 = vmul.f32 %v205, %v215
    %v219 = vmul.f32 %v208, %v215
    %v220 = vmul.f32 %v211, %v215
    %v221 = vmul.f32 %v214, %v215
    %v222 = vsub.f32 %v166, %v216
    %v223 = vsub.f32 %v169, %v217
    %v224 = vsub.f32 %v174, %v218
    %v225 = vsub.f32 %v177, %v219
    %v226 = vsub.f32 %v182, %v220
    %v227 = vsub.f32 %v185, %v221
    %v228 = vmul.f32 %v222, %v222
    %v229 = vmul.f32 %v223, %v223
    %v230 = vmul.f32 %v224, %v224
    %v231 = vmul.f32 %v225, %v225
    %v232 = vmul.f32 %v226, %v226
    %v233 = vmul.f32 %v227, %v227
    %v234 = vsel %vm196, %v228, 0.0
    %235 = vadd.xlane.f32.xlu0 %v234
    %v236 = vpop.xlane.xlu0 %235
    %v237 = vsel %vm196, %v229, 0.0
    %238 = vadd.xlane.f32.xlu0 %v237
    %v239 = vpop.xlane.xlu0 %238
    %v240 = vsel %vm196, %v230, 0.0
    %241 = vadd.xlane.f32.xlu0 %v240
    %v242 = vpop.xlane.xlu0 %241
    %v243 = vsel %vm196, %v231, 0.0
    %244 = vadd.xlane.f32.xlu0 %v243
    %v245 = vpop.xlane.xlu0 %244
    %v246 = vsel %vm196, %v232, 0.0
    %247 = vadd.xlane.f32.xlu0 %v246
    %v248 = vpop.xlane.xlu0 %247
    %v249 = vsel %vm196, %v233, 0.0
    %250 = vadd.xlane.f32.xlu0 %v249
    %v251 = vpop.xlane.xlu0 %250
    %v252 = vmul.f32 %v236, %v215
    %v253 = vmul.f32 %v239, %v215
    %v254 = vmul.f32 %v242, %v215
    %v255 = vmul.f32 %v245, %v215
    %v256 = vmul.f32 %v248, %v215
    %v257 = vmul.f32 %v251, %v215
    %v258 = vadd.f32 %v252, 1e-05
    %v259 = vadd.f32 %v253, 1e-05
    %v260 = vadd.f32 %v254, 1e-05
    %v261 = vadd.f32 %v255, 1e-05
    %v262 = vadd.f32 %v256, 1e-05
    %v263 = vadd.f32 %v257, 1e-05
    %v264 = vrsqrt.pop %v258
    %v265 = vrsqrt.pop %v259
    %v266 = vrsqrt.pop %v260
    %v267 = vrsqrt.pop %v261
    %v268 = vrsqrt.pop %v262
    %v269 = vrsqrt.pop %v263
    %v270 = vmul.f32 %v222, %v264
    %v271 = vmul.f32 %v223, %v265
    %v272 = vmul.f32 %v224, %v266
    %v273 = vmul.f32 %v225, %v267
    %v274 = vmul.f32 %v226, %v268
    %v275 = vmul.f32 %v227, %v269
    %v277 = vlaneseq
    %v278 = vshrl.u32 %v277, 7
    %v279 = vsub.s32 0, %v278
    %v280 = vrot.slane %v194, %v279
    %v282 = vmul.f32 %v270, %v280
    %v283 = vmul.f32 %v271, %v280
    %v284 = vmul.f32 %v272, %v280
    %v285 = vmul.f32 %v273, %v280
    %v286 = vmul.f32 %v274, %v280
    %v287 = vmul.f32 %v275, %v280
    %v289 = vlaneseq
    %v290 = vshrl.u32 %v289, 7
    %v291 = vsub.s32 0, %v290
    %v292 = vrot.slane %v195, %v291
    %v294 = vadd.f32 %v282, %v292
    %v295 = vadd.f32 %v283, %v292
    %v296 = vadd.f32 %v284, %v292
    %v297 = vadd.f32 %v285, %v292
    %v298 = vadd.f32 %v286, %v292
    %v299 = vadd.f32 %v287, %v292
    %v300 = vpack.c.bf16 %v295, %v294
    %v301 = vpack.c.bf16 %v297, %v296
    %v302 = vpack.c.bf16 %v299, %v298
    %v303 = vld [vmem:[%s6] sm:$0xf]
    %v304 = vld [vmem:[%s6 + $0x4] sm:$0xf]
    %v305 = vld [vmem:[%s6 + $0x8] sm:$0xf]
    %v306 = vld [vmem:[%s6 + $0xc] sm:$0xf]
    %v307 = vld [vmem:[%s6 + $0x10] sm:$0xf]
    %v308 = vld [vmem:[%s6 + $0x14] sm:$0xf]
    %v309 = vld [vmem:[%s6 + $0x18] sm:$0xf]
    %v310 = vld [vmem:[%s6 + $0x1c] sm:$0xf]
    %v311 = vld [vmem:[%s6 + $0x20] sm:$0xf]
    %v312 = vld [vmem:[%s6 + $0x24] sm:$0xf]
    %v313 = vld [vmem:[%s6 + $0x28] sm:$0xf]
    %v314 = vld [vmem:[%s6 + $0x2c] sm:$0xf]
    %v315 = vld [vmem:[%s6 + $0x30] sm:$0xf]
    %v316 = vld [vmem:[%s6 + $0x34] sm:$0xf]
    %v317 = vld [vmem:[%s6 + $0x38] sm:$0xf]
    %v318 = vld [vmem:[%s6 + $0x3c] sm:$0xf]
    %v323 = vunpack.c.l.b16 %v303
    %v324 = vunpack.c.l.b16 %v304
    %v325 = vunpack.c.l.b16 %v305
    %v326 = vunpack.c.l.b16 %v306
    %v327 = vpack.c.b16 %v324, %v323
    %v328 = vpack.c.b16 %v326, %v325
    %v332 = vsel %vm196, %v300, 0
    %v335 = vsel %vm196, %v301, 0
    %v338 = vsel %vm196, %v302, 0
    %340 = vmatprep.subr.bf16.mxu0 0
    %341 = vmatpush1.bf16.msra.mxu0 %v327
    %342 = vmatprep.subr.bf16.mxu0 0
    %343 = vmatpush1.bf16.msra.mxu0 %v328
    %344 = vmatprep.subr.bf16.mxu0 0
    %345 = vmatpush1.bf16.msra.mxu0 0
    %346 = vmatprep.subr.bf16.mxu0 0
    %347 = vmatpush1.bf16.msra.mxu0 0
    %348 = vmatprep.subr.bf16.mxu0 0
    %349 = vmatpush1.bf16.msra.mxu0 0
    %350 = vmatprep.subr.bf16.mxu0 0
    %351 = vmatpush1.bf16.msra.mxu0 0
    %352 = vmatprep.subr.bf16.mxu0 0
    %353 = vmatpush1.bf16.msra.mxu0 0
    %354 = vmatprep.subr.bf16.mxu0 0
    %355 = vmatpush1.bf16.msra.mxu0 0
    %356 = vmatprep.subr.bf16.mxu0 0
    %357 = vmatpush1.bf16.msra.mxu0 0
    %358 = vmatprep.subr.bf16.mxu0 0
    %359 = vmatpush1.bf16.msra.mxu0 0
    %360 = vmatprep.subr.bf16.mxu0 0
    %361 = vmatpush1.bf16.msra.mxu0 0
    %362 = vmatprep.subr.bf16.mxu0 0
    %363 = vmatpush1.bf16.msra.mxu0 0
    %364 = vmatprep.subr.bf16.mxu0 0
    %365 = vmatpush1.bf16.msra.mxu0 0
    %366 = vmatprep.subr.bf16.mxu0 0
    %367 = vmatpush1.bf16.msra.mxu0 0
    %368 = vmatprep.subr.bf16.mxu0 0
    %369 = vmatpush1.bf16.msra.mxu0 0
    %370 = vmatprep.subr.bf16.mxu0 0
    %371 = vmatpush1.bf16.msra.mxu0 0
    %372 = vmatprep.mubr.bf16.mxu0 0
    %373 = vmatmul.mubr.bf16.gmra.mrb[0].mxu0 %v332
    %v374 = vpop.f32.mrb[0].mxu0
    %v375 = vadd.f32 0.0, %v374
    %v376 = vpop.f32.mrb[0].mxu0
    %v377 = vpop.f32.mrb[0].mxu0
    %v378 = vadd.f32 0.0, %v377
    %v379 = vpop.f32.mrb[0].mxu0
    %380 = vmatprep.mubr.bf16.mxu0 0
    %381 = vmatmul.mubr.bf16.gmra.mrb[0].mxu0 %v335
    %v382 = vpop.f32.mrb[0].mxu0
    %v383 = vadd.f32 0.0, %v382
    %v384 = vpop.f32.mrb[0].mxu0
    %v385 = vpop.f32.mrb[0].mxu0
    %v386 = vadd.f32 0.0, %v385
    %v387 = vpop.f32.mrb[0].mxu0
    %388 = vmatprep.mubr.bf16.mxu0 0
    %389 = vmatmul.mubr.bf16.gmra.mrb[0].mxu0 %v338
    %v390 = vpop.f32.mrb[0].mxu0
    %v391 = vadd.f32 0.0, %v390
    %v392 = vpop.f32.mrb[0].mxu0
    %v393 = vpop.f32.mrb[0].mxu0
    %v394 = vadd.f32 0.0, %v393
    %v395 = vpop.f32.mrb[0].mxu0
    %396 = vdwg.mxu0
    %v401 = vunpack.c.l.b16 %v307
    %v402 = vunpack.c.l.b16 %v308
    %v403 = vunpack.c.l.b16 %v309
    %v404 = vunpack.c.l.b16 %v310
    %v405 = vpack.c.b16 %v402, %v401
    %v406 = vpack.c.b16 %v404, %v403
    %409 = vmatprep.subr.bf16.mxu0 0
    %410 = vmatpush1.bf16.msra.mxu0 %v405
    %411 = vmatprep.subr.bf16.mxu0 0
    %412 = vmatpush1.bf16.msra.mxu0 %v406
    %413 = vmatprep.subr.bf16.mxu0 0
    %414 = vmatpush1.bf16.msra.mxu0 0
    %415 = vmatprep.subr.bf16.mxu0 0
    %416 = vmatpush1.bf16.msra.mxu0 0
    %417 = vmatprep.subr.bf16.mxu0 0
    %418 = vmatpush1.bf16.msra.mxu0 0
    %419 = vmatprep.subr.bf16.mxu0 0
    %420 = vmatpush1.bf16.msra.mxu0 0
    %421 = vmatprep.subr.bf16.mxu0 0
    %422 = vmatpush1.bf16.msra.mxu0 0
    %423 = vmatprep.subr.bf16.mxu0 0
    %424 = vmatpush1.bf16.msra.mxu0 0
    %425 = vmatprep.subr.bf16.mxu0 0
    %426 = vmatpush1.bf16.msra.mxu0 0
    %427 = vmatprep.subr.bf16.mxu0 0
    %428 = vmatpush1.bf16.msra.mxu0 0
    %429 = vmatprep.subr.bf16.mxu0 0
    %430 = vmatpush1.bf16.msra.mxu0 0
    %431 = vmatprep.subr.bf16.mxu0 0
    %432 = vmatpush1.bf16.msra.mxu0 0
    %433 = vmatprep.subr.bf16.mxu0 0
    %434 = vmatpush1.bf16.msra.mxu0 0
    %435 = vmatprep.subr.bf16.mxu0 0
    %436 = vmatpush1.bf16.msra.mxu0 0
    %437 = vmatprep.subr.bf16.mxu0 0
    %438 = vmatpush1.bf16.msra.mxu0 0
    %439 = vmatprep.subr.bf16.mxu0 0
    %440 = vmatpush1.bf16.msra.mxu0 0
    %441 = vmatprep.mubr.bf16.mxu0 0
    %442 = vmatmul.mubr.bf16.gmra.mrb[0].mxu0 %v332
    %v443 = vpop.f32.mrb[0].mxu0
    %v444 = vadd.f32 0.0, %v443
    %v445 = vpop.f32.mrb[0].mxu0
    %v446 = vpop.f32.mrb[0].mxu0
    %v447 = vadd.f32 0.0, %v446
    %v448 = vpop.f32.mrb[0].mxu0
    %449 = vmatprep.mubr.bf16.mxu0 0
    %450 = vmatmul.mubr.bf16.gmra.mrb[0].mxu0 %v335
    %v451 = vpop.f32.mrb[0].mxu0
    %v452 = vadd.f32 0.0, %v451
    %v453 = vpop.f32.mrb[0].mxu0
    %v454 = vpop.f32.mrb[0].mxu0
    %v455 = vadd.f32 0.0, %v454
    %v456 = vpop.f32.mrb[0].mxu0
    %457 = vmatprep.mubr.bf16.mxu0 0
    %458 = vmatmul.mubr.bf16.gmra.mrb[0].mxu0 %v338
    %v459 = vpop.f32.mrb[0].mxu0
    %v460 = vadd.f32 0.0, %v459
    %v461 = vpop.f32.mrb[0].mxu0
    %v462 = vpop.f32.mrb[0].mxu0
    %v463 = vadd.f32 0.0, %v462
    %v464 = vpop.f32.mrb[0].mxu0
    %465 = vdwg.mxu0
    %v470 = vunpack.c.l.b16 %v311
    %v471 = vunpack.c.l.b16 %v312
    %v472 = vunpack.c.l.b16 %v313
    %v473 = vunpack.c.l.b16 %v314
    %v474 = vpack.c.b16 %v471, %v470
    %v475 = vpack.c.b16 %v473, %v472
    %478 = vmatprep.subr.bf16.mxu0 0
    %479 = vmatpush1.bf16.msra.mxu0 %v474
    %480 = vmatprep.subr.bf16.mxu0 0
    %481 = vmatpush1.bf16.msra.mxu0 %v475
    %482 = vmatprep.subr.bf16.mxu0 0
    %483 = vmatpush1.bf16.msra.mxu0 0
    %484 = vmatprep.subr.bf16.mxu0 0
    %485 = vmatpush1.bf16.msra.mxu0 0
    %486 = vmatprep.subr.bf16.mxu0 0
    %487 = vmatpush1.bf16.msra.mxu0 0
    %488 = vmatprep.subr.bf16.mxu0 0
    %489 = vmatpush1.bf16.msra.mxu0 0
    %490 = vmatprep.subr.bf16.mxu0 0
    %491 = vmatpush1.bf16.msra.mxu0 0
    %492 = vmatprep.subr.bf16.mxu0 0
    %493 = vmatpush1.bf16.msra.mxu0 0
    %494 = vmatprep.subr.bf16.mxu0 0
    %495 = vmatpush1.bf16.msra.mxu0 0
    %496 = vmatprep.subr.bf16.mxu0 0
    %497 = vmatpush1.bf16.msra.mxu0 0
    %498 = vmatprep.subr.bf16.mxu0 0
    %499 = vmatpush1.bf16.msra.mxu0 0
    %500 = vmatprep.subr.bf16.mxu0 0
    %501 = vmatpush1.bf16.msra.mxu0 0
    %502 = vmatprep.subr.bf16.mxu0 0
    %503 = vmatpush1.bf16.msra.mxu0 0
    %504 = vmatprep.subr.bf16.mxu0 0
    %505 = vmatpush1.bf16.msra.mxu0 0
    %506 = vmatprep.subr.bf16.mxu0 0
    %507 = vmatpush1.bf16.msra.mxu0 0
    %508 = vmatprep.subr.bf16.mxu0 0
    %509 = vmatpush1.bf16.msra.mxu0 0
    %510 = vmatprep.mubr.bf16.mxu0 0
    %511 = vmatmul.mubr.bf16.gmra.mrb[0].mxu0 %v332
    %v512 = vpop.f32.mrb[0].mxu0
    %v513 = vadd.f32 0.0, %v512
    %v514 = vpop.f32.mrb[0].mxu0
    %v515 = vpop.f32.mrb[0].mxu0
    %v516 = vadd.f32 0.0, %v515
    %v517 = vpop.f32.mrb[0].mxu0
    %518 = vmatprep.mubr.bf16.mxu0 0
    %519 = vmatmul.mubr.bf16.gmra.mrb[0].mxu0 %v335
    %v520 = vpop.f32.mrb[0].mxu0
    %v521 = vadd.f32 0.0, %v520
    %v522 = vpop.f32.mrb[0].mxu0
    %v523 = vpop.f32.mrb[0].mxu0
    %v524 = vadd.f32 0.0, %v523
    %v525 = vpop.f32.mrb[0].mxu0
    %526 = vmatprep.mubr.bf16.mxu0 0
    %527 = vmatmul.mubr.bf16.gmra.mrb[0].mxu0 %v338
    %v528 = vpop.f32.mrb[0].mxu0
    %v529 = vadd.f32 0.0, %v528
    %v530 = vpop.f32.mrb[0].mxu0
    %v531 = vpop.f32.mrb[0].mxu0
    %v532 = vadd.f32 0.0, %v531
    %v533 = vpop.f32.mrb[0].mxu0
    %534 = vdwg.mxu0
    %v539 = vunpack.c.l.b16 %v315
    %v540 = vunpack.c.l.b16 %v316
    %v541 = vunpack.c.l.b16 %v317
    %v542 = vunpack.c.l.b16 %v318
    %v543 = vpack.c.b16 %v540, %v539
    %v544 = vpack.c.b16 %v542, %v541
    %547 = vmatprep.subr.bf16.mxu0 0
    %548 = vmatpush1.bf16.msra.mxu0 %v543
    %549 = vmatprep.subr.bf16.mxu0 0
    %550 = vmatpush1.bf16.msra.mxu0 %v544
    %551 = vmatprep.subr.bf16.mxu0 0
    %552 = vmatpush1.bf16.msra.mxu0 0
    %553 = vmatprep.subr.bf16.mxu0 0
    %554 = vmatpush1.bf16.msra.mxu0 0
    %555 = vmatprep.subr.bf16.mxu0 0
    %556 = vmatpush1.bf16.msra.mxu0 0
    %557 = vmatprep.subr.bf16.mxu0 0
    %558 = vmatpush1.bf16.msra.mxu0 0
    %559 = vmatprep.subr.bf16.mxu0 0
    %560 = vmatpush1.bf16.msra.mxu0 0
    %561 = vmatprep.subr.bf16.mxu0 0
    %562 = vmatpush1.bf16.msra.mxu0 0
    %563 = vmatprep.subr.bf16.mxu0 0
    %564 = vmatpush1.bf16.msra.mxu0 0
    %565 = vmatprep.subr.bf16.mxu0 0
    %566 = vmatpush1.bf16.msra.mxu0 0
    %567 = vmatprep.subr.bf16.mxu0 0
    %568 = vmatpush1.bf16.msra.mxu0 0
    %569 = vmatprep.subr.bf16.mxu0 0
    %570 = vmatpush1.bf16.msra.mxu0 0
    %571 = vmatprep.subr.bf16.mxu0 0
    %572 = vmatpush1.bf16.msra.mxu0 0
    %573 = vmatprep.subr.bf16.mxu0 0
    %574 = vmatpush1.bf16.msra.mxu0 0
    %575 = vmatprep.subr.bf16.mxu0 0
    %576 = vmatpush1.bf16.msra.mxu0 0
    %577 = vmatprep.subr.bf16.mxu0 0
    %578 = vmatpush1.bf16.msra.mxu0 0
    %579 = vmatprep.mubr.bf16.mxu0 0
    %580 = vmatmul.mubr.bf16.gmra.mrb[0].mxu0 %v332
    %v581 = vpop.f32.mrb[0].mxu0
    %v582 = vadd.f32 0.0, %v581
    %v583 = vpop.f32.mrb[0].mxu0
    %v584 = vpop.f32.mrb[0].mxu0
    %v585 = vadd.f32 0.0, %v584
    %v586 = vpop.f32.mrb[0].mxu0
    %587 = vmatprep.mubr.bf16.mxu0 0
    %588 = vmatmul.mubr.bf16.gmra.mrb[0].mxu0 %v335
    %v589 = vpop.f32.mrb[0].mxu0
    %v590 = vadd.f32 0.0, %v589
    %v591 = vpop.f32.mrb[0].mxu0
    %v592 = vpop.f32.mrb[0].mxu0
    %v593 = vadd.f32 0.0, %v592
    %v594 = vpop.f32.mrb[0].mxu0
    %595 = vmatprep.mubr.bf16.mxu0 0
    %596 = vmatmul.mubr.bf16.gmra.mrb[0].mxu0 %v338
    %v597 = vpop.f32.mrb[0].mxu0
    %v598 = vadd.f32 0.0, %v597
    %v599 = vpop.f32.mrb[0].mxu0
    %v600 = vpop.f32.mrb[0].mxu0
    %v601 = vadd.f32 0.0, %v600
    %v602 = vpop.f32.mrb[0].mxu0
    %603 = vdwg.mxu0
    %v604 = vpack.c.bf16 %v378, %v375
    %v605 = vpack.c.bf16 %v386, %v383
    %v606 = vpack.c.bf16 %v394, %v391
    %v607 = vpack.c.bf16 %v447, %v444
    %v608 = vpack.c.bf16 %v455, %v452
    %v609 = vpack.c.bf16 %v463, %v460
    %v610 = vpack.c.bf16 %v516, %v513
    %v611 = vpack.c.bf16 %v524, %v521
    %v612 = vpack.c.bf16 %v532, %v529
    %v613 = vpack.c.bf16 %v585, %v582
    %v614 = vpack.c.bf16 %v593, %v590
    %v615 = vpack.c.bf16 %v601, %v598
    %v616 = vld [vmem:[%s7] sm:$0xf]
    %v617 = vld [vmem:[%s7 + $0x4] sm:$0xf]
    %v618 = vld [vmem:[%s7 + $0x8] sm:$0xf]
    %v619 = vld [vmem:[%s7 + $0xc] sm:$0xf]
    %v620 = vld [vmem:[%s7 + $0x10] sm:$0xf]
    %v621 = vld [vmem:[%s7 + $0x14] sm:$0xf]
    %v622 = vld [vmem:[%s7 + $0x18] sm:$0xf]
    %v623 = vld [vmem:[%s7 + $0x1c] sm:$0xf]
    %v624 = vld [vmem:[%s7 + $0x20] sm:$0xf]
    %v625 = vld [vmem:[%s7 + $0x24] sm:$0xf]
    %v626 = vld [vmem:[%s7 + $0x28] sm:$0xf]
    %v627 = vld [vmem:[%s7 + $0x2c] sm:$0xf]
    %v628 = vld [vmem:[%s7 + $0x30] sm:$0xf]
    %v629 = vld [vmem:[%s7 + $0x34] sm:$0xf]
    %v630 = vld [vmem:[%s7 + $0x38] sm:$0xf]
    %v631 = vld [vmem:[%s7 + $0x3c] sm:$0xf]
    %v636 = vunpack.c.l.b16 %v616
    %v637 = vunpack.c.l.b16 %v617
    %v638 = vunpack.c.l.b16 %v618
    %v639 = vunpack.c.l.b16 %v619
    %v640 = vpack.c.b16 %v637, %v636
    %v641 = vpack.c.b16 %v639, %v638
    %644 = vmatprep.subr.bf16.mxu0 0
    %645 = vmatpush1.bf16.msra.mxu0 %v640
    %646 = vmatprep.subr.bf16.mxu0 0
    %647 = vmatpush1.bf16.msra.mxu0 %v641
    %648 = vmatprep.subr.bf16.mxu0 0
    %649 = vmatpush1.bf16.msra.mxu0 0
    %650 = vmatprep.subr.bf16.mxu0 0
    %651 = vmatpush1.bf16.msra.mxu0 0
    %652 = vmatprep.subr.bf16.mxu0 0
    %653 = vmatpush1.bf16.msra.mxu0 0
    %654 = vmatprep.subr.bf16.mxu0 0
    %655 = vmatpush1.bf16.msra.mxu0 0
    %656 = vmatprep.subr.bf16.mxu0 0
    %657 = vmatpush1.bf16.msra.mxu0 0
    %658 = vmatprep.subr.bf16.mxu0 0
    %659 = vmatpush1.bf16.msra.mxu0 0
    %660 = vmatprep.subr.bf16.mxu0 0
    %661 = vmatpush1.bf16.msra.mxu0 0
    %662 = vmatprep.subr.bf16.mxu0 0
    %663 = vmatpush1.bf16.msra.mxu0 0
    %664 = vmatprep.subr.bf16.mxu0 0
    %665 = vmatpush1.bf16.msra.mxu0 0
    %666 = vmatprep.subr.bf16.mxu0 0
    %667 = vmatpush1.bf16.msra.mxu0 0
    %668 = vmatprep.subr.bf16.mxu0 0
    %669 = vmatpush1.bf16.msra.mxu0 0
    %670 = vmatprep.subr.bf16.mxu0 0
    %671 = vmatpush1.bf16.msra.mxu0 0
    %672 = vmatprep.subr.bf16.mxu0 0
    %673 = vmatpush1.bf16.msra.mxu0 0
    %674 = vmatprep.subr.bf16.mxu0 0
    %675 = vmatpush1.bf16.msra.mxu0 0
    %676 = vmatprep.mubr.bf16.mxu0 0
    %677 = vmatmul.mubr.bf16.gmra.mrb[0].mxu0 %v332
    %v678 = vpop.f32.mrb[0].mxu0
    %v679 = vadd.f32 0.0, %v678
    %v680 = vpop.f32.mrb[0].mxu0
    %v681 = vpop.f32.mrb[0].mxu0
    %v682 = vadd.f32 0.0, %v681
    %v683 = vpop.f32.mrb[0].mxu0
    %684 = vmatprep.mubr.bf16.mxu0 0
    %685 = vmatmul.mubr.bf16.gmra.mrb[0].mxu0 %v335
    %v686 = vpop.f32.mrb[0].mxu0
    %v687 = vadd.f32 0.0, %v686
    %v688 = vpop.f32.mrb[0].mxu0
    %v689 = vpop.f32.mrb[0].mxu0
    %v690 = vadd.f32 0.0, %v689
    %v691 = vpop.f32.mrb[0].mxu0
    %692 = vmatprep.mubr.bf16.mxu0 0
    %693 = vmatmul.mubr.bf16.gmra.mrb[0].mxu0 %v338
    %v694 = vpop.f32.mrb[0].mxu0
    %v695 = vadd.f32 0.0, %v694
    %v696 = vpop.f32.mrb[0].mxu0
    %v697 = vpop.f32.mrb[0].mxu0
    %v698 = vadd.f32 0.0, %v697
    %v699 = vpop.f32.mrb[0].mxu0
    %700 = vdwg.mxu0
    %v705 = vunpack.c.l.b16 %v620
    %v706 = vunpack.c.l.b16 %v621
    %v707 = vunpack.c.l.b16 %v622
    %v708 = vunpack.c.l.b16 %v623
    %v709 = vpack.c.b16 %v706, %v705
    %v710 = vpack.c.b16 %v708, %v707
    %713 = vmatprep.subr.bf16.mxu0 0
    %714 = vmatpush1.bf16.msra.mxu0 %v709
    %715 = vmatprep.subr.bf16.mxu0 0
    %716 = vmatpush1.bf16.msra.mxu0 %v710
    %717 = vmatprep.subr.bf16.mxu0 0
    %718 = vmatpush1.bf16.msra.mxu0 0
    %719 = vmatprep.subr.bf16.mxu0 0
    %720 = vmatpush1.bf16.msra.mxu0 0
    %721 = vmatprep.subr.bf16.mxu0 0
    %722 = vmatpush1.bf16.msra.mxu0 0
    %723 = vmatprep.subr.bf16.mxu0 0
    %724 = vmatpush1.bf16.msra.mxu0 0
    %725 = vmatprep.subr.bf16.mxu0 0
    %726 = vmatpush1.bf16.msra.mxu0 0
    %727 = vmatprep.subr.bf16.mxu0 0
    %728 = vmatpush1.bf16.msra.mxu0 0
    %729 = vmatprep.subr.bf16.mxu0 0
    %730 = vmatpush1.bf16.msra.mxu0 0
    %731 = vmatprep.subr.bf16.mxu0 0
    %732 = vmatpush1.bf16.msra.mxu0 0
    %733 = vmatprep.subr.bf16.mxu0 0
    %734 = vmatpush1.bf16.msra.mxu0 0
    %735 = vmatprep.subr.bf16.mxu0 0
    %736 = vmatpush1.bf16.msra.mxu0 0
    %737 = vmatprep.subr.bf16.mxu0 0
    %738 = vmatpush1.bf16.msra.mxu0 0
    %739 = vmatprep.subr.bf16.mxu0 0
    %740 = vmatpush1.bf16.msra.mxu0 0
    %741 = vmatprep.subr.bf16.mxu0 0
    %742 = vmatpush1.bf16.msra.mxu0 0
    %743 = vmatprep.subr.bf16.mxu0 0
    %744 = vmatpush1.bf16.msra.mxu0 0
    %745 = vmatprep.mubr.bf16.mxu0 0
    %746 = vmatmul.mubr.bf16.gmra.mrb[0].mxu0 %v332
    %v747 = vpop.f32.mrb[0].mxu0
    %v748 = vadd.f32 0.0, %v747
    %v749 = vpop.f32.mrb[0].mxu0
    %v750 = vpop.f32.mrb[0].mxu0
    %v751 = vadd.f32 0.0, %v750
    %v752 = vpop.f32.mrb[0].mxu0
    %753 = vmatprep.mubr.bf16.mxu0 0
    %754 = vmatmul.mubr.bf16.gmra.mrb[0].mxu0 %v335
    %v755 = vpop.f32.mrb[0].mxu0
    %v756 = vadd.f32 0.0, %v755
    %v757 = vpop.f32.mrb[0].mxu0
    %v758 = vpop.f32.mrb[0].mxu0
    %v759 = vadd.f32 0.0, %v758
    %v760 = vpop.f32.mrb[0].mxu0
    %761 = vmatprep.mubr.bf16.mxu0 0
    %762 = vmatmul.mubr.bf16.gmra.mrb[0].mxu0 %v338
    %v763 = vpop.f32.mrb[0].mxu0
    %v764 = vadd.f32 0.0, %v763
    %v765 = vpop.f32.mrb[0].mxu0
    %v766 = vpop.f32.mrb[0].mxu0
    %v767 = vadd.f32 0.0, %v766
    %v768 = vpop.f32.mrb[0].mxu0
    %769 = vdwg.mxu0
    %v774 = vunpack.c.l.b16 %v624
    %v775 = vunpack.c.l.b16 %v625
    %v776 = vunpack.c.l.b16 %v626
    %v777 = vunpack.c.l.b16 %v627
    %v778 = vpack.c.b16 %v775, %v774
    %v779 = vpack.c.b16 %v777, %v776
    %782 = vmatprep.subr.bf16.mxu0 0
    %783 = vmatpush1.bf16.msra.mxu0 %v778
    %784 = vmatprep.subr.bf16.mxu0 0
    %785 = vmatpush1.bf16.msra.mxu0 %v779
    %786 = vmatprep.subr.bf16.mxu0 0
    %787 = vmatpush1.bf16.msra.mxu0 0
    %788 = vmatprep.subr.bf16.mxu0 0
    %789 = vmatpush1.bf16.msra.mxu0 0
    %790 = vmatprep.subr.bf16.mxu0 0
    %791 = vmatpush1.bf16.msra.mxu0 0
    %792 = vmatprep.subr.bf16.mxu0 0
    %793 = vmatpush1.bf16.msra.mxu0 0
    %794 = vmatprep.subr.bf16.mxu0 0
    %795 = vmatpush1.bf16.msra.mxu0 0
    %796 = vmatprep.subr.bf16.mxu0 0
    %797 = vmatpush1.bf16.msra.mxu0 0
    %798 = vmatprep.subr.bf16.mxu0 0
    %799 = vmatpush1.bf16.msra.mxu0 0
    %800 = vmatprep.subr.bf16.mxu0 0
    %801 = vmatpush1.bf16.msra.mxu0 0
    %802 = vmatprep.subr.bf16.mxu0 0
    %803 = vmatpush1.bf16.msra.mxu0 0
    %804 = vmatprep.subr.bf16.mxu0 0
    %805 = vmatpush1.bf16.msra.mxu0 0
    %806 = vmatprep.subr.bf16.mxu0 0
    %807 = vmatpush1.bf16.msra.mxu0 0
    %808 = vmatprep.subr.bf16.mxu0 0
    %809 = vmatpush1.bf16.msra.mxu0 0
    %810 = vmatprep.subr.bf16.mxu0 0
    %811 = vmatpush1.bf16.msra.mxu0 0
    %812 = vmatprep.subr.bf16.mxu0 0
    %813 = vmatpush1.bf16.msra.mxu0 0
    %814 = vmatprep.mubr.bf16.mxu0 0
    %815 = vmatmul.mubr.bf16.gmra.mrb[0].mxu0 %v332
    %v816 = vpop.f32.mrb[0].mxu0
    %v817 = vadd.f32 0.0, %v816
    %v818 = vpop.f32.mrb[0].mxu0
    %v819 = vpop.f32.mrb[0].mxu0
    %v820 = vadd.f32 0.0, %v819
    %v821 = vpop.f32.mrb[0].mxu0
    %822 = vmatprep.mubr.bf16.mxu0 0
    %823 = vmatmul.mubr.bf16.gmra.mrb[0].mxu0 %v335
    %v824 = vpop.f32.mrb[0].mxu0
    %v825 = vadd.f32 0.0, %v824
    %v826 = vpop.f32.mrb[0].mxu0
    %v827 = vpop.f32.mrb[0].mxu0
    %v828 = vadd.f32 0.0, %v827
    %v829 = vpop.f32.mrb[0].mxu0
    %830 = vmatprep.mubr.bf16.mxu0 0
    %831 = vmatmul.mubr.bf16.gmra.mrb[0].mxu0 %v338
    %v832 = vpop.f32.mrb[0].mxu0
    %v833 = vadd.f32 0.0, %v832
    %v834 = vpop.f32.mrb[0].mxu0
    %v835 = vpop.f32.mrb[0].mxu0
    %v836 = vadd.f32 0.0, %v835
    %v837 = vpop.f32.mrb[0].mxu0
    %838 = vdwg.mxu0
    %v843 = vunpack.c.l.b16 %v628
    %v844 = vunpack.c.l.b16 %v629
    %v845 = vunpack.c.l.b16 %v630
    %v846 = vunpack.c.l.b16 %v631
    %v847 = vpack.c.b16 %v844, %v843
    %v848 = vpack.c.b16 %v846, %v845
    %851 = vmatprep.subr.bf16.mxu0 0
    %852 = vmatpush1.bf16.msra.mxu0 %v847
    %853 = vmatprep.subr.bf16.mxu0 0
    %854 = vmatpush1.bf16.msra.mxu0 %v848
    %855 = vmatprep.subr.bf16.mxu0 0
    %856 = vmatpush1.bf16.msra.mxu0 0
    %857 = vmatprep.subr.bf16.mxu0 0
    %858 = vmatpush1.bf16.msra.mxu0 0
    %859 = vmatprep.subr.bf16.mxu0 0
    %860 = vmatpush1.bf16.msra.mxu0 0
    %861 = vmatprep.subr.bf16.mxu0 0
    %862 = vmatpush1.bf16.msra.mxu0 0
    %863 = vmatprep.subr.bf16.mxu0 0
    %864 = vmatpush1.bf16.msra.mxu0 0
    %865 = vmatprep.subr.bf16.mxu0 0
    %866 = vmatpush1.bf16.msra.mxu0 0
    %867 = vmatprep.subr.bf16.mxu0 0
    %868 = vmatpush1.bf16.msra.mxu0 0
    %869 = vmatprep.subr.bf16.mxu0 0
    %870 = vmatpush1.bf16.msra.mxu0 0
    %871 = vmatprep.subr.bf16.mxu0 0
    %872 = vmatpush1.bf16.msra.mxu0 0
    %873 = vmatprep.subr.bf16.mxu0 0
    %874 = vmatpush1.bf16.msra.mxu0 0
    %875 = vmatprep.subr.bf16.mxu0 0
    %876 = vmatpush1.bf16.msra.mxu0 0
    %877 = vmatprep.subr.bf16.mxu0 0
    %878 = vmatpush1.bf16.msra.mxu0 0
    %879 = vmatprep.subr.bf16.mxu0 0
    %880 = vmatpush1.bf16.msra.mxu0 0
    %881 = vmatprep.subr.bf16.mxu0 0
    %882 = vmatpush1.bf16.msra.mxu0 0
    %883 = vmatprep.mubr.bf16.mxu0 0
    %884 = vmatmul.mubr.bf16.gmra.mrb[0].mxu0 %v332
    %v885 = vpop.f32.mrb[0].mxu0
    %v886 = vadd.f32 0.0, %v885
    %v887 = vpop.f32.mrb[0].mxu0
    %v888 = vpop.f32.mrb[0].mxu0
    %v889 = vadd.f32 0.0, %v888
    %v890 = vpop.f32.mrb[0].mxu0
    %891 = vmatprep.mubr.bf16.mxu0 0
    %892 = vmatmul.mubr.bf16.gmra.mrb[0].mxu0 %v335
    %v893 = vpop.f32.mrb[0].mxu0
    %v894 = vadd.f32 0.0, %v893
    %v895 = vpop.f32.mrb[0].mxu0
    %v896 = vpop.f32.mrb[0].mxu0
    %v897 = vadd.f32 0.0, %v896
    %v898 = vpop.f32.mrb[0].mxu0
    %899 = vmatprep.mubr.bf16.mxu0 0
    %900 = vmatmul.mubr.bf16.gmra.mrb[0].mxu0 %v338
    %v901 = vpop.f32.mrb[0].mxu0
    %v902 = vadd.f32 0.0, %v901
    %v903 = vpop.f32.mrb[0].mxu0
    %v904 = vpop.f32.mrb[0].mxu0
    %v905 = vadd.f32 0.0, %v904
    %v906 = vpop.f32.mrb[0].mxu0
    %907 = vdwg.mxu0
    %v908 = vpack.c.bf16 %v682, %v679
    %v909 = vpack.c.bf16 %v690, %v687
    %v910 = vpack.c.bf16 %v698, %v695
    %v911 = vpack.c.bf16 %v751, %v748
    %v912 = vpack.c.bf16 %v759, %v756
    %v913 = vpack.c.bf16 %v767, %v764
    %v914 = vpack.c.bf16 %v820, %v817
    %v915 = vpack.c.bf16 %v828, %v825
    %v916 = vpack.c.bf16 %v836, %v833
    %v917 = vpack.c.bf16 %v889, %v886
    %v918 = vpack.c.bf16 %v897, %v894
    %v919 = vpack.c.bf16 %v905, %v902
    %v920 = vld [vmem:[%s8] sm:$0xf]
    %v921 = vld [vmem:[%s8 + $0x4] sm:$0xf]
    %v922 = vld [vmem:[%s8 + $0x8] sm:$0xf]
    %v923 = vld [vmem:[%s8 + $0xc] sm:$0xf]
    %v924 = vld [vmem:[%s8 + $0x10] sm:$0xf]
    %v925 = vld [vmem:[%s8 + $0x14] sm:$0xf]
    %v926 = vld [vmem:[%s8 + $0x18] sm:$0xf]
    %v927 = vld [vmem:[%s8 + $0x1c] sm:$0xf]
    %v928 = vld [vmem:[%s8 + $0x20] sm:$0xf]
    %v929 = vld [vmem:[%s8 + $0x24] sm:$0xf]
    %v930 = vld [vmem:[%s8 + $0x28] sm:$0xf]
    %v931 = vld [vmem:[%s8 + $0x2c] sm:$0xf]
    %v932 = vld [vmem:[%s8 + $0x30] sm:$0xf]
    %v933 = vld [vmem:[%s8 + $0x34] sm:$0xf]
    %v934 = vld [vmem:[%s8 + $0x38] sm:$0xf]
    %v935 = vld [vmem:[%s8 + $0x3c] sm:$0xf]
    %v940 = vunpack.c.l.b16 %v920
    %v941 = vunpack.c.l.b16 %v921
    %v942 = vunpack.c.l.b16 %v922
    %v943 = vunpack.c.l.b16 %v923
    %v944 = vpack.c.b16 %v941, %v940
    %v945 = vpack.c.b16 %v943, %v942
    %948 = vmatprep.subr.bf16.mxu0 0
    %949 = vmatpush1.bf16.msra.mxu0 %v944
    %950 = vmatprep.subr.bf16.mxu0 0
    %951 = vmatpush1.bf16.msra.mxu0 %v945
    %952 = vmatprep.subr.bf16.mxu0 0
    %953 = vmatpush1.bf16.msra.mxu0 0
    %954 = vmatprep.subr.bf16.mxu0 0
    %955 = vmatpush1.bf16.msra.mxu0 0
    %956 = vmatprep.subr.bf16.mxu0 0
    %957 = vmatpush1.bf16.msra.mxu0 0
    %958 = vmatprep.subr.bf16.mxu0 0
    %959 = vmatpush1.bf16.msra.mxu0 0
    %960 = vmatprep.subr.bf16.mxu0 0
    %961 = vmatpush1.bf16.msra.mxu0 0
    %962 = vmatprep.subr.bf16.mxu0 0
    %963 = vmatpush1.bf16.msra.mxu0 0
    %964 = vmatprep.subr.bf16.mxu0 0
    %965 = vmatpush1.bf16.msra.mxu0 0
    %966 = vmatprep.subr.bf16.mxu0 0
    %967 = vmatpush1.bf16.msra.mxu0 0
    %968 = vmatprep.subr.bf16.mxu0 0
    %969 = vmatpush1.bf16.msra.mxu0 0
    %970 = vmatprep.subr.bf16.mxu0 0
    %971 = vmatpush1.bf16.msra.mxu0 0
    %972 = vmatprep.subr.bf16.mxu0 0
    %973 = vmatpush1.bf16.msra.mxu0 0
    %974 = vmatprep.subr.bf16.mxu0 0
    %975 = vmatpush1.bf16.msra.mxu0 0
    %976 = vmatprep.subr.bf16.mxu0 0
    %977 = vmatpush1.bf16.msra.mxu0 0
    %978 = vmatprep.subr.bf16.mxu0 0
    %979 = vmatpush1.bf16.msra.mxu0 0
    %980 = vmatprep.mubr.bf16.mxu0 0
    %981 = vmatmul.mubr.bf16.gmra.mrb[0].mxu0 %v332
    %v982 = vpop.f32.mrb[0].mxu0
    %v983 = vadd.f32 0.0, %v982
    %v984 = vpop.f32.mrb[0].mxu0
    %v985 = vpop.f32.mrb[0].mxu0
    %v986 = vadd.f32 0.0, %v985
    %v987 = vpop.f32.mrb[0].mxu0
    %988 = vmatprep.mubr.bf16.mxu0 0
    %989 = vmatmul.mubr.bf16.gmra.mrb[0].mxu0 %v335
    %v990 = vpop.f32.mrb[0].mxu0
    %v991 = vadd.f32 0.0, %v990
    %v992 = vpop.f32.mrb[0].mxu0
    %v993 = vpop.f32.mrb[0].mxu0
    %v994 = vadd.f32 0.0, %v993
    %v995 = vpop.f32.mrb[0].mxu0
    %996 = vmatprep.mubr.bf16.mxu0 0
    %997 = vmatmul.mubr.bf16.gmra.mrb[0].mxu0 %v338
    %v998 = vpop.f32.mrb[0].mxu0
    %v999 = vadd.f32 0.0, %v998
    %v1000 = vpop.f32.mrb[0].mxu0
    %v1001 = vpop.f32.mrb[0].mxu0
    %v1002 = vadd.f32 0.0, %v1001
    %v1003 = vpop.f32.mrb[0].mxu0
    %1004 = vdwg.mxu0
    %v1009 = vunpack.c.l.b16 %v924
    %v1010 = vunpack.c.l.b16 %v925
    %v1011 = vunpack.c.l.b16 %v926
    %v1012 = vunpack.c.l.b16 %v927
    %v1013 = vpack.c.b16 %v1010, %v1009
    %v1014 = vpack.c.b16 %v1012, %v1011
    %1017 = vmatprep.subr.bf16.mxu0 0
    %1018 = vmatpush1.bf16.msra.mxu0 %v1013
    %1019 = vmatprep.subr.bf16.mxu0 0
    %1020 = vmatpush1.bf16.msra.mxu0 %v1014
    %1021 = vmatprep.subr.bf16.mxu0 0
    %1022 = vmatpush1.bf16.msra.mxu0 0
    %1023 = vmatprep.subr.bf16.mxu0 0
    %1024 = vmatpush1.bf16.msra.mxu0 0
    %1025 = vmatprep.subr.bf16.mxu0 0
    %1026 = vmatpush1.bf16.msra.mxu0 0
    %1027 = vmatprep.subr.bf16.mxu0 0
    %1028 = vmatpush1.bf16.msra.mxu0 0
    %1029 = vmatprep.subr.bf16.mxu0 0
    %1030 = vmatpush1.bf16.msra.mxu0 0
    %1031 = vmatprep.subr.bf16.mxu0 0
    %1032 = vmatpush1.bf16.msra.mxu0 0
    %1033 = vmatprep.subr.bf16.mxu0 0
    %1034 = vmatpush1.bf16.msra.mxu0 0
    %1035 = vmatprep.subr.bf16.mxu0 0
    %1036 = vmatpush1.bf16.msra.mxu0 0
    %1037 = vmatprep.subr.bf16.mxu0 0
    %1038 = vmatpush1.bf16.msra.mxu0 0
    %1039 = vmatprep.subr.bf16.mxu0 0
    %1040 = vmatpush1.bf16.msra.mxu0 0
    %1041 = vmatprep.subr.bf16.mxu0 0
    %1042 = vmatpush1.bf16.msra.mxu0 0
    %1043 = vmatprep.subr.bf16.mxu0 0
    %1044 = vmatpush1.bf16.msra.mxu0 0
    %1045 = vmatprep.subr.bf16.mxu0 0
    %1046 = vmatpush1.bf16.msra.mxu0 0
    %1047 = vmatprep.subr.bf16.mxu0 0
    %1048 = vmatpush1.bf16.msra.mxu0 0
    %1049 = vmatprep.mubr.bf16.mxu0 0
    %1050 = vmatmul.mubr.bf16.gmra.mrb[0].mxu0 %v332
    %v1051 = vpop.f32.mrb[0].mxu0
    %v1052 = vadd.f32 0.0, %v1051
    %v1053 = vpop.f32.mrb[0].mxu0
    %v1054 = vpop.f32.mrb[0].mxu0
    %v1055 = vadd.f32 0.0, %v1054
    %v1056 = vpop.f32.mrb[0].mxu0
    %1057 = vmatprep.mubr.bf16.mxu0 0
    %1058 = vmatmul.mubr.bf16.gmra.mrb[0].mxu0 %v335
    %v1059 = vpop.f32.mrb[0].mxu0
    %v1060 = vadd.f32 0.0, %v1059
    %v1061 = vpop.f32.mrb[0].mxu0
    %v1062 = vpop.f32.mrb[0].mxu0
    %v1063 = vadd.f32 0.0, %v1062
    %v1064 = vpop.f32.mrb[0].mxu0
    %1065 = vmatprep.mubr.bf16.mxu0 0
    %1066 = vmatmul.mubr.bf16.gmra.mrb[0].mxu0 %v338
    %v1067 = vpop.f32.mrb[0].mxu0
    %v1068 = vadd.f32 0.0, %v1067
    %v1069 = vpop.f32.mrb[0].mxu0
    %v1070 = vpop.f32.mrb[0].mxu0
    %v1071 = vadd.f32 0.0, %v1070
    %v1072 = vpop.f32.mrb[0].mxu0
    %1073 = vdwg.mxu0
    %v1078 = vunpack.c.l.b16 %v928
    %v1079 = vunpack.c.l.b16 %v929
    %v1080 = vunpack.c.l.b16 %v930
    %v1081 = vunpack.c.l.b16 %v931
    %v1082 = vpack.c.b16 %v1079, %v1078
    %v1083 = vpack.c.b16 %v1081, %v1080
    %1086 = vmatprep.subr.bf16.mxu0 0
    %1087 = vmatpush1.bf16.msra.mxu0 %v1082
    %1088 = vmatprep.subr.bf16.mxu0 0
    %1089 = vmatpush1.bf16.msra.mxu0 %v1083
    %1090 = vmatprep.subr.bf16.mxu0 0
    %1091 = vmatpush1.bf16.msra.mxu0 0
    %1092 = vmatprep.subr.bf16.mxu0 0
    %1093 = vmatpush1.bf16.msra.mxu0 0
    %1094 = vmatprep.subr.bf16.mxu0 0
    %1095 = vmatpush1.bf16.msra.mxu0 0
    %1096 = vmatprep.subr.bf16.mxu0 0
    %1097 = vmatpush1.bf16.msra.mxu0 0
    %1098 = vmatprep.subr.bf16.mxu0 0
    %1099 = vmatpush1.bf16.msra.mxu0 0
    %1100 = vmatprep.subr.bf16.mxu0 0
    %1101 = vmatpush1.bf16.msra.mxu0 0
    %1102 = vmatprep.subr.bf16.mxu0 0
    %1103 = vmatpush1.bf16.msra.mxu0 0
    %1104 = vmatprep.subr.bf16.mxu0 0
    %1105 = vmatpush1.bf16.msra.mxu0 0
    %1106 = vmatprep.subr.bf16.mxu0 0
    %1107 = vmatpush1.bf16.msra.mxu0 0
    %1108 = vmatprep.subr.bf16.mxu0 0
    %1109 = vmatpush1.bf16.msra.mxu0 0
    %1110 = vmatprep.subr.bf16.mxu0 0
    %1111 = vmatpush1.bf16.msra.mxu0 0
    %1112 = vmatprep.subr.bf16.mxu0 0
    %1113 = vmatpush1.bf16.msra.mxu0 0
    %1114 = vmatprep.subr.bf16.mxu0 0
    %1115 = vmatpush1.bf16.msra.mxu0 0
    %1116 = vmatprep.subr.bf16.mxu0 0
    %1117 = vmatpush1.bf16.msra.mxu0 0
    %1118 = vmatprep.mubr.bf16.mxu0 0
    %1119 = vmatmul.mubr.bf16.gmra.mrb[0].mxu0 %v332
    %v1120 = vpop.f32.mrb[0].mxu0
    %v1121 = vadd.f32 0.0, %v1120
    %v1122 = vpop.f32.mrb[0].mxu0
    %v1123 = vpop.f32.mrb[0].mxu0
    %v1124 = vadd.f32 0.0, %v1123
    %v1125 = vpop.f32.mrb[0].mxu0
    %1126 = vmatprep.mubr.bf16.mxu0 0
    %1127 = vmatmul.mubr.bf16.gmra.mrb[0].mxu0 %v335
    %v1128 = vpop.f32.mrb[0].mxu0
    %v1129 = vadd.f32 0.0, %v1128
    %v1130 = vpop.f32.mrb[0].mxu0
    %v1131 = vpop.f32.mrb[0].mxu0
    %v1132 = vadd.f32 0.0, %v1131
    %v1133 = vpop.f32.mrb[0].mxu0
    %1134 = vmatprep.mubr.bf16.mxu0 0
    %1135 = vmatmul.mubr.bf16.gmra.mrb[0].mxu0 %v338
    %v1136 = vpop.f32.mrb[0].mxu0
    %v1137 = vadd.f32 0.0, %v1136
    %v1138 = vpop.f32.mrb[0].mxu0
    %v1139 = vpop.f32.mrb[0].mxu0
    %v1140 = vadd.f32 0.0, %v1139
    %v1141 = vpop.f32.mrb[0].mxu0
    %1142 = vdwg.mxu0
    %v1147 = vunpack.c.l.b16 %v932
    %v1148 = vunpack.c.l.b16 %v933
    %v1149 = vunpack.c.l.b16 %v934
    %v1150 = vunpack.c.l.b16 %v935
    %v1151 = vpack.c.b16 %v1148, %v1147
    %v1152 = vpack.c.b16 %v1150, %v1149
    %1155 = vmatprep.subr.bf16.mxu0 0
    %1156 = vmatpush1.bf16.msra.mxu0 %v1151
    %1157 = vmatprep.subr.bf16.mxu0 0
    %1158 = vmatpush1.bf16.msra.mxu0 %v1152
    %1159 = vmatprep.subr.bf16.mxu0 0
    %1160 = vmatpush1.bf16.msra.mxu0 0
    %1161 = vmatprep.subr.bf16.mxu0 0
    %1162 = vmatpush1.bf16.msra.mxu0 0
    %1163 = vmatprep.subr.bf16.mxu0 0
    %1164 = vmatpush1.bf16.msra.mxu0 0
    %1165 = vmatprep.subr.bf16.mxu0 0
    %1166 = vmatpush1.bf16.msra.mxu0 0
    %1167 = vmatprep.subr.bf16.mxu0 0
    %1168 = vmatpush1.bf16.msra.mxu0 0
    %1169 = vmatprep.subr.bf16.mxu0 0
    %1170 = vmatpush1.bf16.msra.mxu0 0
    %1171 = vmatprep.subr.bf16.mxu0 0
    %1172 = vmatpush1.bf16.msra.mxu0 0
    %1173 = vmatprep.subr.bf16.mxu0 0
    %1174 = vmatpush1.bf16.msra.mxu0 0
    %1175 = vmatprep.subr.bf16.mxu0 0
    %1176 = vmatpush1.bf16.msra.mxu0 0
    %1177 = vmatprep.subr.bf16.mxu0 0
    %1178 = vmatpush1.bf16.msra.mxu0 0
    %1179 = vmatprep.subr.bf16.mxu0 0
    %1180 = vmatpush1.bf16.msra.mxu0 0
    %1181 = vmatprep.subr.bf16.mxu0 0
    %1182 = vmatpush1.bf16.msra.mxu0 0
    %1183 = vmatprep.subr.bf16.mxu0 0
    %1184 = vmatpush1.bf16.msra.mxu0 0
    %1185 = vmatprep.subr.bf16.mxu0 0
    %1186 = vmatpush1.bf16.msra.mxu0 0
    %1187 = vmatprep.mubr.bf16.mxu0 0
    %1188 = vmatmul.mubr.bf16.gmra.mrb[0].mxu0 %v332
    %v1189 = vpop.f32.mrb[0].mxu0
    %v1190 = vadd.f32 0.0, %v1189
    %v1191 = vpop.f32.mrb[0].mxu0
    %v1192 = vpop.f32.mrb[0].mxu0
    %v1193 = vadd.f32 0.0, %v1192
    %v1194 = vpop.f32.mrb[0].mxu0
    %1195 = vmatprep.mubr.bf16.mxu0 0
    %1196 = vmatmul.mubr.bf16.gmra.mrb[0].mxu0 %v335
    %v1197 = vpop.f32.mrb[0].mxu0
    %v1198 = vadd.f32 0.0, %v1197
    %v1199 = vpop.f32.mrb[0].mxu0
    %v1200 = vpop.f32.mrb[0].mxu0
    %v1201 = vadd.f32 0.0, %v1200
    %v1202 = vpop.f32.mrb[0].mxu0
    %1203 = vmatprep.mubr.bf16.mxu0 0
    %1204 = vmatmul.mubr.bf16.gmra.mrb[0].mxu0 %v338
    %v1205 = vpop.f32.mrb[0].mxu0
    %v1206 = vadd.f32 0.0, %v1205
    %v1207 = vpop.f32.mrb[0].mxu0
    %v1208 = vpop.f32.mrb[0].mxu0
    %v1209 = vadd.f32 0.0, %v1208
    %v1210 = vpop.f32.mrb[0].mxu0
    %1211 = vdwg.mxu0
    %v1212 = vpack.c.bf16 %v986, %v983
    %v1213 = vpack.c.bf16 %v994, %v991
    %v1214 = vpack.c.bf16 %v1002, %v999
    %v1215 = vpack.c.bf16 %v1055, %v1052
    %v1216 = vpack.c.bf16 %v1063, %v1060
    %v1217 = vpack.c.bf16 %v1071, %v1068
    %v1218 = vpack.c.bf16 %v1124, %v1121
    %v1219 = vpack.c.bf16 %v1132, %v1129
    %v1220 = vpack.c.bf16 %v1140, %v1137
    %v1221 = vpack.c.bf16 %v1193, %v1190
    %v1222 = vpack.c.bf16 %v1201, %v1198
    %v1223 = vpack.c.bf16 %v1209, %v1206
    %vm1224 = vcmask 64512
    %v1226 = vsel %vm1224, %v604, 0
    %v1229 = vsel %vm1224, %v605, 0
    %v1232 = vsel %vm1224, %v606, 0
    %v1235 = vsel %vm1224, %v908, 0
    %v1238 = vsel %vm1224, %v909, 0
    %v1241 = vsel %vm1224, %v910, 0
    %1243 = vmatprep.subr.bf16.mxu0 0
    %1244 = vmatpush1.bf16.xpose.msra.mxu0 %v1235
    %1245 = vmatprep.subr.bf16.mxu0 0
    %1246 = vmatpush1.bf16.xpose.msra.mxu0 %v1238
    %1247 = vmatprep.subr.bf16.mxu0 0
    %1248 = vmatpush1.bf16.xpose.msra.mxu0 %v1241
    %1249 = vmatprep.subr.bf16.mxu0 0
    %1250 = vmatpush1.bf16.xpose.msra.mxu0 0
    %1251 = vmatprep.subr.bf16.mxu0 0
    %1252 = vmatpush1.bf16.xpose.msra.mxu0 0
    %1253 = vmatprep.subr.bf16.mxu0 0
    %1254 = vmatpush1.bf16.xpose.msra.mxu0 0
    %1255 = vmatprep.subr.bf16.mxu0 0
    %1256 = vmatpush1.bf16.xpose.msra.mxu0 0
    %1257 = vmatprep.subr.bf16.mxu0 0
    %1258 = vmatpush1.bf16.xpose.msra.mxu0 0
    %1259 = vmatprep.subr.bf16.mxu0 0
    %1260 = vmatpush1.bf16.xpose.msra.mxu0 0
    %1261 = vmatprep.subr.bf16.mxu0 0
    %1262 = vmatpush1.bf16.xpose.msra.mxu0 0
    %1263 = vmatprep.subr.bf16.mxu0 0
    %1264 = vmatpush1.bf16.xpose.msra.mxu0 0
    %1265 = vmatprep.subr.bf16.mxu0 0
    %1266 = vmatpush1.bf16.xpose.msra.mxu0 0
    %1267 = vmatprep.subr.bf16.mxu0 0
    %1268 = vmatpush1.bf16.xpose.msra.mxu0 0
    %1269 = vmatprep.subr.bf16.mxu0 0
    %1270 = vmatpush1.bf16.xpose.msra.mxu0 0
    %1271 = vmatprep.subr.bf16.mxu0 0
    %1272 = vmatpush1.bf16.xpose.msra.mxu0 0
    %1273 = vmatprep.subr.bf16.mxu0 0
    %1274 = vmatpush1.bf16.xpose.msra.mxu0 0
    %1275 = vmatprep.mubr.bf16.mxu0 0
    %1276 = vmatmul.mubr.bf16.gmra.mrb[0].mxu0 %v1226
    %v1277 = vpop.f32.mrb[0].mxu0
    %v1278 = vadd.f32 %v188, %v1277
    %v1279 = vpop.f32.mrb[0].mxu0
    %v1280 = vpop.f32.mrb[0].mxu0
    %v1281 = vadd.f32 %v189, %v1280
    %v1282 = vpop.f32.mrb[0].mxu0
    %1283 = vmatprep.mubr.bf16.mxu0 0
    %1284 = vmatmul.mubr.bf16.gmra.mrb[0].mxu0 %v1229
    %v1285 = vpop.f32.mrb[0].mxu0
    %v1286 = vadd.f32 %v190, %v1285
    %v1287 = vpop.f32.mrb[0].mxu0
    %v1288 = vpop.f32.mrb[0].mxu0
    %v1289 = vadd.f32 %v191, %v1288
    %v1290 = vpop.f32.mrb[0].mxu0
    %1291 = vmatprep.mubr.bf16.mxu0 0
    %1292 = vmatmul.mubr.bf16.gmra.mrb[0].mxu0 %v1232
    %v1293 = vpop.f32.mrb[0].mxu0
    %v1294 = vadd.f32 %v192, %v1293
    %v1295 = vpop.f32.mrb[0].mxu0
    %v1296 = vpop.f32.mrb[0].mxu0
    %v1297 = vadd.f32 %v193, %v1296
    %v1298 = vpop.f32.mrb[0].mxu0
    %1299 = vdwg.mxu0
    %v1301 = vsel %vm1224, %v607, 0
    %v1304 = vsel %vm1224, %v608, 0
    %v1307 = vsel %vm1224, %v609, 0
    %v1310 = vsel %vm1224, %v911, 0
    %v1313 = vsel %vm1224, %v912, 0
    %v1316 = vsel %vm1224, %v913, 0
    %1318 = vmatprep.subr.bf16.mxu0 0
    %1319 = vmatpush1.bf16.xpose.msra.mxu0 %v1310
    %1320 = vmatprep.subr.bf16.mxu0 0
    %1321 = vmatpush1.bf16.xpose.msra.mxu0 %v1313
    %1322 = vmatprep.subr.bf16.mxu0 0
    %1323 = vmatpush1.bf16.xpose.msra.mxu0 %v1316
    %1324 = vmatprep.subr.bf16.mxu0 0
    %1325 = vmatpush1.bf16.xpose.msra.mxu0 0
    %1326 = vmatprep.subr.bf16.mxu0 0
    %1327 = vmatpush1.bf16.xpose.msra.mxu0 0
    %1328 = vmatprep.subr.bf16.mxu0 0
    %1329 = vmatpush1.bf16.xpose.msra.mxu0 0
    %1330 = vmatprep.subr.bf16.mxu0 0
    %1331 = vmatpush1.bf16.xpose.msra.mxu0 0
    %1332 = vmatprep.subr.bf16.mxu0 0
    %1333 = vmatpush1.bf16.xpose.msra.mxu0 0
    %1334 = vmatprep.subr.bf16.mxu0 0
    %1335 = vmatpush1.bf16.xpose.msra.mxu0 0
    %1336 = vmatprep.subr.bf16.mxu0 0
    %1337 = vmatpush1.bf16.xpose.msra.mxu0 0
    %1338 = vmatprep.subr.bf16.mxu0 0
    %1339 = vmatpush1.bf16.xpose.msra.mxu0 0
    %1340 = vmatprep.subr.bf16.mxu0 0
    %1341 = vmatpush1.bf16.xpose.msra.mxu0 0
    %1342 = vmatprep.subr.bf16.mxu0 0
    %1343 = vmatpush1.bf16.xpose.msra.mxu0 0
    %1344 = vmatprep.subr.bf16.mxu0 0
    %1345 = vmatpush1.bf16.xpose.msra.mxu0 0
    %1346 = vmatprep.subr.bf16.mxu0 0
    %1347 = vmatpush1.bf16.xpose.msra.mxu0 0
    %1348 = vmatprep.subr.bf16.mxu0 0
    %1349 = vmatpush1.bf16.xpose.msra.mxu0 0
    %1350 = vmatprep.mubr.bf16.mxu0 0
    %1351 = vmatmul.mubr.bf16.gmra.mrb[0].mxu0 %v1301
    %v1352 = vpop.f32.mrb[0].mxu0
    %v1353 = vadd.f32 %v188, %v1352
    %v1354 = vpop.f32.mrb[0].mxu0
    %v1355 = vpop.f32.mrb[0].mxu0
    %v1356 = vadd.f32 %v189, %v1355
    %v1357 = vpop.f32.mrb[0].mxu0
    %1358 = vmatprep.mubr.bf16.mxu0 0
    %1359 = vmatmul.mubr.bf16.gmra.mrb[0].mxu0 %v1304
    %v1360 = vpop.f32.mrb[0].mxu0
    %v1361 = vadd.f32 %v190, %v1360
    %v1362 = vpop.f32.mrb[0].mxu0
    %v1363 = vpop.f32.mrb[0].mxu0
    %v1364 = vadd.f32 %v191, %v1363
    %v1365 = vpop.f32.mrb[0].mxu0
    %1366 = vmatprep.mubr.bf16.mxu0 0
    %1367 = vmatmul.mubr.bf16.gmra.mrb[0].mxu0 %v1307
    %v1368 = vpop.f32.mrb[0].mxu0
    %v1369 = vadd.f32 %v192, %v1368
    %v1370 = vpop.f32.mrb[0].mxu0
    %v1371 = vpop.f32.mrb[0].mxu0
    %v1372 = vadd.f32 %v193, %v1371
    %v1373 = vpop.f32.mrb[0].mxu0
    %1374 = vdwg.mxu0
    %v1376 = vsel %vm1224, %v610, 0
    %v1379 = vsel %vm1224, %v611, 0
    %v1382 = vsel %vm1224, %v612, 0
    %v1385 = vsel %vm1224, %v914, 0
    %v1388 = vsel %vm1224, %v915, 0
    %v1391 = vsel %vm1224, %v916, 0
    %1393 = vmatprep.subr.bf16.mxu0 0
    %1394 = vmatpush1.bf16.xpose.msra.mxu0 %v1385
    %1395 = vmatprep.subr.bf16.mxu0 0
    %1396 = vmatpush1.bf16.xpose.msra.mxu0 %v1388
    %1397 = vmatprep.subr.bf16.mxu0 0
    %1398 = vmatpush1.bf16.xpose.msra.mxu0 %v1391
    %1399 = vmatprep.subr.bf16.mxu0 0
    %1400 = vmatpush1.bf16.xpose.msra.mxu0 0
    %1401 = vmatprep.subr.bf16.mxu0 0
    %1402 = vmatpush1.bf16.xpose.msra.mxu0 0
    %1403 = vmatprep.subr.bf16.mxu0 0
    %1404 = vmatpush1.bf16.xpose.msra.mxu0 0
    %1405 = vmatprep.subr.bf16.mxu0 0
    %1406 = vmatpush1.bf16.xpose.msra.mxu0 0
    %1407 = vmatprep.subr.bf16.mxu0 0
    %1408 = vmatpush1.bf16.xpose.msra.mxu0 0
    %1409 = vmatprep.subr.bf16.mxu0 0
    %1410 = vmatpush1.bf16.xpose.msra.mxu0 0
    %1411 = vmatprep.subr.bf16.mxu0 0
    %1412 = vmatpush1.bf16.xpose.msra.mxu0 0
    %1413 = vmatprep.subr.bf16.mxu0 0
    %1414 = vmatpush1.bf16.xpose.msra.mxu0 0
    %1415 = vmatprep.subr.bf16.mxu0 0
    %1416 = vmatpush1.bf16.xpose.msra.mxu0 0
    %1417 = vmatprep.subr.bf16.mxu0 0
    %1418 = vmatpush1.bf16.xpose.msra.mxu0 0
    %1419 = vmatprep.subr.bf16.mxu0 0
    %1420 = vmatpush1.bf16.xpose.msra.mxu0 0
    %1421 = vmatprep.subr.bf16.mxu0 0
    %1422 = vmatpush1.bf16.xpose.msra.mxu0 0
    %1423 = vmatprep.subr.bf16.mxu0 0
    %1424 = vmatpush1.bf16.xpose.msra.mxu0 0
    %1425 = vmatprep.mubr.bf16.mxu0 0
    %1426 = vmatmul.mubr.bf16.gmra.mrb[0].mxu0 %v1376
    %v1427 = vpop.f32.mrb[0].mxu0
    %v1428 = vadd.f32 %v188, %v1427
    %v1429 = vpop.f32.mrb[0].mxu0
    %v1430 = vpop.f32.mrb[0].mxu0
    %v1431 = vadd.f32 %v189, %v1430
    %v1432 = vpop.f32.mrb[0].mxu0
    %1433 = vmatprep.mubr.bf16.mxu0 0
    %1434 = vmatmul.mubr.bf16.gmra.mrb[0].mxu0 %v1379
    %v1435 = vpop.f32.mrb[0].mxu0
    %v1436 = vadd.f32 %v190, %v1435
    %v1437 = vpop.f32.mrb[0].mxu0
    %v1438 = vpop.f32.mrb[0].mxu0
    %v1439 = vadd.f32 %v191, %v1438
    %v1440 = vpop.f32.mrb[0].mxu0
    %1441 = vmatprep.mubr.bf16.mxu0 0
    %1442 = vmatmul.mubr.bf16.gmra.mrb[0].mxu0 %v1382
    %v1443 = vpop.f32.mrb[0].mxu0
    %v1444 = vadd.f32 %v192, %v1443
    %v1445 = vpop.f32.mrb[0].mxu0
    %v1446 = vpop.f32.mrb[0].mxu0
    %v1447 = vadd.f32 %v193, %v1446
    %v1448 = vpop.f32.mrb[0].mxu0
    %1449 = vdwg.mxu0
    %v1451 = vsel %vm1224, %v613, 0
    %v1454 = vsel %vm1224, %v614, 0
    %v1457 = vsel %vm1224, %v615, 0
    %v1460 = vsel %vm1224, %v917, 0
    %v1463 = vsel %vm1224, %v918, 0
    %v1466 = vsel %vm1224, %v919, 0
    %1468 = vmatprep.subr.bf16.mxu0 0
    %1469 = vmatpush1.bf16.xpose.msra.mxu0 %v1460
    %1470 = vmatprep.subr.bf16.mxu0 0
    %1471 = vmatpush1.bf16.xpose.msra.mxu0 %v1463
    %1472 = vmatprep.subr.bf16.mxu0 0
    %1473 = vmatpush1.bf16.xpose.msra.mxu0 %v1466
    %1474 = vmatprep.subr.bf16.mxu0 0
    %1475 = vmatpush1.bf16.xpose.msra.mxu0 0
    %1476 = vmatprep.subr.bf16.mxu0 0
    %1477 = vmatpush1.bf16.xpose.msra.mxu0 0
    %1478 = vmatprep.subr.bf16.mxu0 0
    %1479 = vmatpush1.bf16.xpose.msra.mxu0 0
    %1480 = vmatprep.subr.bf16.mxu0 0
    %1481 = vmatpush1.bf16.xpose.msra.mxu0 0
    %1482 = vmatprep.subr.bf16.mxu0 0
    %1483 = vmatpush1.bf16.xpose.msra.mxu0 0
    %1484 = vmatprep.subr.bf16.mxu0 0
    %1485 = vmatpush1.bf16.xpose.msra.mxu0 0
    %1486 = vmatprep.subr.bf16.mxu0 0
    %1487 = vmatpush1.bf16.xpose.msra.mxu0 0
    %1488 = vmatprep.subr.bf16.mxu0 0
    %1489 = vmatpush1.bf16.xpose.msra.mxu0 0
    %1490 = vmatprep.subr.bf16.mxu0 0
    %1491 = vmatpush1.bf16.xpose.msra.mxu0 0
    %1492 = vmatprep.subr.bf16.mxu0 0
    %1493 = vmatpush1.bf16.xpose.msra.mxu0 0
    %1494 = vmatprep.subr.bf16.mxu0 0
    %1495 = vmatpush1.bf16.xpose.msra.mxu0 0
    %1496 = vmatprep.subr.bf16.mxu0 0
    %1497 = vmatpush1.bf16.xpose.msra.mxu0 0
    %1498 = vmatprep.subr.bf16.mxu0 0
    %1499 = vmatpush1.bf16.xpose.msra.mxu0 0
    %1500 = vmatprep.mubr.bf16.mxu0 0
    %1501 = vmatmul.mubr.bf16.gmra.mrb[0].mxu0 %v1451
    %v1502 = vpop.f32.mrb[0].mxu0
    %v1503 = vadd.f32 %v188, %v1502
    %v1504 = vpop.f32.mrb[0].mxu0
    %v1505 = vpop.f32.mrb[0].mxu0
    %v1506 = vadd.f32 %v189, %v1505
    %v1507 = vpop.f32.mrb[0].mxu0
    %1508 = vmatprep.mubr.bf16.mxu0 0
    %1509 = vmatmul.mubr.bf16.gmra.mrb[0].mxu0 %v1454
    %v1510 = vpop.f32.mrb[0].mxu0
    %v1511 = vadd.f32 %v190, %v1510
    %v1512 = vpop.f32.mrb[0].mxu0
    %v1513 = vpop.f32.mrb[0].mxu0
    %v1514 = vadd.f32 %v191, %v1513
    %v1515 = vpop.f32.mrb[0].mxu0
    %1516 = vmatprep.mubr.bf16.mxu0 0
    %1517 = vmatmul.mubr.bf16.gmra.mrb[0].mxu0 %v1457
    %v1518 = vpop.f32.mrb[0].mxu0
    %v1519 = vadd.f32 %v192, %v1518
    %v1520 = vpop.f32.mrb[0].mxu0
    %v1521 = vpop.f32.mrb[0].mxu0
    %v1522 = vadd.f32 %v193, %v1521
    %v1523 = vpop.f32.mrb[0].mxu0
    %1524 = vdwg.mxu0
    %v1525 = vsel %vm121, %v1278, -inf
    %1526 = vmax.xlane.f32.xlu0 %v1525
    %v1527 = vpop.xlane.xlu0 %1526
    %v1528 = vsel %vm121, %v1281, -inf
    %1529 = vmax.xlane.f32.xlu0 %v1528
    %v1530 = vpop.xlane.xlu0 %1529
    %v1531 = vsel %vm121, %v1286, -inf
    %1532 = vmax.xlane.f32.xlu0 %v1531
    %v1533 = vpop.xlane.xlu0 %1532
    %v1534 = vsel %vm121, %v1289, -inf
    %1535 = vmax.xlane.f32.xlu0 %v1534
    %v1536 = vpop.xlane.xlu0 %1535
    %v1537 = vsel %vm121, %v1294, -inf
    %1538 = vmax.xlane.f32.xlu0 %v1537
    %v1539 = vpop.xlane.xlu0 %1538
    %v1540 = vsel %vm121, %v1297, -inf
    %1541 = vmax.xlane.f32.xlu0 %v1540
    %v1542 = vpop.xlane.xlu0 %1541
    %v1543 = vsel %vm121, %v1353, -inf
    %1544 = vmax.xlane.f32.xlu0 %v1543
    %v1545 = vpop.xlane.xlu0 %1544
    %v1546 = vsel %vm121, %v1356, -inf
    %1547 = vmax.xlane.f32.xlu0 %v1546
    %v1548 = vpop.xlane.xlu0 %1547
    %v1549 = vsel %vm121, %v1361, -inf
    %1550 = vmax.xlane.f32.xlu0 %v1549
    %v1551 = vpop.xlane.xlu0 %1550
    %v1552 = vsel %vm121, %v1364, -inf
    %1553 = vmax.xlane.f32.xlu0 %v1552
    %v1554 = vpop.xlane.xlu0 %1553
    %v1555 = vsel %vm121, %v1369, -inf
    %1556 = vmax.xlane.f32.xlu0 %v1555
    %v1557 = vpop.xlane.xlu0 %1556
    %v1558 = vsel %vm121, %v1372, -inf
    %1559 = vmax.xlane.f32.xlu0 %v1558
    %v1560 = vpop.xlane.xlu0 %1559
    %v1561 = vsel %vm121, %v1428, -inf
    %1562 = vmax.xlane.f32.xlu0 %v1561
    %v1563 = vpop.xlane.xlu0 %1562
    %v1564 = vsel %vm121, %v1431, -inf
    %1565 = vmax.xlane.f32.xlu0 %v1564
    %v1566 = vpop.xlane.xlu0 %1565
    %v1567 = vsel %vm121, %v1436, -inf
    %1568 = vmax.xlane.f32.xlu0 %v1567
    %v1569 = vpop.xlane.xlu0 %1568
    %v1570 = vsel %vm121, %v1439, -inf
    %1571 = vmax.xlane.f32.xlu0 %v1570
    %v1572 = vpop.xlane.xlu0 %1571
    %v1573 = vsel %vm121, %v1444, -inf
    %1574 = vmax.xlane.f32.xlu0 %v1573
    %v1575 = vpop.xlane.xlu0 %1574
    %v1576 = vsel %vm121, %v1447, -inf
    %1577 = vmax.xlane.f32.xlu0 %v1576
    %v1578 = vpop.xlane.xlu0 %1577
    %v1579 = vsel %vm121, %v1503, -inf
    %1580 = vmax.xlane.f32.xlu0 %v1579
    %v1581 = vpop.xlane.xlu0 %1580
    %v1582 = vsel %vm121, %v1506, -inf
    %1583 = vmax.xlane.f32.xlu0 %v1582
    %v1584 = vpop.xlane.xlu0 %1583
    %v1585 = vsel %vm121, %v1511, -inf
    %1586 = vmax.xlane.f32.xlu0 %v1585
    %v1587 = vpop.xlane.xlu0 %1586
    %v1588 = vsel %vm121, %v1514, -inf
    %1589 = vmax.xlane.f32.xlu0 %v1588
    %v1590 = vpop.xlane.xlu0 %1589
    %v1591 = vsel %vm121, %v1519, -inf
    %1592 = vmax.xlane.f32.xlu0 %v1591
    %v1593 = vpop.xlane.xlu0 %1592
    %v1594 = vsel %vm121, %v1522, -inf
    %1595 = vmax.xlane.f32.xlu0 %v1594
    %v1596 = vpop.xlane.xlu0 %1595
    %v1597 = vsub.f32 %v1278, %v1527
    %v1598 = vsub.f32 %v1281, %v1530
    %v1599 = vsub.f32 %v1286, %v1533
    %v1600 = vsub.f32 %v1289, %v1536
    %v1601 = vsub.f32 %v1294, %v1539
    %v1602 = vsub.f32 %v1297, %v1542
    %v1603 = vsub.f32 %v1353, %v1545
    %v1604 = vsub.f32 %v1356, %v1548
    %v1605 = vsub.f32 %v1361, %v1551
    %v1606 = vsub.f32 %v1364, %v1554
    %v1607 = vsub.f32 %v1369, %v1557
    %v1608 = vsub.f32 %v1372, %v1560
    %v1609 = vsub.f32 %v1428, %v1563
    %v1610 = vsub.f32 %v1431, %v1566
    %v1611 = vsub.f32 %v1436, %v1569
    %v1612 = vsub.f32 %v1439, %v1572
    %v1613 = vsub.f32 %v1444, %v1575
    %v1614 = vsub.f32 %v1447, %v1578
    %v1615 = vsub.f32 %v1503, %v1581
    %v1616 = vsub.f32 %v1506, %v1584
    %v1617 = vsub.f32 %v1511, %v1587
    %v1618 = vsub.f32 %v1514, %v1590
    %v1619 = vsub.f32 %v1519, %v1593
    %v1620 = vsub.f32 %v1522, %v1596
    %v1621 = vmul.f32 %v1597, 1.442695
    %v1622 = vpow.pop %v1621
    %v1623 = vmul.f32 %v1598, 1.442695
    %v1624 = vpow.pop %v1623
    %v1625 = vmul.f32 %v1599, 1.442695
    %v1626 = vpow.pop %v1625
    %v1627 = vmul.f32 %v1600, 1.442695
    %v1628 = vpow.pop %v1627
    %v1629 = vmul.f32 %v1601, 1.442695
    %v1630 = vpow.pop %v1629
    %v1631 = vmul.f32 %v1602, 1.442695
    %v1632 = vpow.pop %v1631
    %v1633 = vmul.f32 %v1603, 1.442695
    %v1634 = vpow.pop %v1633
    %v1635 = vmul.f32 %v1604, 1.442695
    %v1636 = vpow.pop %v1635
    %v1637 = vmul.f32 %v1605, 1.442695
    %v1638 = vpow.pop %v1637
    %v1639 = vmul.f32 %v1606, 1.442695
    %v1640 = vpow.pop %v1639
    %v1641 = vmul.f32 %v1607, 1.442695
    %v1642 = vpow.pop %v1641
    %v1643 = vmul.f32 %v1608, 1.442695
    %v1644 = vpow.pop %v1643
    %v1645 = vmul.f32 %v1609, 1.442695
    %v1646 = vpow.pop %v1645
    %v1647 = vmul.f32 %v1610, 1.442695
    %v1648 = vpow.pop %v1647
    %v1649 = vmul.f32 %v1611, 1.442695
    %v1650 = vpow.pop %v1649
    %v1651 = vmul.f32 %v1612, 1.442695
    %v1652 = vpow.pop %v1651
    %v1653 = vmul.f32 %v1613, 1.442695
    %v1654 = vpow.pop %v1653
    %v1655 = vmul.f32 %v1614, 1.442695
    %v1656 = vpow.pop %v1655
    %v1657 = vmul.f32 %v1615, 1.442695
    %v1658 = vpow.pop %v1657
    %v1659 = vmul.f32 %v1616, 1.442695
    %v1660 = vpow.pop %v1659
    %v1661 = vmul.f32 %v1617, 1.442695
    %v1662 = vpow.pop %v1661
    %v1663 = vmul.f32 %v1618, 1.442695
    %v1664 = vpow.pop %v1663
    %v1665 = vmul.f32 %v1619, 1.442695
    %v1666 = vpow.pop %v1665
    %v1667 = vmul.f32 %v1620, 1.442695
    %v1668 = vpow.pop %v1667
    %v1669 = vsel %vm121, %v1622, 0.0
    %1670 = vadd.xlane.f32.xlu0 %v1669
    %v1671 = vpop.xlane.xlu0 %1670
    %v1672 = vsel %vm121, %v1624, 0.0
    %1673 = vadd.xlane.f32.xlu0 %v1672
    %v1674 = vpop.xlane.xlu0 %1673
    %v1675 = vsel %vm121, %v1626, 0.0
    %1676 = vadd.xlane.f32.xlu0 %v1675
    %v1677 = vpop.xlane.xlu0 %1676
    %v1678 = vsel %vm121, %v1628, 0.0
    %1679 = vadd.xlane.f32.xlu0 %v1678
    %v1680 = vpop.xlane.xlu0 %1679
    %v1681 = vsel %vm121, %v1630, 0.0
    %1682 = vadd.xlane.f32.xlu0 %v1681
    %v1683 = vpop.xlane.xlu0 %1682
    %v1684 = vsel %vm121, %v1632, 0.0
    %1685 = vadd.xlane.f32.xlu0 %v1684
    %v1686 = vpop.xlane.xlu0 %1685
    %v1687 = vsel %vm121, %v1634, 0.0
    %1688 = vadd.xlane.f32.xlu0 %v1687
    %v1689 = vpop.xlane.xlu0 %1688
    %v1690 = vsel %vm121, %v1636, 0.0
    %1691 = vadd.xlane.f32.xlu0 %v1690
    %v1692 = vpop.xlane.xlu0 %1691
    %v1693 = vsel %vm121, %v1638, 0.0
    %1694 = vadd.xlane.f32.xlu0 %v1693
    %v1695 = vpop.xlane.xlu0 %1694
    %v1696 = vsel %vm121, %v1640, 0.0
    %1697 = vadd.xlane.f32.xlu0 %v1696
    %v1698 = vpop.xlane.xlu0 %1697
    %v1699 = vsel %vm121, %v1642, 0.0
    %1700 = vadd.xlane.f32.xlu0 %v1699
    %v1701 = vpop.xlane.xlu0 %1700
    %v1702 = vsel %vm121, %v1644, 0.0
    %1703 = vadd.xlane.f32.xlu0 %v1702
    %v1704 = vpop.xlane.xlu0 %1703
    %v1705 = vsel %vm121, %v1646, 0.0
    %1706 = vadd.xlane.f32.xlu0 %v1705
    %v1707 = vpop.xlane.xlu0 %1706
    %v1708 = vsel %vm121, %v1648, 0.0
    %1709 = vadd.xlane.f32.xlu0 %v1708
    %v1710 = vpop.xlane.xlu0 %1709
    %v1711 = vsel %vm121, %v1650, 0.0
    %1712 = vadd.xlane.f32.xlu0 %v1711
    %v1713 = vpop.xlane.xlu0 %1712
    %v1714 = vsel %vm121, %v1652, 0.0
    %1715 = vadd.xlane.f32.xlu0 %v1714
    %v1716 = vpop.xlane.xlu0 %1715
    %v1717 = vsel %vm121, %v1654, 0.0
    %1718 = vadd.xlane.f32.xlu0 %v1717
    %v1719 = vpop.xlane.xlu0 %1718
    %v1720 = vsel %vm121, %v1656, 0.0
    %1721 = vadd.xlane.f32.xlu0 %v1720
    %v1722 = vpop.xlane.xlu0 %1721
    %v1723 = vsel %vm121, %v1658, 0.0
    %1724 = vadd.xlane.f32.xlu0 %v1723
    %v1725 = vpop.xlane.xlu0 %1724
    %v1726 = vsel %vm121, %v1660, 0.0
    %1727 = vadd.xlane.f32.xlu0 %v1726
    %v1728 = vpop.xlane.xlu0 %1727
    %v1729 = vsel %vm121, %v1662, 0.0
    %1730 = vadd.xlane.f32.xlu0 %v1729
    %v1731 = vpop.xlane.xlu0 %1730
    %v1732 = vsel %vm121, %v1664, 0.0
    %1733 = vadd.xlane.f32.xlu0 %v1732
    %v1734 = vpop.xlane.xlu0 %1733
    %v1735 = vsel %vm121, %v1666, 0.0
    %1736 = vadd.xlane.f32.xlu0 %v1735
    %v1737 = vpop.xlane.xlu0 %1736
    %v1738 = vsel %vm121, %v1668, 0.0
    %1739 = vadd.xlane.f32.xlu0 %v1738
    %v1740 = vpop.xlane.xlu0 %1739
    %v1741 = vrcp.pop %v1671
    %v1742 = vmul.f32 %v1622, %v1741
    %v1743 = vrcp.pop %v1674
    %v1744 = vmul.f32 %v1624, %v1743
    %v1745 = vrcp.pop %v1677
    %v1746 = vmul.f32 %v1626, %v1745
    %v1747 = vrcp.pop %v1680
    %v1748 = vmul.f32 %v1628, %v1747
    %v1749 = vrcp.pop %v1683
    %v1750 = vmul.f32 %v1630, %v1749
    %v1751 = vrcp.pop %v1686
    %v1752 = vmul.f32 %v1632, %v1751
    %v1753 = vrcp.pop %v1689
    %v1754 = vmul.f32 %v1634, %v1753
    %v1755 = vrcp.pop %v1692
    %v1756 = vmul.f32 %v1636, %v1755
    %v1757 = vrcp.pop %v1695
    %v1758 = vmul.f32 %v1638, %v1757
    %v1759 = vrcp.pop %v1698
    %v1760 = vmul.f32 %v1640, %v1759
    %v1761 = vrcp.pop %v1701
    %v1762 = vmul.f32 %v1642, %v1761
    %v1763 = vrcp.pop %v1704
    %v1764 = vmul.f32 %v1644, %v1763
    %v1765 = vrcp.pop %v1707
    %v1766 = vmul.f32 %v1646, %v1765
    %v1767 = vrcp.pop %v1710
    %v1768 = vmul.f32 %v1648, %v1767
    %v1769 = vrcp.pop %v1713
    %v1770 = vmul.f32 %v1650, %v1769
    %v1771 = vrcp.pop %v1716
    %v1772 = vmul.f32 %v1652, %v1771
    %v1773 = vrcp.pop %v1719
    %v1774 = vmul.f32 %v1654, %v1773
    %v1775 = vrcp.pop %v1722
    %v1776 = vmul.f32 %v1656, %v1775
    %v1777 = vrcp.pop %v1725
    %v1778 = vmul.f32 %v1658, %v1777
    %v1779 = vrcp.pop %v1728
    %v1780 = vmul.f32 %v1660, %v1779
    %v1781 = vrcp.pop %v1731
    %v1782 = vmul.f32 %v1662, %v1781
    %v1783 = vrcp.pop %v1734
    %v1784 = vmul.f32 %v1664, %v1783
    %v1785 = vrcp.pop %v1737
    %v1786 = vmul.f32 %v1666, %v1785
    %v1787 = vrcp.pop %v1740
    %v1788 = vmul.f32 %v1668, %v1787
    %v1789 = vpack.c.bf16 %v1744, %v1742
    %v1790 = vpack.c.bf16 %v1748, %v1746
    %v1791 = vpack.c.bf16 %v1752, %v1750
    %v1792 = vpack.c.bf16 %v1756, %v1754
    %v1793 = vpack.c.bf16 %v1760, %v1758
    %v1794 = vpack.c.bf16 %v1764, %v1762
    %v1795 = vpack.c.bf16 %v1768, %v1766
    %v1796 = vpack.c.bf16 %v1772, %v1770
    %v1797 = vpack.c.bf16 %v1776, %v1774
    %v1798 = vpack.c.bf16 %v1780, %v1778
    %v1799 = vpack.c.bf16 %v1784, %v1782
    %v1800 = vpack.c.bf16 %v1788, %v1786
    %v1802 = vsel %vm121, %v1789, 0
    %v1805 = vsel %vm121, %v1790, 0
    %v1808 = vsel %vm121, %v1791, 0
    %1810 = vmatprep.subr.bf16.mxu0 0
    %1811 = vmatpush1.bf16.msra.mxu0 %v1212
    %1812 = vmatprep.subr.bf16.mxu0 0
    %1813 = vmatpush1.bf16.msra.mxu0 %v1213
    %1814 = vmatprep.subr.bf16.mxu0 0
    %1815 = vmatpush1.bf16.msra.mxu0 %v1214
    %1816 = vmatprep.subr.bf16.mxu0 0
    %1817 = vmatpush1.bf16.msra.mxu0 0
    %1818 = vmatprep.subr.bf16.mxu0 0
    %1819 = vmatpush1.bf16.msra.mxu0 0
    %1820 = vmatprep.subr.bf16.mxu0 0
    %1821 = vmatpush1.bf16.msra.mxu0 0
    %1822 = vmatprep.subr.bf16.mxu0 0
    %1823 = vmatpush1.bf16.msra.mxu0 0
    %1824 = vmatprep.subr.bf16.mxu0 0
    %1825 = vmatpush1.bf16.msra.mxu0 0
    %1826 = vmatprep.subr.bf16.mxu0 0
    %1827 = vmatpush1.bf16.msra.mxu0 0
    %1828 = vmatprep.subr.bf16.mxu0 0
    %1829 = vmatpush1.bf16.msra.mxu0 0
    %1830 = vmatprep.subr.bf16.mxu0 0
    %1831 = vmatpush1.bf16.msra.mxu0 0
    %1832 = vmatprep.subr.bf16.mxu0 0
    %1833 = vmatpush1.bf16.msra.mxu0 0
    %1834 = vmatprep.subr.bf16.mxu0 0
    %1835 = vmatpush1.bf16.msra.mxu0 0
    %1836 = vmatprep.subr.bf16.mxu0 0
    %1837 = vmatpush1.bf16.msra.mxu0 0
    %1838 = vmatprep.subr.bf16.mxu0 0
    %1839 = vmatpush1.bf16.msra.mxu0 0
    %1840 = vmatprep.subr.bf16.mxu0 0
    %1841 = vmatpush1.bf16.msra.mxu0 0
    %1842 = vmatprep.mubr.bf16.mxu0 0
    %1843 = vmatmul.mubr.bf16.gmra.mrb[0].mxu0 %v1802
    %v1844 = vpop.f32.mrb[0].mxu0
    %v1845 = vadd.f32 0.0, %v1844
    %v1846 = vpop.f32.mrb[0].mxu0
    %v1847 = vpop.f32.mrb[0].mxu0
    %v1848 = vadd.f32 0.0, %v1847
    %v1849 = vpop.f32.mrb[0].mxu0
    %1850 = vmatprep.mubr.bf16.mxu0 0
    %1851 = vmatmul.mubr.bf16.gmra.mrb[0].mxu0 %v1805
    %v1852 = vpop.f32.mrb[0].mxu0
    %v1853 = vadd.f32 0.0, %v1852
    %v1854 = vpop.f32.mrb[0].mxu0
    %v1855 = vpop.f32.mrb[0].mxu0
    %v1856 = vadd.f32 0.0, %v1855
    %v1857 = vpop.f32.mrb[0].mxu0
    %1858 = vmatprep.mubr.bf16.mxu0 0
    %1859 = vmatmul.mubr.bf16.gmra.mrb[0].mxu0 %v1808
    %v1860 = vpop.f32.mrb[0].mxu0
    %v1861 = vadd.f32 0.0, %v1860
    %v1862 = vpop.f32.mrb[0].mxu0
    %v1863 = vpop.f32.mrb[0].mxu0
    %v1864 = vadd.f32 0.0, %v1863
    %v1865 = vpop.f32.mrb[0].mxu0
    %1866 = vdwg.mxu0
    %v1868 = vsel %vm121, %v1792, 0
    %v1871 = vsel %vm121, %v1793, 0
    %v1874 = vsel %vm121, %v1794, 0
    %1876 = vmatprep.subr.bf16.mxu0 0
    %1877 = vmatpush1.bf16.msra.mxu0 %v1215
    %1878 = vmatprep.subr.bf16.mxu0 0
    %1879 = vmatpush1.bf16.msra.mxu0 %v1216
    %1880 = vmatprep.subr.bf16.mxu0 0
    %1881 = vmatpush1.bf16.msra.mxu0 %v1217
    %1882 = vmatprep.subr.bf16.mxu0 0
    %1883 = vmatpush1.bf16.msra.mxu0 0
    %1884 = vmatprep.subr.bf16.mxu0 0
    %1885 = vmatpush1.bf16.msra.mxu0 0
    %1886 = vmatprep.subr.bf16.mxu0 0
    %1887 = vmatpush1.bf16.msra.mxu0 0
    %1888 = vmatprep.subr.bf16.mxu0 0
    %1889 = vmatpush1.bf16.msra.mxu0 0
    %1890 = vmatprep.subr.bf16.mxu0 0
    %1891 = vmatpush1.bf16.msra.mxu0 0
    %1892 = vmatprep.subr.bf16.mxu0 0
    %1893 = vmatpush1.bf16.msra.mxu0 0
    %1894 = vmatprep.subr.bf16.mxu0 0
    %1895 = vmatpush1.bf16.msra.mxu0 0
    %1896 = vmatprep.subr.bf16.mxu0 0
    %1897 = vmatpush1.bf16.msra.mxu0 0
    %1898 = vmatprep.subr.bf16.mxu0 0
    %1899 = vmatpush1.bf16.msra.mxu0 0
    %1900 = vmatprep.subr.bf16.mxu0 0
    %1901 = vmatpush1.bf16.msra.mxu0 0
    %1902 = vmatprep.subr.bf16.mxu0 0
    %1903 = vmatpush1.bf16.msra.mxu0 0
    %1904 = vmatprep.subr.bf16.mxu0 0
    %1905 = vmatpush1.bf16.msra.mxu0 0
    %1906 = vmatprep.subr.bf16.mxu0 0
    %1907 = vmatpush1.bf16.msra.mxu0 0
    %1908 = vmatprep.mubr.bf16.mxu0 0
    %1909 = vmatmul.mubr.bf16.gmra.mrb[0].mxu0 %v1868
    %v1910 = vpop.f32.mrb[0].mxu0
    %v1911 = vadd.f32 0.0, %v1910
    %v1912 = vpop.f32.mrb[0].mxu0
    %v1913 = vpop.f32.mrb[0].mxu0
    %v1914 = vadd.f32 0.0, %v1913
    %v1915 = vpop.f32.mrb[0].mxu0
    %1916 = vmatprep.mubr.bf16.mxu0 0
    %1917 = vmatmul.mubr.bf16.gmra.mrb[0].mxu0 %v1871
    %v1918 = vpop.f32.mrb[0].mxu0
    %v1919 = vadd.f32 0.0, %v1918
    %v1920 = vpop.f32.mrb[0].mxu0
    %v1921 = vpop.f32.mrb[0].mxu0
    %v1922 = vadd.f32 0.0, %v1921
    %v1923 = vpop.f32.mrb[0].mxu0
    %1924 = vmatprep.mubr.bf16.mxu0 0
    %1925 = vmatmul.mubr.bf16.gmra.mrb[0].mxu0 %v1874
    %v1926 = vpop.f32.mrb[0].mxu0
    %v1927 = vadd.f32 0.0, %v1926
    %v1928 = vpop.f32.mrb[0].mxu0
    %v1929 = vpop.f32.mrb[0].mxu0
    %v1930 = vadd.f32 0.0, %v1929
    %v1931 = vpop.f32.mrb[0].mxu0
    %1932 = vdwg.mxu0
    %v1934 = vsel %vm121, %v1795, 0
    %v1937 = vsel %vm121, %v1796, 0
    %v1940 = vsel %vm121, %v1797, 0
    %1942 = vmatprep.subr.bf16.mxu0 0
    %1943 = vmatpush1.bf16.msra.mxu0 %v1218
    %1944 = vmatprep.subr.bf16.mxu0 0
    %1945 = vmatpush1.bf16.msra.mxu0 %v1219
    %1946 = vmatprep.subr.bf16.mxu0 0
    %1947 = vmatpush1.bf16.msra.mxu0 %v1220
    %1948 = vmatprep.subr.bf16.mxu0 0
    %1949 = vmatpush1.bf16.msra.mxu0 0
    %1950 = vmatprep.subr.bf16.mxu0 0
    %1951 = vmatpush1.bf16.msra.mxu0 0
    %1952 = vmatprep.subr.bf16.mxu0 0
    %1953 = vmatpush1.bf16.msra.mxu0 0
    %1954 = vmatprep.subr.bf16.mxu0 0
    %1955 = vmatpush1.bf16.msra.mxu0 0
    %1956 = vmatprep.subr.bf16.mxu0 0
    %1957 = vmatpush1.bf16.msra.mxu0 0
    %1958 = vmatprep.subr.bf16.mxu0 0
    %1959 = vmatpush1.bf16.msra.mxu0 0
    %1960 = vmatprep.subr.bf16.mxu0 0
    %1961 = vmatpush1.bf16.msra.mxu0 0
    %1962 = vmatprep.subr.bf16.mxu0 0
    %1963 = vmatpush1.bf16.msra.mxu0 0
    %1964 = vmatprep.subr.bf16.mxu0 0
    %1965 = vmatpush1.bf16.msra.mxu0 0
    %1966 = vmatprep.subr.bf16.mxu0 0
    %1967 = vmatpush1.bf16.msra.mxu0 0
    %1968 = vmatprep.subr.bf16.mxu0 0
    %1969 = vmatpush1.bf16.msra.mxu0 0
    %1970 = vmatprep.subr.bf16.mxu0 0
    %1971 = vmatpush1.bf16.msra.mxu0 0
    %1972 = vmatprep.subr.bf16.mxu0 0
    %1973 = vmatpush1.bf16.msra.mxu0 0
    %1974 = vmatprep.mubr.bf16.mxu0 0
    %1975 = vmatmul.mubr.bf16.gmra.mrb[0].mxu0 %v1934
    %v1976 = vpop.f32.mrb[0].mxu0
    %v1977 = vadd.f32 0.0, %v1976
    %v1978 = vpop.f32.mrb[0].mxu0
    %v1979 = vpop.f32.mrb[0].mxu0
    %v1980 = vadd.f32 0.0, %v1979
    %v1981 = vpop.f32.mrb[0].mxu0
    %1982 = vmatprep.mubr.bf16.mxu0 0
    %1983 = vmatmul.mubr.bf16.gmra.mrb[0].mxu0 %v1937
    %v1984 = vpop.f32.mrb[0].mxu0
    %v1985 = vadd.f32 0.0, %v1984
    %v1986 = vpop.f32.mrb[0].mxu0
    %v1987 = vpop.f32.mrb[0].mxu0
    %v1988 = vadd.f32 0.0, %v1987
    %v1989 = vpop.f32.mrb[0].mxu0
    %1990 = vmatprep.mubr.bf16.mxu0 0
    %1991 = vmatmul.mubr.bf16.gmra.mrb[0].mxu0 %v1940
    %v1992 = vpop.f32.mrb[0].mxu0
    %v1993 = vadd.f32 0.0, %v1992
    %v1994 = vpop.f32.mrb[0].mxu0
    %v1995 = vpop.f32.mrb[0].mxu0
    %v1996 = vadd.f32 0.0, %v1995
    %v1997 = vpop.f32.mrb[0].mxu0
    %1998 = vdwg.mxu0
    %v2000 = vsel %vm121, %v1798, 0
    %v2003 = vsel %vm121, %v1799, 0
    %v2006 = vsel %vm121, %v1800, 0
    %2008 = vmatprep.subr.bf16.mxu0 0
    %2009 = vmatpush1.bf16.msra.mxu0 %v1221
    %2010 = vmatprep.subr.bf16.mxu0 0
    %2011 = vmatpush1.bf16.msra.mxu0 %v1222
    %2012 = vmatprep.subr.bf16.mxu0 0
    %2013 = vmatpush1.bf16.msra.mxu0 %v1223
    %2014 = vmatprep.subr.bf16.mxu0 0
    %2015 = vmatpush1.bf16.msra.mxu0 0
    %2016 = vmatprep.subr.bf16.mxu0 0
    %2017 = vmatpush1.bf16.msra.mxu0 0
    %2018 = vmatprep.subr.bf16.mxu0 0
    %2019 = vmatpush1.bf16.msra.mxu0 0
    %2020 = vmatprep.subr.bf16.mxu0 0
    %2021 = vmatpush1.bf16.msra.mxu0 0
    %2022 = vmatprep.subr.bf16.mxu0 0
    %2023 = vmatpush1.bf16.msra.mxu0 0
    %2024 = vmatprep.subr.bf16.mxu0 0
    %2025 = vmatpush1.bf16.msra.mxu0 0
    %2026 = vmatprep.subr.bf16.mxu0 0
    %2027 = vmatpush1.bf16.msra.mxu0 0
    %2028 = vmatprep.subr.bf16.mxu0 0
    %2029 = vmatpush1.bf16.msra.mxu0 0
    %2030 = vmatprep.subr.bf16.mxu0 0
    %2031 = vmatpush1.bf16.msra.mxu0 0
    %2032 = vmatprep.subr.bf16.mxu0 0
    %2033 = vmatpush1.bf16.msra.mxu0 0
    %2034 = vmatprep.subr.bf16.mxu0 0
    %2035 = vmatpush1.bf16.msra.mxu0 0
    %2036 = vmatprep.subr.bf16.mxu0 0
    %2037 = vmatpush1.bf16.msra.mxu0 0
    %2038 = vmatprep.subr.bf16.mxu0 0
    %2039 = vmatpush1.bf16.msra.mxu0 0
    %2040 = vmatprep.mubr.bf16.mxu0 0
    %2041 = vmatmul.mubr.bf16.gmra.mrb[0].mxu0 %v2000
    %v2042 = vpop.f32.mrb[0].mxu0
    %v2043 = vadd.f32 0.0, %v2042
    %v2044 = vpop.f32.mrb[0].mxu0
    %v2045 = vpop.f32.mrb[0].mxu0
    %v2046 = vadd.f32 0.0, %v2045
    %v2047 = vpop.f32.mrb[0].mxu0
    %2048 = vmatprep.mubr.bf16.mxu0 0
    %2049 = vmatmul.mubr.bf16.gmra.mrb[0].mxu0 %v2003
    %v2050 = vpop.f32.mrb[0].mxu0
    %v2051 = vadd.f32 0.0, %v2050
    %v2052 = vpop.f32.mrb[0].mxu0
    %v2053 = vpop.f32.mrb[0].mxu0
    %v2054 = vadd.f32 0.0, %v2053
    %v2055 = vpop.f32.mrb[0].mxu0
    %2056 = vmatprep.mubr.bf16.mxu0 0
    %2057 = vmatmul.mubr.bf16.gmra.mrb[0].mxu0 %v2006
    %v2058 = vpop.f32.mrb[0].mxu0
    %v2059 = vadd.f32 0.0, %v2058
    %v2060 = vpop.f32.mrb[0].mxu0
    %v2061 = vpop.f32.mrb[0].mxu0
    %v2062 = vadd.f32 0.0, %v2061
    %v2063 = vpop.f32.mrb[0].mxu0
    %2064 = vdwg.mxu0
    %v2065 = vpack.c.bf16 %v1848, %v1845
    %v2066 = vpack.c.bf16 %v1856, %v1853
    %v2067 = vpack.c.bf16 %v1864, %v1861
    %v2068 = vpack.c.bf16 %v1914, %v1911
    %v2069 = vpack.c.bf16 %v1922, %v1919
    %v2070 = vpack.c.bf16 %v1930, %v1927
    %v2071 = vpack.c.bf16 %v1980, %v1977
    %v2072 = vpack.c.bf16 %v1988, %v1985
    %v2073 = vpack.c.bf16 %v1996, %v1993
    %v2074 = vpack.c.bf16 %v2046, %v2043
    %v2075 = vpack.c.bf16 %v2054, %v2051
    %v2076 = vpack.c.bf16 %v2062, %v2059
    %v2077 = vld [vmem:[%s9] sm:$0xf]
    %v2078 = vld [vmem:[%s9 + $0x4] sm:$0xf]
    %v2079 = vld [vmem:[%s9 + $0x8] sm:$0xf]
    %v2080 = vld [vmem:[%s9 + $0xc] sm:$0xf]
    %v2082 = vsel %vm1224, %v2065, 0
    %v2085 = vsel %vm1224, %v2066, 0
    %v2088 = vsel %vm1224, %v2067, 0
    %vm2090 = vcmask 1043456
    %v2092 = vsel %vm2090, %v2077, 0
    %2094 = vmatprep.subr.bf16.mxu0 0
    %2095 = vmatpush1.bf16.msra.mxu0 %v2092
    %2096 = vmatprep.subr.bf16.mxu0 0
    %2097 = vmatpush1.bf16.msra.mxu0 0
    %2098 = vmatprep.subr.bf16.mxu0 0
    %2099 = vmatpush1.bf16.msra.mxu0 0
    %2100 = vmatprep.subr.bf16.mxu0 0
    %2101 = vmatpush1.bf16.msra.mxu0 0
    %2102 = vmatprep.subr.bf16.mxu0 0
    %2103 = vmatpush1.bf16.msra.mxu0 0
    %2104 = vmatprep.subr.bf16.mxu0 0
    %2105 = vmatpush1.bf16.msra.mxu0 0
    %2106 = vmatprep.subr.bf16.mxu0 0
    %2107 = vmatpush1.bf16.msra.mxu0 0
    %2108 = vmatprep.subr.bf16.mxu0 0
    %2109 = vmatpush1.bf16.msra.mxu0 0
    %2110 = vmatprep.subr.bf16.mxu0 0
    %2111 = vmatpush1.bf16.msra.mxu0 0
    %2112 = vmatprep.subr.bf16.mxu0 0
    %2113 = vmatpush1.bf16.msra.mxu0 0
    %2114 = vmatprep.subr.bf16.mxu0 0
    %2115 = vmatpush1.bf16.msra.mxu0 0
    %2116 = vmatprep.subr.bf16.mxu0 0
    %2117 = vmatpush1.bf16.msra.mxu0 0
    %2118 = vmatprep.subr.bf16.mxu0 0
    %2119 = vmatpush1.bf16.msra.mxu0 0
    %2120 = vmatprep.subr.bf16.mxu0 0
    %2121 = vmatpush1.bf16.msra.mxu0 0
    %2122 = vmatprep.subr.bf16.mxu0 0
    %2123 = vmatpush1.bf16.msra.mxu0 0
    %2124 = vmatprep.subr.bf16.mxu0 0
    %2125 = vmatpush1.bf16.msra.mxu0 0
    %2126 = vmatprep.mubr.bf16.mxu0 0
    %2127 = vmatmul.mubr.bf16.gmra.mrb[0].mxu0 %v2082
    %v2128 = vpop.f32.mrb[0].mxu0
    %v2129 = vadd.f32 0.0, %v2128
    %v2130 = vpop.f32.mrb[0].mxu0
    %v2131 = vpop.f32.mrb[0].mxu0
    %v2132 = vadd.f32 0.0, %v2131
    %v2133 = vpop.f32.mrb[0].mxu0
    %2134 = vmatprep.mubr.bf16.mxu0 0
    %2135 = vmatmul.mubr.bf16.gmra.mrb[0].mxu0 %v2085
    %v2136 = vpop.f32.mrb[0].mxu0
    %v2137 = vadd.f32 0.0, %v2136
    %v2138 = vpop.f32.mrb[0].mxu0
    %v2139 = vpop.f32.mrb[0].mxu0
    %v2140 = vadd.f32 0.0, %v2139
    %v2141 = vpop.f32.mrb[0].mxu0
    %2142 = vmatprep.mubr.bf16.mxu0 0
    %2143 = vmatmul.mubr.bf16.gmra.mrb[0].mxu0 %v2088
    %v2144 = vpop.f32.mrb[0].mxu0
    %v2145 = vadd.f32 0.0, %v2144
    %v2146 = vpop.f32.mrb[0].mxu0
    %v2147 = vpop.f32.mrb[0].mxu0
    %v2148 = vadd.f32 0.0, %v2147
    %v2149 = vpop.f32.mrb[0].mxu0
    %2150 = vdwg.mxu0
    %v2152 = vsel %vm1224, %v2068, 0
    %v2155 = vsel %vm1224, %v2069, 0
    %v2158 = vsel %vm1224, %v2070, 0
    %v2161 = vsel %vm2090, %v2078, 0
    %2163 = vmatprep.subr.bf16.mxu0 0
    %2164 = vmatpush1.bf16.msra.mxu0 %v2161
    %2165 = vmatprep.subr.bf16.mxu0 0
    %2166 = vmatpush1.bf16.msra.mxu0 0
    %2167 = vmatprep.subr.bf16.mxu0 0
    %2168 = vmatpush1.bf16.msra.mxu0 0
    %2169 = vmatprep.subr.bf16.mxu0 0
    %2170 = vmatpush1.bf16.msra.mxu0 0
    %2171 = vmatprep.subr.bf16.mxu0 0
    %2172 = vmatpush1.bf16.msra.mxu0 0
    %2173 = vmatprep.subr.bf16.mxu0 0
    %2174 = vmatpush1.bf16.msra.mxu0 0
    %2175 = vmatprep.subr.bf16.mxu0 0
    %2176 = vmatpush1.bf16.msra.mxu0 0
    %2177 = vmatprep.subr.bf16.mxu0 0
    %2178 = vmatpush1.bf16.msra.mxu0 0
    %2179 = vmatprep.subr.bf16.mxu0 0
    %2180 = vmatpush1.bf16.msra.mxu0 0
    %2181 = vmatprep.subr.bf16.mxu0 0
    %2182 = vmatpush1.bf16.msra.mxu0 0
    %2183 = vmatprep.subr.bf16.mxu0 0
    %2184 = vmatpush1.bf16.msra.mxu0 0
    %2185 = vmatprep.subr.bf16.mxu0 0
    %2186 = vmatpush1.bf16.msra.mxu0 0
    %2187 = vmatprep.subr.bf16.mxu0 0
    %2188 = vmatpush1.bf16.msra.mxu0 0
    %2189 = vmatprep.subr.bf16.mxu0 0
    %2190 = vmatpush1.bf16.msra.mxu0 0
    %2191 = vmatprep.subr.bf16.mxu0 0
    %2192 = vmatpush1.bf16.msra.mxu0 0
    %2193 = vmatprep.subr.bf16.mxu0 0
    %2194 = vmatpush1.bf16.msra.mxu0 0
    %2195 = vmatprep.mubr.bf16.mxu0 0
    %2196 = vmatmul.mubr.bf16.gmra.mrb[0].mxu0 %v2152
    %v2197 = vpop.f32.mrb[0].mxu0
    %v2198 = vadd.f32 0.0, %v2197
    %v2199 = vpop.f32.mrb[0].mxu0
    %v2200 = vpop.f32.mrb[0].mxu0
    %v2201 = vadd.f32 0.0, %v2200
    %v2202 = vpop.f32.mrb[0].mxu0
    %2203 = vmatprep.mubr.bf16.mxu0 0
    %2204 = vmatmul.mubr.bf16.gmra.mrb[0].mxu0 %v2155
    %v2205 = vpop.f32.mrb[0].mxu0
    %v2206 = vadd.f32 0.0, %v2205
    %v2207 = vpop.f32.mrb[0].mxu0
    %v2208 = vpop.f32.mrb[0].mxu0
    %v2209 = vadd.f32 0.0, %v2208
    %v2210 = vpop.f32.mrb[0].mxu0
    %2211 = vmatprep.mubr.bf16.mxu0 0
    %2212 = vmatmul.mubr.bf16.gmra.mrb[0].mxu0 %v2158
    %v2213 = vpop.f32.mrb[0].mxu0
    %v2214 = vadd.f32 0.0, %v2213
    %v2215 = vpop.f32.mrb[0].mxu0
    %v2216 = vpop.f32.mrb[0].mxu0
    %v2217 = vadd.f32 0.0, %v2216
    %v2218 = vpop.f32.mrb[0].mxu0
    %2219 = vdwg.mxu0
    %v2221 = vsel %vm1224, %v2071, 0
    %v2224 = vsel %vm1224, %v2072, 0
    %v2227 = vsel %vm1224, %v2073, 0
    %v2230 = vsel %vm2090, %v2079, 0
    %2232 = vmatprep.subr.bf16.mxu0 0
    %2233 = vmatpush1.bf16.msra.mxu0 %v2230
    %2234 = vmatprep.subr.bf16.mxu0 0
    %2235 = vmatpush1.bf16.msra.mxu0 0
    %2236 = vmatprep.subr.bf16.mxu0 0
    %2237 = vmatpush1.bf16.msra.mxu0 0
    %2238 = vmatprep.subr.bf16.mxu0 0
    %2239 = vmatpush1.bf16.msra.mxu0 0
    %2240 = vmatprep.subr.bf16.mxu0 0
    %2241 = vmatpush1.bf16.msra.mxu0 0
    %2242 = vmatprep.subr.bf16.mxu0 0
    %2243 = vmatpush1.bf16.msra.mxu0 0
    %2244 = vmatprep.subr.bf16.mxu0 0
    %2245 = vmatpush1.bf16.msra.mxu0 0
    %2246 = vmatprep.subr.bf16.mxu0 0
    %2247 = vmatpush1.bf16.msra.mxu0 0
    %2248 = vmatprep.subr.bf16.mxu0 0
    %2249 = vmatpush1.bf16.msra.mxu0 0
    %2250 = vmatprep.subr.bf16.mxu0 0
    %2251 = vmatpush1.bf16.msra.mxu0 0
    %2252 = vmatprep.subr.bf16.mxu0 0
    %2253 = vmatpush1.bf16.msra.mxu0 0
    %2254 = vmatprep.subr.bf16.mxu0 0
    %2255 = vmatpush1.bf16.msra.mxu0 0
    %2256 = vmatprep.subr.bf16.mxu0 0
    %2257 = vmatpush1.bf16.msra.mxu0 0
    %2258 = vmatprep.subr.bf16.mxu0 0
    %2259 = vmatpush1.bf16.msra.mxu0 0
    %2260 = vmatprep.subr.bf16.mxu0 0
    %2261 = vmatpush1.bf16.msra.mxu0 0
    %2262 = vmatprep.subr.bf16.mxu0 0
    %2263 = vmatpush1.bf16.msra.mxu0 0
    %2264 = vmatprep.mubr.bf16.mxu0 0
    %2265 = vmatmul.mubr.bf16.gmra.mrb[0].mxu0 %v2221
    %v2266 = vpop.f32.mrb[0].mxu0
    %v2267 = vadd.f32 0.0, %v2266
    %v2268 = vpop.f32.mrb[0].mxu0
    %v2269 = vpop.f32.mrb[0].mxu0
    %v2270 = vadd.f32 0.0, %v2269
    %v2271 = vpop.f32.mrb[0].mxu0
    %2272 = vmatprep.mubr.bf16.mxu0 0
    %2273 = vmatmul.mubr.bf16.gmra.mrb[0].mxu0 %v2224
    %v2274 = vpop.f32.mrb[0].mxu0
    %v2275 = vadd.f32 0.0, %v2274
    %v2276 = vpop.f32.mrb[0].mxu0
    %v2277 = vpop.f32.mrb[0].mxu0
    %v2278 = vadd.f32 0.0, %v2277
    %v2279 = vpop.f32.mrb[0].mxu0
    %2280 = vmatprep.mubr.bf16.mxu0 0
    %2281 = vmatmul.mubr.bf16.gmra.mrb[0].mxu0 %v2227
    %v2282 = vpop.f32.mrb[0].mxu0
    %v2283 = vadd.f32 0.0, %v2282
    %v2284 = vpop.f32.mrb[0].mxu0
    %v2285 = vpop.f32.mrb[0].mxu0
    %v2286 = vadd.f32 0.0, %v2285
    %v2287 = vpop.f32.mrb[0].mxu0
    %2288 = vdwg.mxu0
    %v2290 = vsel %vm1224, %v2074, 0
    %v2293 = vsel %vm1224, %v2075, 0
    %v2296 = vsel %vm1224, %v2076, 0
    %v2299 = vsel %vm2090, %v2080, 0
    %2301 = vmatprep.subr.bf16.mxu0 0
    %2302 = vmatpush1.bf16.msra.mxu0 %v2299
    %2303 = vmatprep.subr.bf16.mxu0 0
    %2304 = vmatpush1.bf16.msra.mxu0 0
    %2305 = vmatprep.subr.bf16.mxu0 0
    %2306 = vmatpush1.bf16.msra.mxu0 0
    %2307 = vmatprep.subr.bf16.mxu0 0
    %2308 = vmatpush1.bf16.msra.mxu0 0
    %2309 = vmatprep.subr.bf16.mxu0 0
    %2310 = vmatpush1.bf16.msra.mxu0 0
    %2311 = vmatprep.subr.bf16.mxu0 0
    %2312 = vmatpush1.bf16.msra.mxu0 0
    %2313 = vmatprep.subr.bf16.mxu0 0
    %2314 = vmatpush1.bf16.msra.mxu0 0
    %2315 = vmatprep.subr.bf16.mxu0 0
    %2316 = vmatpush1.bf16.msra.mxu0 0
    %2317 = vmatprep.subr.bf16.mxu0 0
    %2318 = vmatpush1.bf16.msra.mxu0 0
    %2319 = vmatprep.subr.bf16.mxu0 0
    %2320 = vmatpush1.bf16.msra.mxu0 0
    %2321 = vmatprep.subr.bf16.mxu0 0
    %2322 = vmatpush1.bf16.msra.mxu0 0
    %2323 = vmatprep.subr.bf16.mxu0 0
    %2324 = vmatpush1.bf16.msra.mxu0 0
    %2325 = vmatprep.subr.bf16.mxu0 0
    %2326 = vmatpush1.bf16.msra.mxu0 0
    %2327 = vmatprep.subr.bf16.mxu0 0
    %2328 = vmatpush1.bf16.msra.mxu0 0
    %2329 = vmatprep.subr.bf16.mxu0 0
    %2330 = vmatpush1.bf16.msra.mxu0 0
    %2331 = vmatprep.subr.bf16.mxu0 0
    %2332 = vmatpush1.bf16.msra.mxu0 0
    %2333 = vmatprep.mubr.bf16.mxu0 0
    %2334 = vmatmul.mubr.bf16.gmra.mrb[0].mxu0 %v2290
    %v2335 = vpop.f32.mrb[0].mxu0
    %v2336 = vadd.f32 0.0, %v2335
    %v2337 = vpop.f32.mrb[0].mxu0
    %v2338 = vpop.f32.mrb[0].mxu0
    %v2339 = vadd.f32 0.0, %v2338
    %v2340 = vpop.f32.mrb[0].mxu0
    %2341 = vmatprep.mubr.bf16.mxu0 0
    %2342 = vmatmul.mubr.bf16.gmra.mrb[0].mxu0 %v2293
    %v2343 = vpop.f32.mrb[0].mxu0
    %v2344 = vadd.f32 0.0, %v2343
    %v2345 = vpop.f32.mrb[0].mxu0
    %v2346 = vpop.f32.mrb[0].mxu0
    %v2347 = vadd.f32 0.0, %v2346
    %v2348 = vpop.f32.mrb[0].mxu0
    %2349 = vmatprep.mubr.bf16.mxu0 0
    %2350 = vmatmul.mubr.bf16.gmra.mrb[0].mxu0 %v2296
    %v2351 = vpop.f32.mrb[0].mxu0
    %v2352 = vadd.f32 0.0, %v2351
    %v2353 = vpop.f32.mrb[0].mxu0
    %v2354 = vpop.f32.mrb[0].mxu0
    %v2355 = vadd.f32 0.0, %v2354
    %v2356 = vpop.f32.mrb[0].mxu0
    %2357 = vdwg.mxu0
    %v2358 = vsel %vm196, %v2129, 0.0
    %v2359 = vsel %vm196, %v2198, 0.0
    %v2360 = vadd.f32 %v2358, %v2359
    %v2361 = vsel %vm196, %v2267, 0.0
    %v2362 = vadd.f32 %v2360, %v2361
    %v2363 = vsel %vm196, %v2336, 0.0
    %v2364 = vadd.f32 %v2362, %v2363
    %v2365 = vsel %vm196, %v2132, 0.0
    %v2366 = vsel %vm196, %v2201, 0.0
    %v2367 = vadd.f32 %v2365, %v2366
    %v2368 = vsel %vm196, %v2270, 0.0
    %v2369 = vadd.f32 %v2367, %v2368
    %v2370 = vsel %vm196, %v2339, 0.0
    %v2371 = vadd.f32 %v2369, %v2370
    %v2372 = vsel %vm196, %v2137, 0.0
    %v2373 = vsel %vm196, %v2206, 0.0
    %v2374 = vadd.f32 %v2372, %v2373
    %v2375 = vsel %vm196, %v2275, 0.0
    %v2376 = vadd.f32 %v2374, %v2375
    %v2377 = vsel %vm196, %v2344, 0.0
    %v2378 = vadd.f32 %v2376, %v2377
    %v2379 = vsel %vm196, %v2140, 0.0
    %v2380 = vsel %vm196, %v2209, 0.0
    %v2381 = vadd.f32 %v2379, %v2380
    %v2382 = vsel %vm196, %v2278, 0.0
    %v2383 = vadd.f32 %v2381, %v2382
    %v2384 = vsel %vm196, %v2347, 0.0
    %v2385 = vadd.f32 %v2383, %v2384
    %v2386 = vsel %vm196, %v2145, 0.0
    %v2387 = vsel %vm196, %v2214, 0.0
    %v2388 = vadd.f32 %v2386, %v2387
    %v2389 = vsel %vm196, %v2283, 0.0
    %v2390 = vadd.f32 %v2388, %v2389
    %v2391 = vsel %vm196, %v2352, 0.0
    %v2392 = vadd.f32 %v2390, %v2391
    %v2393 = vsel %vm196, %v2148, 0.0
    %v2394 = vsel %vm196, %v2217, 0.0
    %v2395 = vadd.f32 %v2393, %v2394
    %v2396 = vsel %vm196, %v2286, 0.0
    %v2397 = vadd.f32 %v2395, %v2396
    %v2398 = vsel %vm196, %v2355, 0.0
    %v2399 = vadd.f32 %v2397, %v2398
    %v2400 = vadd.f32 %v166, %v2364
    %v2401 = vadd.f32 %v169, %v2371
    %v2402 = vadd.f32 %v174, %v2378
    %v2403 = vadd.f32 %v177, %v2385
    %v2404 = vadd.f32 %v182, %v2392
    %v2405 = vadd.f32 %v185, %v2399
    %v2406 = vld [vmem:[%s10] sm:$0x1]
    %v2408 = vlaneseq
    %v2409 = vshrl.u32 %v2408, 7
    %v2410 = vsub.s32 0, %v2409
    %v2411 = vrot.slane %v2406, %v2410
    %v2413 = vadd.f32 %v2400, %v2411
    %v2414 = vadd.f32 %v2401, %v2411
    %v2415 = vadd.f32 %v2402, %v2411
    %v2416 = vadd.f32 %v2403, %v2411
    %v2417 = vadd.f32 %v2404, %v2411
    %v2418 = vadd.f32 %v2405, %v2411
    %v2419 = vld [vmem:[%s11] sm:$0x1]
    %v2420 = vld [vmem:[%s12] sm:$0x1]
    %v2421 = vsel %vm196, %v2413, 0.0
    %2422 = vadd.xlane.f32.xlu0 %v2421
    %v2423 = vpop.xlane.xlu0 %2422
    %v2424 = vsel %vm196, %v2414, 0.0
    %2425 = vadd.xlane.f32.xlu0 %v2424
    %v2426 = vpop.xlane.xlu0 %2425
    %v2427 = vsel %vm196, %v2415, 0.0
    %2428 = vadd.xlane.f32.xlu0 %v2427
    %v2429 = vpop.xlane.xlu0 %2428
    %v2430 = vsel %vm196, %v2416, 0.0
    %2431 = vadd.xlane.f32.xlu0 %v2430
    %v2432 = vpop.xlane.xlu0 %2431
    %v2433 = vsel %vm196, %v2417, 0.0
    %2434 = vadd.xlane.f32.xlu0 %v2433
    %v2435 = vpop.xlane.xlu0 %2434
    %v2436 = vsel %vm196, %v2418, 0.0
    %2437 = vadd.xlane.f32.xlu0 %v2436
    %v2438 = vpop.xlane.xlu0 %2437
    %v2439 = vmul.f32 %v2423, %v215
    %v2440 = vmul.f32 %v2426, %v215
    %v2441 = vmul.f32 %v2429, %v215
    %v2442 = vmul.f32 %v2432, %v215
    %v2443 = vmul.f32 %v2435, %v215
    %v2444 = vmul.f32 %v2438, %v215
    %v2445 = vsub.f32 %v2413, %v2439
    %v2446 = vsub.f32 %v2414, %v2440
    %v2447 = vsub.f32 %v2415, %v2441
    %v2448 = vsub.f32 %v2416, %v2442
    %v2449 = vsub.f32 %v2417, %v2443
    %v2450 = vsub.f32 %v2418, %v2444
    %v2451 = vmul.f32 %v2445, %v2445
    %v2452 = vmul.f32 %v2446, %v2446
    %v2453 = vmul.f32 %v2447, %v2447
    %v2454 = vmul.f32 %v2448, %v2448
    %v2455 = vmul.f32 %v2449, %v2449
    %v2456 = vmul.f32 %v2450, %v2450
    %v2457 = vsel %vm196, %v2451, 0.0
    %2458 = vadd.xlane.f32.xlu0 %v2457
    %v2459 = vpop.xlane.xlu0 %2458
    %v2460 = vsel %vm196, %v2452, 0.0
    %2461 = vadd.xlane.f32.xlu0 %v2460
    %v2462 = vpop.xlane.xlu0 %2461
    %v2463 = vsel %vm196, %v2453, 0.0
    %2464 = vadd.xlane.f32.xlu0 %v2463
    %v2465 = vpop.xlane.xlu0 %2464
    %v2466 = vsel %vm196, %v2454, 0.0
    %2467 = vadd.xlane.f32.xlu0 %v2466
    %v2468 = vpop.xlane.xlu0 %2467
    %v2469 = vsel %vm196, %v2455, 0.0
    %2470 = vadd.xlane.f32.xlu0 %v2469
    %v2471 = vpop.xlane.xlu0 %2470
    %v2472 = vsel %vm196, %v2456, 0.0
    %2473 = vadd.xlane.f32.xlu0 %v2472
    %v2474 = vpop.xlane.xlu0 %2473
    %v2475 = vmul.f32 %v2459, %v215
    %v2476 = vmul.f32 %v2462, %v215
    %v2477 = vmul.f32 %v2465, %v215
    %v2478 = vmul.f32 %v2468, %v215
    %v2479 = vmul.f32 %v2471, %v215
    %v2480 = vmul.f32 %v2474, %v215
    %v2481 = vadd.f32 %v2475, 1e-05
    %v2482 = vadd.f32 %v2476, 1e-05
    %v2483 = vadd.f32 %v2477, 1e-05
    %v2484 = vadd.f32 %v2478, 1e-05
    %v2485 = vadd.f32 %v2479, 1e-05
    %v2486 = vadd.f32 %v2480, 1e-05
    %v2487 = vrsqrt.pop %v2481
    %v2488 = vrsqrt.pop %v2482
    %v2489 = vrsqrt.pop %v2483
    %v2490 = vrsqrt.pop %v2484
    %v2491 = vrsqrt.pop %v2485
    %v2492 = vrsqrt.pop %v2486
    %v2493 = vmul.f32 %v2445, %v2487
    %v2494 = vmul.f32 %v2446, %v2488
    %v2495 = vmul.f32 %v2447, %v2489
    %v2496 = vmul.f32 %v2448, %v2490
    %v2497 = vmul.f32 %v2449, %v2491
    %v2498 = vmul.f32 %v2450, %v2492
    %v2500 = vlaneseq
    %v2501 = vshrl.u32 %v2500, 7
    %v2502 = vsub.s32 0, %v2501
    %v2503 = vrot.slane %v2419, %v2502
    %v2505 = vmul.f32 %v2493, %v2503
    %v2506 = vmul.f32 %v2494, %v2503
    %v2507 = vmul.f32 %v2495, %v2503
    %v2508 = vmul.f32 %v2496, %v2503
    %v2509 = vmul.f32 %v2497, %v2503
    %v2510 = vmul.f32 %v2498, %v2503
    %v2512 = vlaneseq
    %v2513 = vshrl.u32 %v2512, 7
    %v2514 = vsub.s32 0, %v2513
    %v2515 = vrot.slane %v2420, %v2514
    %v2517 = vadd.f32 %v2505, %v2515
    %v2518 = vadd.f32 %v2506, %v2515
    %v2519 = vadd.f32 %v2507, %v2515
    %v2520 = vadd.f32 %v2508, %v2515
    %v2521 = vadd.f32 %v2509, %v2515
    %v2522 = vadd.f32 %v2510, %v2515
    %v2523 = vpack.c.bf16 %v2518, %v2517
    %v2524 = vpack.c.bf16 %v2520, %v2519
    %v2525 = vpack.c.bf16 %v2522, %v2521
    %v2526 = vld [vmem:[%s13] sm:$0xf]
    %v2527 = vld [vmem:[%s13 + $0x4] sm:$0xf]
    %v2528 = vld [vmem:[%s13 + $0x8] sm:$0xf]
    %v2529 = vld [vmem:[%s13 + $0xc] sm:$0xf]
    %v2530 = vld [vmem:[%s14] sm:$0x1]
    %v2532 = vlaneseq
    %v2533 = vshrl.u32 %v2532, 7
    %v2534 = vsub.s32 0, %v2533
    %v2535 = vrot.slane %v2530, %v2534
    %v2541 = vunpack.c.l.b16 %v2526
    %v2542 = vunpack.c.l.b16 %v2527
    %v2543 = vunpack.c.l.b16 %v2528
    %v2544 = vunpack.c.l.b16 %v2529
    %v2545 = vpack.c.b16 %v2542, %v2541
    %v2546 = vpack.c.b16 %v2544, %v2543
    %v2550 = vsel %vm196, %v2523, 0
    %v2553 = vsel %vm196, %v2524, 0
    %v2556 = vsel %vm196, %v2525, 0
    %2558 = vmatprep.subr.bf16.mxu0 0
    %2559 = vmatpush1.bf16.msra.mxu0 %v2545
    %2560 = vmatprep.subr.bf16.mxu0 0
    %2561 = vmatpush1.bf16.msra.mxu0 %v2546
    %2562 = vmatprep.subr.bf16.mxu0 0
    %2563 = vmatpush1.bf16.msra.mxu0 0
    %2564 = vmatprep.subr.bf16.mxu0 0
    %2565 = vmatpush1.bf16.msra.mxu0 0
    %2566 = vmatprep.subr.bf16.mxu0 0
    %2567 = vmatpush1.bf16.msra.mxu0 0
    %2568 = vmatprep.subr.bf16.mxu0 0
    %2569 = vmatpush1.bf16.msra.mxu0 0
    %2570 = vmatprep.subr.bf16.mxu0 0
    %2571 = vmatpush1.bf16.msra.mxu0 0
    %2572 = vmatprep.subr.bf16.mxu0 0
    %2573 = vmatpush1.bf16.msra.mxu0 0
    %2574 = vmatprep.subr.bf16.mxu0 0
    %2575 = vmatpush1.bf16.msra.mxu0 0
    %2576 = vmatprep.subr.bf16.mxu0 0
    %2577 = vmatpush1.bf16.msra.mxu0 0
    %2578 = vmatprep.subr.bf16.mxu0 0
    %2579 = vmatpush1.bf16.msra.mxu0 0
    %2580 = vmatprep.subr.bf16.mxu0 0
    %2581 = vmatpush1.bf16.msra.mxu0 0
    %2582 = vmatprep.subr.bf16.mxu0 0
    %2583 = vmatpush1.bf16.msra.mxu0 0
    %2584 = vmatprep.subr.bf16.mxu0 0
    %2585 = vmatpush1.bf16.msra.mxu0 0
    %2586 = vmatprep.subr.bf16.mxu0 0
    %2587 = vmatpush1.bf16.msra.mxu0 0
    %2588 = vmatprep.subr.bf16.mxu0 0
    %2589 = vmatpush1.bf16.msra.mxu0 0
    %2590 = vmatprep.mubr.bf16.mxu0 0
    %2591 = vmatmul.mubr.bf16.gmra.mrb[0].mxu0 %v2550
    %v2592 = vpop.f32.mrb[0].mxu0
    %v2593 = vadd.f32 %v2535, %v2592
    %v2594 = vpop.f32.mrb[0].mxu0
    %v2595 = vpop.f32.mrb[0].mxu0
    %v2596 = vadd.f32 %v2535, %v2595
    %v2597 = vpop.f32.mrb[0].mxu0
    %2598 = vmatprep.mubr.bf16.mxu0 0
    %2599 = vmatmul.mubr.bf16.gmra.mrb[0].mxu0 %v2553
    %v2600 = vpop.f32.mrb[0].mxu0
    %v2601 = vadd.f32 %v2535, %v2600
    %v2602 = vpop.f32.mrb[0].mxu0
    %v2603 = vpop.f32.mrb[0].mxu0
    %v2604 = vadd.f32 %v2535, %v2603
    %v2605 = vpop.f32.mrb[0].mxu0
    %2606 = vmatprep.mubr.bf16.mxu0 0
    %2607 = vmatmul.mubr.bf16.gmra.mrb[0].mxu0 %v2556
    %v2608 = vpop.f32.mrb[0].mxu0
    %v2609 = vadd.f32 %v2535, %v2608
    %v2610 = vpop.f32.mrb[0].mxu0
    %v2611 = vpop.f32.mrb[0].mxu0
    %v2612 = vadd.f32 %v2535, %v2611
    %v2613 = vpop.f32.mrb[0].mxu0
    %2614 = vdwg.mxu0
    %v2615 = vmul.f32 %v2593, 0.5
    %v2616 = vmul.f32 %v2596, 0.5
    %v2617 = vmul.f32 %v2601, 0.5
    %v2618 = vmul.f32 %v2604, 0.5
    %v2619 = vmul.f32 %v2609, 0.5
    %v2620 = vmul.f32 %v2612, 0.5
    %v2621 = vmul.f32 %v2593, 0.70710677
    %v2622 = vmul.f32 %v2596, 0.70710677
    %v2623 = vmul.f32 %v2601, 0.70710677
    %v2624 = vmul.f32 %v2604, 0.70710677
    %v2625 = vmul.f32 %v2609, 0.70710677
    %v2626 = vmul.f32 %v2612, 0.70710677
    %v2627 = verf.f32.pop %v2621
    %v2628 = verf.f32.pop %v2622
    %v2629 = verf.f32.pop %v2623
    %v2630 = verf.f32.pop %v2624
    %v2631 = verf.f32.pop %v2625
    %v2632 = verf.f32.pop %v2626
    %v2633 = vadd.f32 %v2627, 1.0
    %v2634 = vadd.f32 %v2628, 1.0
    %v2635 = vadd.f32 %v2629, 1.0
    %v2636 = vadd.f32 %v2630, 1.0
    %v2637 = vadd.f32 %v2631, 1.0
    %v2638 = vadd.f32 %v2632, 1.0
    %v2639 = vmul.f32 %v2615, %v2633
    %v2640 = vmul.f32 %v2616, %v2634
    %v2641 = vmul.f32 %v2617, %v2635
    %v2642 = vmul.f32 %v2618, %v2636
    %v2643 = vmul.f32 %v2619, %v2637
    %v2644 = vmul.f32 %v2620, %v2638
    %v2645 = vpack.c.bf16 %v2640, %v2639
    %v2646 = vpack.c.bf16 %v2642, %v2641
    %v2647 = vpack.c.bf16 %v2644, %v2643
    %v2648 = vld [vmem:[%s15] sm:$0xf]
    %v2649 = vld [vmem:[%s15 + $0x4] sm:$0xf]
    %v2650 = vld [vmem:[%s15 + $0x8] sm:$0xf]
    %v2651 = vld [vmem:[%s15 + $0xc] sm:$0xf]
    %v2652 = vld [vmem:[%s15 + $0x10] sm:$0xf]
    %v2653 = vld [vmem:[%s15 + $0x14] sm:$0xf]
    %v2654 = vld [vmem:[%s15 + $0x18] sm:$0xf]
    %v2655 = vld [vmem:[%s15 + $0x1c] sm:$0xf]
    %v2656 = vld [vmem:[%s15 + $0x20] sm:$0xf]
    %v2657 = vld [vmem:[%s15 + $0x24] sm:$0xf]
    %v2658 = vld [vmem:[%s15 + $0x28] sm:$0xf]
    %v2659 = vld [vmem:[%s15 + $0x2c] sm:$0xf]
    %v2660 = vld [vmem:[%s15 + $0x30] sm:$0xf]
    %v2661 = vld [vmem:[%s15 + $0x34] sm:$0xf]
    %v2662 = vld [vmem:[%s15 + $0x38] sm:$0xf]
    %v2663 = vld [vmem:[%s15 + $0x3c] sm:$0xf]
    %v2664 = vld [vmem:[%s16] sm:$0x1]
    %v2666 = vlaneseq
    %v2667 = vshrl.u32 %v2666, 7
    %v2668 = vsub.s32 0, %v2667
    %v2669 = vrot.slane %v2664, %v2668
    %v2687 = vunpack.c.l.b16 %v2648
    %v2688 = vunpack.c.l.b16 %v2649
    %v2689 = vunpack.c.l.b16 %v2650
    %v2690 = vunpack.c.l.b16 %v2651
    %v2691 = vunpack.c.l.b16 %v2652
    %v2692 = vunpack.c.l.b16 %v2653
    %v2693 = vunpack.c.l.b16 %v2654
    %v2694 = vunpack.c.l.b16 %v2655
    %v2695 = vunpack.c.l.b16 %v2656
    %v2696 = vunpack.c.l.b16 %v2657
    %v2697 = vunpack.c.l.b16 %v2658
    %v2698 = vunpack.c.l.b16 %v2659
    %v2699 = vunpack.c.l.b16 %v2660
    %v2700 = vunpack.c.l.b16 %v2661
    %v2701 = vunpack.c.l.b16 %v2662
    %v2702 = vunpack.c.l.b16 %v2663
    %v2703 = vpack.c.b16 %v2688, %v2687
    %v2704 = vpack.c.b16 %v2690, %v2689
    %v2705 = vpack.c.b16 %v2692, %v2691
    %v2706 = vpack.c.b16 %v2694, %v2693
    %v2707 = vpack.c.b16 %v2696, %v2695
    %v2708 = vpack.c.b16 %v2698, %v2697
    %v2709 = vpack.c.b16 %v2700, %v2699
    %v2710 = vpack.c.b16 %v2702, %v2701
    %2719 = vmatprep.subr.bf16.mxu0 0
    %2720 = vmatpush1.bf16.msra.mxu0 %v2703
    %2721 = vmatprep.subr.bf16.mxu0 0
    %2722 = vmatpush1.bf16.msra.mxu0 %v2704
    %2723 = vmatprep.subr.bf16.mxu0 0
    %2724 = vmatpush1.bf16.msra.mxu0 %v2705
    %2725 = vmatprep.subr.bf16.mxu0 0
    %2726 = vmatpush1.bf16.msra.mxu0 %v2706
    %2727 = vmatprep.subr.bf16.mxu0 0
    %2728 = vmatpush1.bf16.msra.mxu0 %v2707
    %2729 = vmatprep.subr.bf16.mxu0 0
    %2730 = vmatpush1.bf16.msra.mxu0 %v2708
    %2731 = vmatprep.subr.bf16.mxu0 0
    %2732 = vmatpush1.bf16.msra.mxu0 %v2709
    %2733 = vmatprep.subr.bf16.mxu0 0
    %2734 = vmatpush1.bf16.msra.mxu0 %v2710
    %2735 = vmatprep.subr.bf16.mxu0 0
    %2736 = vmatpush1.bf16.msra.mxu0 0
    %2737 = vmatprep.subr.bf16.mxu0 0
    %2738 = vmatpush1.bf16.msra.mxu0 0
    %2739 = vmatprep.subr.bf16.mxu0 0
    %2740 = vmatpush1.bf16.msra.mxu0 0
    %2741 = vmatprep.subr.bf16.mxu0 0
    %2742 = vmatpush1.bf16.msra.mxu0 0
    %2743 = vmatprep.subr.bf16.mxu0 0
    %2744 = vmatpush1.bf16.msra.mxu0 0
    %2745 = vmatprep.subr.bf16.mxu0 0
    %2746 = vmatpush1.bf16.msra.mxu0 0
    %2747 = vmatprep.subr.bf16.mxu0 0
    %2748 = vmatpush1.bf16.msra.mxu0 0
    %2749 = vmatprep.subr.bf16.mxu0 0
    %2750 = vmatpush1.bf16.msra.mxu0 0
    %2751 = vmatprep.mubr.bf16.mxu0 0
    %2752 = vmatmul.mubr.bf16.gmra.mrb[0].mxu0 %v2645
    %v2753 = vpop.f32.mrb[0].mxu0
    %v2754 = vadd.f32 %v2669, %v2753
    %v2755 = vpop.f32.mrb[0].mxu0
    %v2756 = vpop.f32.mrb[0].mxu0
    %v2757 = vadd.f32 %v2669, %v2756
    %v2758 = vpop.f32.mrb[0].mxu0
    %2759 = vmatprep.mubr.bf16.mxu0 0
    %2760 = vmatmul.mubr.bf16.gmra.mrb[0].mxu0 %v2646
    %v2761 = vpop.f32.mrb[0].mxu0
    %v2762 = vadd.f32 %v2669, %v2761
    %v2763 = vpop.f32.mrb[0].mxu0
    %v2764 = vpop.f32.mrb[0].mxu0
    %v2765 = vadd.f32 %v2669, %v2764
    %v2766 = vpop.f32.mrb[0].mxu0
    %2767 = vmatprep.mubr.bf16.mxu0 0
    %2768 = vmatmul.mubr.bf16.gmra.mrb[0].mxu0 %v2647
    %v2769 = vpop.f32.mrb[0].mxu0
    %v2770 = vadd.f32 %v2669, %v2769
    %v2771 = vpop.f32.mrb[0].mxu0
    %v2772 = vpop.f32.mrb[0].mxu0
    %v2773 = vadd.f32 %v2669, %v2772
    %v2774 = vpop.f32.mrb[0].mxu0
    %2775 = vdwg.mxu0
    %v2776 = vadd.f32 %v2413, %v2754
    %v2777 = vadd.f32 %v2414, %v2757
    %v2778 = vadd.f32 %v2415, %v2762
    %v2779 = vadd.f32 %v2416, %v2765
    %v2780 = vadd.f32 %v2417, %v2770
    %v2781 = vadd.f32 %v2418, %v2773
    %s2782 = scalar_lea.vmem %s4, 1
    %v2783 = vld [vmem:[%s2782] sm:$0x1]
    %s2784 = scalar_lea.vmem %s5, 1
    %v2785 = vld [vmem:[%s2784] sm:$0x1]
    %v2786 = vsel %vm196, %v2776, 0.0
    %2787 = vadd.xlane.f32.xlu0 %v2786
    %v2788 = vpop.xlane.xlu0 %2787
    %v2789 = vsel %vm196, %v2777, 0.0
    %2790 = vadd.xlane.f32.xlu0 %v2789
    %v2791 = vpop.xlane.xlu0 %2790
    %v2792 = vsel %vm196, %v2778, 0.0
    %2793 = vadd.xlane.f32.xlu0 %v2792
    %v2794 = vpop.xlane.xlu0 %2793
    %v2795 = vsel %vm196, %v2779, 0.0
    %2796 = vadd.xlane.f32.xlu0 %v2795
    %v2797 = vpop.xlane.xlu0 %2796
    %v2798 = vsel %vm196, %v2780, 0.0
    %2799 = vadd.xlane.f32.xlu0 %v2798
    %v2800 = vpop.xlane.xlu0 %2799
    %v2801 = vsel %vm196, %v2781, 0.0
    %2802 = vadd.xlane.f32.xlu0 %v2801
    %v2803 = vpop.xlane.xlu0 %2802
    %v2804 = vmul.f32 %v2788, %v215
    %v2805 = vmul.f32 %v2791, %v215
    %v2806 = vmul.f32 %v2794, %v215
    %v2807 = vmul.f32 %v2797, %v215
    %v2808 = vmul.f32 %v2800, %v215
    %v2809 = vmul.f32 %v2803, %v215
    %v2810 = vsub.f32 %v2776, %v2804
    %v2811 = vsub.f32 %v2777, %v2805
    %v2812 = vsub.f32 %v2778, %v2806
    %v2813 = vsub.f32 %v2779, %v2807
    %v2814 = vsub.f32 %v2780, %v2808
    %v2815 = vsub.f32 %v2781, %v2809
    %v2816 = vmul.f32 %v2810, %v2810
    %v2817 = vmul.f32 %v2811, %v2811
    %v2818 = vmul.f32 %v2812, %v2812
    %v2819 = vmul.f32 %v2813, %v2813
    %v2820 = vmul.f32 %v2814, %v2814
    %v2821 = vmul.f32 %v2815, %v2815
    %v2822 = vsel %vm196, %v2816, 0.0
    %2823 = vadd.xlane.f32.xlu0 %v2822
    %v2824 = vpop.xlane.xlu0 %2823
    %v2825 = vsel %vm196, %v2817, 0.0
    %2826 = vadd.xlane.f32.xlu0 %v2825
    %v2827 = vpop.xlane.xlu0 %2826
    %v2828 = vsel %vm196, %v2818, 0.0
    %2829 = vadd.xlane.f32.xlu0 %v2828
    %v2830 = vpop.xlane.xlu0 %2829
    %v2831 = vsel %vm196, %v2819, 0.0
    %2832 = vadd.xlane.f32.xlu0 %v2831
    %v2833 = vpop.xlane.xlu0 %2832
    %v2834 = vsel %vm196, %v2820, 0.0
    %2835 = vadd.xlane.f32.xlu0 %v2834
    %v2836 = vpop.xlane.xlu0 %2835
    %v2837 = vsel %vm196, %v2821, 0.0
    %2838 = vadd.xlane.f32.xlu0 %v2837
    %v2839 = vpop.xlane.xlu0 %2838
    %v2840 = vmul.f32 %v2824, %v215
    %v2841 = vmul.f32 %v2827, %v215
    %v2842 = vmul.f32 %v2830, %v215
    %v2843 = vmul.f32 %v2833, %v215
    %v2844 = vmul.f32 %v2836, %v215
    %v2845 = vmul.f32 %v2839, %v215
    %v2846 = vadd.f32 %v2840, 1e-05
    %v2847 = vadd.f32 %v2841, 1e-05
    %v2848 = vadd.f32 %v2842, 1e-05
    %v2849 = vadd.f32 %v2843, 1e-05
    %v2850 = vadd.f32 %v2844, 1e-05
    %v2851 = vadd.f32 %v2845, 1e-05
    %v2852 = vrsqrt.pop %v2846
    %v2853 = vrsqrt.pop %v2847
    %v2854 = vrsqrt.pop %v2848
    %v2855 = vrsqrt.pop %v2849
    %v2856 = vrsqrt.pop %v2850
    %v2857 = vrsqrt.pop %v2851
    %v2858 = vmul.f32 %v2810, %v2852
    %v2859 = vmul.f32 %v2811, %v2853
    %v2860 = vmul.f32 %v2812, %v2854
    %v2861 = vmul.f32 %v2813, %v2855
    %v2862 = vmul.f32 %v2814, %v2856
    %v2863 = vmul.f32 %v2815, %v2857
    %v2865 = vlaneseq
    %v2866 = vshrl.u32 %v2865, 7
    %v2867 = vsub.s32 0, %v2866
    %v2868 = vrot.slane %v2783, %v2867
    %v2870 = vmul.f32 %v2858, %v2868
    %v2871 = vmul.f32 %v2859, %v2868
    %v2872 = vmul.f32 %v2860, %v2868
    %v2873 = vmul.f32 %v2861, %v2868
    %v2874 = vmul.f32 %v2862, %v2868
    %v2875 = vmul.f32 %v2863, %v2868
    %v2877 = vlaneseq
    %v2878 = vshrl.u32 %v2877, 7
    %v2879 = vsub.s32 0, %v2878
    %v2880 = vrot.slane %v2785, %v2879
    %v2882 = vadd.f32 %v2870, %v2880
    %v2883 = vadd.f32 %v2871, %v2880
    %v2884 = vadd.f32 %v2872, %v2880
    %v2885 = vadd.f32 %v2873, %v2880
    %v2886 = vadd.f32 %v2874, %v2880
    %v2887 = vadd.f32 %v2875, %v2880
    %v2888 = vpack.c.bf16 %v2883, %v2882
    %v2889 = vpack.c.bf16 %v2885, %v2884
    %v2890 = vpack.c.bf16 %v2887, %v2886
    %s2891 = scalar_lea.vmem %s6, 64
    %v2892 = vld [vmem:[%s2891] sm:$0xf]
    %v2893 = vld [vmem:[%s2891 + $0x4] sm:$0xf]
    %v2894 = vld [vmem:[%s2891 + $0x8] sm:$0xf]
    %v2895 = vld [vmem:[%s2891 + $0xc] sm:$0xf]
    %v2896 = vld [vmem:[%s2891 + $0x10] sm:$0xf]
    %v2897 = vld [vmem:[%s2891 + $0x14] sm:$0xf]
    %v2898 = vld [vmem:[%s2891 + $0x18] sm:$0xf]
    %v2899 = vld [vmem:[%s2891 + $0x1c] sm:$0xf]
    %v2900 = vld [vmem:[%s2891 + $0x20] sm:$0xf]
    %v2901 = vld [vmem:[%s2891 + $0x24] sm:$0xf]
    %v2902 = vld [vmem:[%s2891 + $0x28] sm:$0xf]
    %v2903 = vld [vmem:[%s2891 + $0x2c] sm:$0xf]
    %v2904 = vld [vmem:[%s2891 + $0x30] sm:$0xf]
    %v2905 = vld [vmem:[%s2891 + $0x34] sm:$0xf]
    %v2906 = vld [vmem:[%s2891 + $0x38] sm:$0xf]
    %v2907 = vld [vmem:[%s2891 + $0x3c] sm:$0xf]
    %v2912 = vunpack.c.l.b16 %v2892
    %v2913 = vunpack.c.l.b16 %v2893
    %v2914 = vunpack.c.l.b16 %v2894
    %v2915 = vunpack.c.l.b16 %v2895
    %v2916 = vpack.c.b16 %v2913, %v2912
    %v2917 = vpack.c.b16 %v2915, %v2914
    %v2921 = vsel %vm196, %v2888, 0
    %v2924 = vsel %vm196, %v2889, 0
    %v2927 = vsel %vm196, %v2890, 0
    %2929 = vmatprep.subr.bf16.mxu0 0
    %2930 = vmatpush1.bf16.msra.mxu0 %v2916
    %2931 = vmatprep.subr.bf16.mxu0 0
    %2932 = vmatpush1.bf16.msra.mxu0 %v2917
    %2933 = vmatprep.subr.bf16.mxu0 0
    %2934 = vmatpush1.bf16.msra.mxu0 0
    %2935 = vmatprep.subr.bf16.mxu0 0
    %2936 = vmatpush1.bf16.msra.mxu0 0
    %2937 = vmatprep.subr.bf16.mxu0 0
    %2938 = vmatpush1.bf16.msra.mxu0 0
    %2939 = vmatprep.subr.bf16.mxu0 0
    %2940 = vmatpush1.bf16.msra.mxu0 0
    %2941 = vmatprep.subr.bf16.mxu0 0
    %2942 = vmatpush1.bf16.msra.mxu0 0
    %2943 = vmatprep.subr.bf16.mxu0 0
    %2944 = vmatpush1.bf16.msra.mxu0 0
    %2945 = vmatprep.subr.bf16.mxu0 0
    %2946 = vmatpush1.bf16.msra.mxu0 0
    %2947 = vmatprep.subr.bf16.mxu0 0
    %2948 = vmatpush1.bf16.msra.mxu0 0
    %2949 = vmatprep.subr.bf16.mxu0 0
    %2950 = vmatpush1.bf16.msra.mxu0 0
    %2951 = vmatprep.subr.bf16.mxu0 0
    %2952 = vmatpush1.bf16.msra.mxu0 0
    %2953 = vmatprep.subr.bf16.mxu0 0
    %2954 = vmatpush1.bf16.msra.mxu0 0
    %2955 = vmatprep.subr.bf16.mxu0 0
    %2956 = vmatpush1.bf16.msra.mxu0 0
    %2957 = vmatprep.subr.bf16.mxu0 0
    %2958 = vmatpush1.bf16.msra.mxu0 0
    %2959 = vmatprep.subr.bf16.mxu0 0
    %2960 = vmatpush1.bf16.msra.mxu0 0
    %2961 = vmatprep.mubr.bf16.mxu0 0
    %2962 = vmatmul.mubr.bf16.gmra.mrb[0].mxu0 %v2921
    %v2963 = vpop.f32.mrb[0].mxu0
    %v2964 = vadd.f32 0.0, %v2963
    %v2965 = vpop.f32.mrb[0].mxu0
    %v2966 = vpop.f32.mrb[0].mxu0
    %v2967 = vadd.f32 0.0, %v2966
    %v2968 = vpop.f32.mrb[0].mxu0
    %2969 = vmatprep.mubr.bf16.mxu0 0
    %2970 = vmatmul.mubr.bf16.gmra.mrb[0].mxu0 %v2924
    %v2971 = vpop.f32.mrb[0].mxu0
    %v2972 = vadd.f32 0.0, %v2971
    %v2973 = vpop.f32.mrb[0].mxu0
    %v2974 = vpop.f32.mrb[0].mxu0
    %v2975 = vadd.f32 0.0, %v2974
    %v2976 = vpop.f32.mrb[0].mxu0
    %2977 = vmatprep.mubr.bf16.mxu0 0
    %2978 = vmatmul.mubr.bf16.gmra.mrb[0].mxu0 %v2927
    %v2979 = vpop.f32.mrb[0].mxu0
    %v2980 = vadd.f32 0.0, %v2979
    %v2981 = vpop.f32.mrb[0].mxu0
    %v2982 = vpop.f32.mrb[0].mxu0
    %v2983 = vadd.f32 0.0, %v2982
    %v2984 = vpop.f32.mrb[0].mxu0
    %2985 = vdwg.mxu0
    %v2990 = vunpack.c.l.b16 %v2896
    %v2991 = vunpack.c.l.b16 %v2897
    %v2992 = vunpack.c.l.b16 %v2898
    %v2993 = vunpack.c.l.b16 %v2899
    %v2994 = vpack.c.b16 %v2991, %v2990
    %v2995 = vpack.c.b16 %v2993, %v2992
    %2998 = vmatprep.subr.bf16.mxu0 0
    %2999 = vmatpush1.bf16.msra.mxu0 %v2994
    %3000 = vmatprep.subr.bf16.mxu0 0
    %3001 = vmatpush1.bf16.msra.mxu0 %v2995
    %3002 = vmatprep.subr.bf16.mxu0 0
    %3003 = vmatpush1.bf16.msra.mxu0 0
    %3004 = vmatprep.subr.bf16.mxu0 0
    %3005 = vmatpush1.bf16.msra.mxu0 0
    %3006 = vmatprep.subr.bf16.mxu0 0
    %3007 = vmatpush1.bf16.msra.mxu0 0
    %3008 = vmatprep.subr.bf16.mxu0 0
    %3009 = vmatpush1.bf16.msra.mxu0 0
    %3010 = vmatprep.subr.bf16.mxu0 0
    %3011 = vmatpush1.bf16.msra.mxu0 0
    %3012 = vmatprep.subr.bf16.mxu0 0
    %3013 = vmatpush1.bf16.msra.mxu0 0
    %3014 = vmatprep.subr.bf16.mxu0 0
    %3015 = vmatpush1.bf16.msra.mxu0 0
    %3016 = vmatprep.subr.bf16.mxu0 0
    %3017 = vmatpush1.bf16.msra.mxu0 0
    %3018 = vmatprep.subr.bf16.mxu0 0
    %3019 = vmatpush1.bf16.msra.mxu0 0
    %3020 = vmatprep.subr.bf16.mxu0 0
    %3021 = vmatpush1.bf16.msra.mxu0 0
    %3022 = vmatprep.subr.bf16.mxu0 0
    %3023 = vmatpush1.bf16.msra.mxu0 0
    %3024 = vmatprep.subr.bf16.mxu0 0
    %3025 = vmatpush1.bf16.msra.mxu0 0
    %3026 = vmatprep.subr.bf16.mxu0 0
    %3027 = vmatpush1.bf16.msra.mxu0 0
    %3028 = vmatprep.subr.bf16.mxu0 0
    %3029 = vmatpush1.bf16.msra.mxu0 0
    %3030 = vmatprep.mubr.bf16.mxu0 0
    %3031 = vmatmul.mubr.bf16.gmra.mrb[0].mxu0 %v2921
    %v3032 = vpop.f32.mrb[0].mxu0
    %v3033 = vadd.f32 0.0, %v3032
    %v3034 = vpop.f32.mrb[0].mxu0
    %v3035 = vpop.f32.mrb[0].mxu0
    %v3036 = vadd.f32 0.0, %v3035
    %v3037 = vpop.f32.mrb[0].mxu0
    %3038 = vmatprep.mubr.bf16.mxu0 0
    %3039 = vmatmul.mubr.bf16.gmra.mrb[0].mxu0 %v2924
    %v3040 = vpop.f32.mrb[0].mxu0
    %v3041 = vadd.f32 0.0, %v3040
    %v3042 = vpop.f32.mrb[0].mxu0
    %v3043 = vpop.f32.mrb[0].mxu0
    %v3044 = vadd.f32 0.0, %v3043
    %v3045 = vpop.f32.mrb[0].mxu0
    %3046 = vmatprep.mubr.bf16.mxu0 0
    %3047 = vmatmul.mubr.bf16.gmra.mrb[0].mxu0 %v2927
    %v3048 = vpop.f32.mrb[0].mxu0
    %v3049 = vadd.f32 0.0, %v3048
    %v3050 = vpop.f32.mrb[0].mxu0
    %v3051 = vpop.f32.mrb[0].mxu0
    %v3052 = vadd.f32 0.0, %v3051
    %v3053 = vpop.f32.mrb[0].mxu0
    %3054 = vdwg.mxu0
    %v3059 = vunpack.c.l.b16 %v2900
    %v3060 = vunpack.c.l.b16 %v2901
    %v3061 = vunpack.c.l.b16 %v2902
    %v3062 = vunpack.c.l.b16 %v2903
    %v3063 = vpack.c.b16 %v3060, %v3059
    %v3064 = vpack.c.b16 %v3062, %v3061
    %3067 = vmatprep.subr.bf16.mxu0 0
    %3068 = vmatpush1.bf16.msra.mxu0 %v3063
    %3069 = vmatprep.subr.bf16.mxu0 0
    %3070 = vmatpush1.bf16.msra.mxu0 %v3064
    %3071 = vmatprep.subr.bf16.mxu0 0
    %3072 = vmatpush1.bf16.msra.mxu0 0
    %3073 = vmatprep.subr.bf16.mxu0 0
    %3074 = vmatpush1.bf16.msra.mxu0 0
    %3075 = vmatprep.subr.bf16.mxu0 0
    %3076 = vmatpush1.bf16.msra.mxu0 0
    %3077 = vmatprep.subr.bf16.mxu0 0
    %3078 = vmatpush1.bf16.msra.mxu0 0
    %3079 = vmatprep.subr.bf16.mxu0 0
    %3080 = vmatpush1.bf16.msra.mxu0 0
    %3081 = vmatprep.subr.bf16.mxu0 0
    %3082 = vmatpush1.bf16.msra.mxu0 0
    %3083 = vmatprep.subr.bf16.mxu0 0
    %3084 = vmatpush1.bf16.msra.mxu0 0
    %3085 = vmatprep.subr.bf16.mxu0 0
    %3086 = vmatpush1.bf16.msra.mxu0 0
    %3087 = vmatprep.subr.bf16.mxu0 0
    %3088 = vmatpush1.bf16.msra.mxu0 0
    %3089 = vmatprep.subr.bf16.mxu0 0
    %3090 = vmatpush1.bf16.msra.mxu0 0
    %3091 = vmatprep.subr.bf16.mxu0 0
    %3092 = vmatpush1.bf16.msra.mxu0 0
    %3093 = vmatprep.subr.bf16.mxu0 0
    %3094 = vmatpush1.bf16.msra.mxu0 0
    %3095 = vmatprep.subr.bf16.mxu0 0
    %3096 = vmatpush1.bf16.msra.mxu0 0
    %3097 = vmatprep.subr.bf16.mxu0 0
    %3098 = vmatpush1.bf16.msra.mxu0 0
    %3099 = vmatprep.mubr.bf16.mxu0 0
    %3100 = vmatmul.mubr.bf16.gmra.mrb[0].mxu0 %v2921
    %v3101 = vpop.f32.mrb[0].mxu0
    %v3102 = vadd.f32 0.0, %v3101
    %v3103 = vpop.f32.mrb[0].mxu0
    %v3104 = vpop.f32.mrb[0].mxu0
    %v3105 = vadd.f32 0.0, %v3104
    %v3106 = vpop.f32.mrb[0].mxu0
    %3107 = vmatprep.mubr.bf16.mxu0 0
    %3108 = vmatmul.mubr.bf16.gmra.mrb[0].mxu0 %v2924
    %v3109 = vpop.f32.mrb[0].mxu0
    %v3110 = vadd.f32 0.0, %v3109
    %v3111 = vpop.f32.mrb[0].mxu0
    %v3112 = vpop.f32.mrb[0].mxu0
    %v3113 = vadd.f32 0.0, %v3112
    %v3114 = vpop.f32.mrb[0].mxu0
    %3115 = vmatprep.mubr.bf16.mxu0 0
    %3116 = vmatmul.mubr.bf16.gmra.mrb[0].mxu0 %v2927
    %v3117 = vpop.f32.mrb[0].mxu0
    %v3118 = vadd.f32 0.0, %v3117
    %v3119 = vpop.f32.mrb[0].mxu0
    %v3120 = vpop.f32.mrb[0].mxu0
    %v3121 = vadd.f32 0.0, %v3120
    %v3122 = vpop.f32.mrb[0].mxu0
    %3123 = vdwg.mxu0
    %v3128 = vunpack.c.l.b16 %v2904
    %v3129 = vunpack.c.l.b16 %v2905
    %v3130 = vunpack.c.l.b16 %v2906
    %v3131 = vunpack.c.l.b16 %v2907
    %v3132 = vpack.c.b16 %v3129, %v3128
    %v3133 = vpack.c.b16 %v3131, %v3130
    %3136 = vmatprep.subr.bf16.mxu0 0
    %3137 = vmatpush1.bf16.msra.mxu0 %v3132
    %3138 = vmatprep.subr.bf16.mxu0 0
    %3139 = vmatpush1.bf16.msra.mxu0 %v3133
    %3140 = vmatprep.subr.bf16.mxu0 0
    %3141 = vmatpush1.bf16.msra.mxu0 0
    %3142 = vmatprep.subr.bf16.mxu0 0
    %3143 = vmatpush1.bf16.msra.mxu0 0
    %3144 = vmatprep.subr.bf16.mxu0 0
    %3145 = vmatpush1.bf16.msra.mxu0 0
    %3146 = vmatprep.subr.bf16.mxu0 0
    %3147 = vmatpush1.bf16.msra.mxu0 0
    %3148 = vmatprep.subr.bf16.mxu0 0
    %3149 = vmatpush1.bf16.msra.mxu0 0
    %3150 = vmatprep.subr.bf16.mxu0 0
    %3151 = vmatpush1.bf16.msra.mxu0 0
    %3152 = vmatprep.subr.bf16.mxu0 0
    %3153 = vmatpush1.bf16.msra.mxu0 0
    %3154 = vmatprep.subr.bf16.mxu0 0
    %3155 = vmatpush1.bf16.msra.mxu0 0
    %3156 = vmatprep.subr.bf16.mxu0 0
    %3157 = vmatpush1.bf16.msra.mxu0 0
    %3158 = vmatprep.subr.bf16.mxu0 0
    %3159 = vmatpush1.bf16.msra.mxu0 0
    %3160 = vmatprep.subr.bf16.mxu0 0
    %3161 = vmatpush1.bf16.msra.mxu0 0
    %3162 = vmatprep.subr.bf16.mxu0 0
    %3163 = vmatpush1.bf16.msra.mxu0 0
    %3164 = vmatprep.subr.bf16.mxu0 0
    %3165 = vmatpush1.bf16.msra.mxu0 0
    %3166 = vmatprep.subr.bf16.mxu0 0
    %3167 = vmatpush1.bf16.msra.mxu0 0
    %3168 = vmatprep.mubr.bf16.mxu0 0
    %3169 = vmatmul.mubr.bf16.gmra.mrb[0].mxu0 %v2921
    %v3170 = vpop.f32.mrb[0].mxu0
    %v3171 = vadd.f32 0.0, %v3170
    %v3172 = vpop.f32.mrb[0].mxu0
    %v3173 = vpop.f32.mrb[0].mxu0
    %v3174 = vadd.f32 0.0, %v3173
    %v3175 = vpop.f32.mrb[0].mxu0
    %3176 = vmatprep.mubr.bf16.mxu0 0
    %3177 = vmatmul.mubr.bf16.gmra.mrb[0].mxu0 %v2924
    %v3178 = vpop.f32.mrb[0].mxu0
    %v3179 = vadd.f32 0.0, %v3178
    %v3180 = vpop.f32.mrb[0].mxu0
    %v3181 = vpop.f32.mrb[0].mxu0
    %v3182 = vadd.f32 0.0, %v3181
    %v3183 = vpop.f32.mrb[0].mxu0
    %3184 = vmatprep.mubr.bf16.mxu0 0
    %3185 = vmatmul.mubr.bf16.gmra.mrb[0].mxu0 %v2927
    %v3186 = vpop.f32.mrb[0].mxu0
    %v3187 = vadd.f32 0.0, %v3186
    %v3188 = vpop.f32.mrb[0].mxu0
    %v3189 = vpop.f32.mrb[0].mxu0
    %v3190 = vadd.f32 0.0, %v3189
    %v3191 = vpop.f32.mrb[0].mxu0
    %3192 = vdwg.mxu0
    %v3193 = vpack.c.bf16 %v2967, %v2964
    %v3194 = vpack.c.bf16 %v2975, %v2972
    %v3195 = vpack.c.bf16 %v2983, %v2980
    %v3196 = vpack.c.bf16 %v3036, %v3033
    %v3197 = vpack.c.bf16 %v3044, %v3041
    %v3198 = vpack.c.bf16 %v3052, %v3049
    %v3199 = vpack.c.bf16 %v3105, %v3102
    %v3200 = vpack.c.bf16 %v3113, %v3110
    %v3201 = vpack.c.bf16 %v3121, %v3118
    %v3202 = vpack.c.bf16 %v3174, %v3171
    %v3203 = vpack.c.bf16 %v3182, %v3179
    %v3204 = vpack.c.bf16 %v3190, %v3187
    %s3205 = scalar_lea.vmem %s7, 64
    %v3206 = vld [vmem:[%s3205] sm:$0xf]
    %v3207 = vld [vmem:[%s3205 + $0x4] sm:$0xf]
    %v3208 = vld [vmem:[%s3205 + $0x8] sm:$0xf]
    %v3209 = vld [vmem:[%s3205 + $0xc] sm:$0xf]
    %v3210 = vld [vmem:[%s3205 + $0x10] sm:$0xf]
    %v3211 = vld [vmem:[%s3205 + $0x14] sm:$0xf]
    %v3212 = vld [vmem:[%s3205 + $0x18] sm:$0xf]
    %v3213 = vld [vmem:[%s3205 + $0x1c] sm:$0xf]
    %v3214 = vld [vmem:[%s3205 + $0x20] sm:$0xf]
    %v3215 = vld [vmem:[%s3205 + $0x24] sm:$0xf]
    %v3216 = vld [vmem:[%s3205 + $0x28] sm:$0xf]
    %v3217 = vld [vmem:[%s3205 + $0x2c] sm:$0xf]
    %v3218 = vld [vmem:[%s3205 + $0x30] sm:$0xf]
    %v3219 = vld [vmem:[%s3205 + $0x34] sm:$0xf]
    %v3220 = vld [vmem:[%s3205 + $0x38] sm:$0xf]
    %v3221 = vld [vmem:[%s3205 + $0x3c] sm:$0xf]
    %v3226 = vunpack.c.l.b16 %v3206
    %v3227 = vunpack.c.l.b16 %v3207
    %v3228 = vunpack.c.l.b16 %v3208
    %v3229 = vunpack.c.l.b16 %v3209
    %v3230 = vpack.c.b16 %v3227, %v3226
    %v3231 = vpack.c.b16 %v3229, %v3228
    %3234 = vmatprep.subr.bf16.mxu0 0
    %3235 = vmatpush1.bf16.msra.mxu0 %v3230
    %3236 = vmatprep.subr.bf16.mxu0 0
    %3237 = vmatpush1.bf16.msra.mxu0 %v3231
    %3238 = vmatprep.subr.bf16.mxu0 0
    %3239 = vmatpush1.bf16.msra.mxu0 0
    %3240 = vmatprep.subr.bf16.mxu0 0
    %3241 = vmatpush1.bf16.msra.mxu0 0
    %3242 = vmatprep.subr.bf16.mxu0 0
    %3243 = vmatpush1.bf16.msra.mxu0 0
    %3244 = vmatprep.subr.bf16.mxu0 0
    %3245 = vmatpush1.bf16.msra.mxu0 0
    %3246 = vmatprep.subr.bf16.mxu0 0
    %3247 = vmatpush1.bf16.msra.mxu0 0
    %3248 = vmatprep.subr.bf16.mxu0 0
    %3249 = vmatpush1.bf16.msra.mxu0 0
    %3250 = vmatprep.subr.bf16.mxu0 0
    %3251 = vmatpush1.bf16.msra.mxu0 0
    %3252 = vmatprep.subr.bf16.mxu0 0
    %3253 = vmatpush1.bf16.msra.mxu0 0
    %3254 = vmatprep.subr.bf16.mxu0 0
    %3255 = vmatpush1.bf16.msra.mxu0 0
    %3256 = vmatprep.subr.bf16.mxu0 0
    %3257 = vmatpush1.bf16.msra.mxu0 0
    %3258 = vmatprep.subr.bf16.mxu0 0
    %3259 = vmatpush1.bf16.msra.mxu0 0
    %3260 = vmatprep.subr.bf16.mxu0 0
    %3261 = vmatpush1.bf16.msra.mxu0 0
    %3262 = vmatprep.subr.bf16.mxu0 0
    %3263 = vmatpush1.bf16.msra.mxu0 0
    %3264 = vmatprep.subr.bf16.mxu0 0
    %3265 = vmatpush1.bf16.msra.mxu0 0
    %3266 = vmatprep.mubr.bf16.mxu0 0
    %3267 = vmatmul.mubr.bf16.gmra.mrb[0].mxu0 %v2921
    %v3268 = vpop.f32.mrb[0].mxu0
    %v3269 = vadd.f32 0.0, %v3268
    %v3270 = vpop.f32.mrb[0].mxu0
    %v3271 = vpop.f32.mrb[0].mxu0
    %v3272 = vadd.f32 0.0, %v3271
    %v3273 = vpop.f32.mrb[0].mxu0
    %3274 = vmatprep.mubr.bf16.mxu0 0
    %3275 = vmatmul.mubr.bf16.gmra.mrb[0].mxu0 %v2924
    %v3276 = vpop.f32.mrb[0].mxu0
    %v3277 = vadd.f32 0.0, %v3276
    %v3278 = vpop.f32.mrb[0].mxu0
    %v3279 = vpop.f32.mrb[0].mxu0
    %v3280 = vadd.f32 0.0, %v3279
    %v3281 = vpop.f32.mrb[0].mxu0
    %3282 = vmatprep.mubr.bf16.mxu0 0
    %3283 = vmatmul.mubr.bf16.gmra.mrb[0].mxu0 %v2927
    %v3284 = vpop.f32.mrb[0].mxu0
    %v3285 = vadd.f32 0.0, %v3284
    %v3286 = vpop.f32.mrb[0].mxu0
    %v3287 = vpop.f32.mrb[0].mxu0
    %v3288 = vadd.f32 0.0, %v3287
    %v3289 = vpop.f32.mrb[0].mxu0
    %3290 = vdwg.mxu0
    %v3295 = vunpack.c.l.b16 %v3210
    %v3296 = vunpack.c.l.b16 %v3211
    %v3297 = vunpack.c.l.b16 %v3212
    %v3298 = vunpack.c.l.b16 %v3213
    %v3299 = vpack.c.b16 %v3296, %v3295
    %v3300 = vpack.c.b16 %v3298, %v3297
    %3303 = vmatprep.subr.bf16.mxu0 0
    %3304 = vmatpush1.bf16.msra.mxu0 %v3299
    %3305 = vmatprep.subr.bf16.mxu0 0
    %3306 = vmatpush1.bf16.msra.mxu0 %v3300
    %3307 = vmatprep.subr.bf16.mxu0 0
    %3308 = vmatpush1.bf16.msra.mxu0 0
    %3309 = vmatprep.subr.bf16.mxu0 0
    %3310 = vmatpush1.bf16.msra.mxu0 0
    %3311 = vmatprep.subr.bf16.mxu0 0
    %3312 = vmatpush1.bf16.msra.mxu0 0
    %3313 = vmatprep.subr.bf16.mxu0 0
    %3314 = vmatpush1.bf16.msra.mxu0 0
    %3315 = vmatprep.subr.bf16.mxu0 0
    %3316 = vmatpush1.bf16.msra.mxu0 0
    %3317 = vmatprep.subr.bf16.mxu0 0
    %3318 = vmatpush1.bf16.msra.mxu0 0
    %3319 = vmatprep.subr.bf16.mxu0 0
    %3320 = vmatpush1.bf16.msra.mxu0 0
    %3321 = vmatprep.subr.bf16.mxu0 0
    %3322 = vmatpush1.bf16.msra.mxu0 0
    %3323 = vmatprep.subr.bf16.mxu0 0
    %3324 = vmatpush1.bf16.msra.mxu0 0
    %3325 = vmatprep.subr.bf16.mxu0 0
    %3326 = vmatpush1.bf16.msra.mxu0 0
    %3327 = vmatprep.subr.bf16.mxu0 0
    %3328 = vmatpush1.bf16.msra.mxu0 0
    %3329 = vmatprep.subr.bf16.mxu0 0
    %3330 = vmatpush1.bf16.msra.mxu0 0
    %3331 = vmatprep.subr.bf16.mxu0 0
    %3332 = vmatpush1.bf16.msra.mxu0 0
    %3333 = vmatprep.subr.bf16.mxu0 0
    %3334 = vmatpush1.bf16.msra.mxu0 0
    %3335 = vmatprep.mubr.bf16.mxu0 0
    %3336 = vmatmul.mubr.bf16.gmra.mrb[0].mxu0 %v2921
    %v3337 = vpop.f32.mrb[0].mxu0
    %v3338 = vadd.f32 0.0, %v3337
    %v3339 = vpop.f32.mrb[0].mxu0
    %v3340 = vpop.f32.mrb[0].mxu0
    %v3341 = vadd.f32 0.0, %v3340
    %v3342 = vpop.f32.mrb[0].mxu0
    %3343 = vmatprep.mubr.bf16.mxu0 0
    %3344 = vmatmul.mubr.bf16.gmra.mrb[0].mxu0 %v2924
    %v3345 = vpop.f32.mrb[0].mxu0
    %v3346 = vadd.f32 0.0, %v3345
    %v3347 = vpop.f32.mrb[0].mxu0
    %v3348 = vpop.f32.mrb[0].mxu0
    %v3349 = vadd.f32 0.0, %v3348
    %v3350 = vpop.f32.mrb[0].mxu0
    %3351 = vmatprep.mubr.bf16.mxu0 0
    %3352 = vmatmul.mubr.bf16.gmra.mrb[0].mxu0 %v2927
    %v3353 = vpop.f32.mrb[0].mxu0
    %v3354 = vadd.f32 0.0, %v3353
    %v3355 = vpop.f32.mrb[0].mxu0
    %v3356 = vpop.f32.mrb[0].mxu0
    %v3357 = vadd.f32 0.0, %v3356
    %v3358 = vpop.f32.mrb[0].mxu0
    %3359 = vdwg.mxu0
    %v3364 = vunpack.c.l.b16 %v3214
    %v3365 = vunpack.c.l.b16 %v3215
    %v3366 = vunpack.c.l.b16 %v3216
    %v3367 = vunpack.c.l.b16 %v3217
    %v3368 = vpack.c.b16 %v3365, %v3364
    %v3369 = vpack.c.b16 %v3367, %v3366
    %3372 = vmatprep.subr.bf16.mxu0 0
    %3373 = vmatpush1.bf16.msra.mxu0 %v3368
    %3374 = vmatprep.subr.bf16.mxu0 0
    %3375 = vmatpush1.bf16.msra.mxu0 %v3369
    %3376 = vmatprep.subr.bf16.mxu0 0
    %3377 = vmatpush1.bf16.msra.mxu0 0
    %3378 = vmatprep.subr.bf16.mxu0 0
    %3379 = vmatpush1.bf16.msra.mxu0 0
    %3380 = vmatprep.subr.bf16.mxu0 0
    %3381 = vmatpush1.bf16.msra.mxu0 0
    %3382 = vmatprep.subr.bf16.mxu0 0
    %3383 = vmatpush1.bf16.msra.mxu0 0
    %3384 = vmatprep.subr.bf16.mxu0 0
    %3385 = vmatpush1.bf16.msra.mxu0 0
    %3386 = vmatprep.subr.bf16.mxu0 0
    %3387 = vmatpush1.bf16.msra.mxu0 0
    %3388 = vmatprep.subr.bf16.mxu0 0
    %3389 = vmatpush1.bf16.msra.mxu0 0
    %3390 = vmatprep.subr.bf16.mxu0 0
    %3391 = vmatpush1.bf16.msra.mxu0 0
    %3392 = vmatprep.subr.bf16.mxu0 0
    %3393 = vmatpush1.bf16.msra.mxu0 0
    %3394 = vmatprep.subr.bf16.mxu0 0
    %3395 = vmatpush1.bf16.msra.mxu0 0
    %3396 = vmatprep.subr.bf16.mxu0 0
    %3397 = vmatpush1.bf16.msra.mxu0 0
    %3398 = vmatprep.subr.bf16.mxu0 0
    %3399 = vmatpush1.bf16.msra.mxu0 0
    %3400 = vmatprep.subr.bf16.mxu0 0
    %3401 = vmatpush1.bf16.msra.mxu0 0
    %3402 = vmatprep.subr.bf16.mxu0 0
    %3403 = vmatpush1.bf16.msra.mxu0 0
    %3404 = vmatprep.mubr.bf16.mxu0 0
    %3405 = vmatmul.mubr.bf16.gmra.mrb[0].mxu0 %v2921
    %v3406 = vpop.f32.mrb[0].mxu0
    %v3407 = vadd.f32 0.0, %v3406
    %v3408 = vpop.f32.mrb[0].mxu0
    %v3409 = vpop.f32.mrb[0].mxu0
    %v3410 = vadd.f32 0.0, %v3409
    %v3411 = vpop.f32.mrb[0].mxu0
    %3412 = vmatprep.mubr.bf16.mxu0 0
    %3413 = vmatmul.mubr.bf16.gmra.mrb[0].mxu0 %v2924
    %v3414 = vpop.f32.mrb[0].mxu0
    %v3415 = vadd.f32 0.0, %v3414
    %v3416 = vpop.f32.mrb[0].mxu0
    %v3417 = vpop.f32.mrb[0].mxu0
    %v3418 = vadd.f32 0.0, %v3417
    %v3419 = vpop.f32.mrb[0].mxu0
    %3420 = vmatprep.mubr.bf16.mxu0 0
    %3421 = vmatmul.mubr.bf16.gmra.mrb[0].mxu0 %v2927
    %v3422 = vpop.f32.mrb[0].mxu0
    %v3423 = vadd.f32 0.0, %v3422
    %v3424 = vpop.f32.mrb[0].mxu0
    %v3425 = vpop.f32.mrb[0].mxu0
    %v3426 = vadd.f32 0.0, %v3425
    %v3427 = vpop.f32.mrb[0].mxu0
    %3428 = vdwg.mxu0
    %v3433 = vunpack.c.l.b16 %v3218
    %v3434 = vunpack.c.l.b16 %v3219
    %v3435 = vunpack.c.l.b16 %v3220
    %v3436 = vunpack.c.l.b16 %v3221
    %v3437 = vpack.c.b16 %v3434, %v3433
    %v3438 = vpack.c.b16 %v3436, %v3435
    %3441 = vmatprep.subr.bf16.mxu0 0
    %3442 = vmatpush1.bf16.msra.mxu0 %v3437
    %3443 = vmatprep.subr.bf16.mxu0 0
    %3444 = vmatpush1.bf16.msra.mxu0 %v3438
    %3445 = vmatprep.subr.bf16.mxu0 0
    %3446 = vmatpush1.bf16.msra.mxu0 0
    %3447 = vmatprep.subr.bf16.mxu0 0
    %3448 = vmatpush1.bf16.msra.mxu0 0
    %3449 = vmatprep.subr.bf16.mxu0 0
    %3450 = vmatpush1.bf16.msra.mxu0 0
    %3451 = vmatprep.subr.bf16.mxu0 0
    %3452 = vmatpush1.bf16.msra.mxu0 0
    %3453 = vmatprep.subr.bf16.mxu0 0
    %3454 = vmatpush1.bf16.msra.mxu0 0
    %3455 = vmatprep.subr.bf16.mxu0 0
    %3456 = vmatpush1.bf16.msra.mxu0 0
    %3457 = vmatprep.subr.bf16.mxu0 0
    %3458 = vmatpush1.bf16.msra.mxu0 0
    %3459 = vmatprep.subr.bf16.mxu0 0
    %3460 = vmatpush1.bf16.msra.mxu0 0
    %3461 = vmatprep.subr.bf16.mxu0 0
    %3462 = vmatpush1.bf16.msra.mxu0 0
    %3463 = vmatprep.subr.bf16.mxu0 0
    %3464 = vmatpush1.bf16.msra.mxu0 0
    %3465 = vmatprep.subr.bf16.mxu0 0
    %3466 = vmatpush1.bf16.msra.mxu0 0
    %3467 = vmatprep.subr.bf16.mxu0 0
    %3468 = vmatpush1.bf16.msra.mxu0 0
    %3469 = vmatprep.subr.bf16.mxu0 0
    %3470 = vmatpush1.bf16.msra.mxu0 0
    %3471 = vmatprep.subr.bf16.mxu0 0
    %3472 = vmatpush1.bf16.msra.mxu0 0
    %3473 = vmatprep.mubr.bf16.mxu0 0
    %3474 = vmatmul.mubr.bf16.gmra.mrb[0].mxu0 %v2921
    %v3475 = vpop.f32.mrb[0].mxu0
    %v3476 = vadd.f32 0.0, %v3475
    %v3477 = vpop.f32.mrb[0].mxu0
    %v3478 = vpop.f32.mrb[0].mxu0
    %v3479 = vadd.f32 0.0, %v3478
    %v3480 = vpop.f32.mrb[0].mxu0
    %3481 = vmatprep.mubr.bf16.mxu0 0
    %3482 = vmatmul.mubr.bf16.gmra.mrb[0].mxu0 %v2924
    %v3483 = vpop.f32.mrb[0].mxu0
    %v3484 = vadd.f32 0.0, %v3483
    %v3485 = vpop.f32.mrb[0].mxu0
    %v3486 = vpop.f32.mrb[0].mxu0
    %v3487 = vadd.f32 0.0, %v3486
    %v3488 = vpop.f32.mrb[0].mxu0
    %3489 = vmatprep.mubr.bf16.mxu0 0
    %3490 = vmatmul.mubr.bf16.gmra.mrb[0].mxu0 %v2927
    %v3491 = vpop.f32.mrb[0].mxu0
    %v3492 = vadd.f32 0.0, %v3491
    %v3493 = vpop.f32.mrb[0].mxu0
    %v3494 = vpop.f32.mrb[0].mxu0
    %v3495 = vadd.f32 0.0, %v3494
    %v3496 = vpop.f32.mrb[0].mxu0
    %3497 = vdwg.mxu0
    %v3498 = vpack.c.bf16 %v3272, %v3269
    %v3499 = vpack.c.bf16 %v3280, %v3277
    %v3500 = vpack.c.bf16 %v3288, %v3285
    %v3501 = vpack.c.bf16 %v3341, %v3338
    %v3502 = vpack.c.bf16 %v3349, %v3346
    %v3503 = vpack.c.bf16 %v3357, %v3354
    %v3504 = vpack.c.bf16 %v3410, %v3407
    %v3505 = vpack.c.bf16 %v3418, %v3415
    %v3506 = vpack.c.bf16 %v3426, %v3423
    %v3507 = vpack.c.bf16 %v3479, %v3476
    %v3508 = vpack.c.bf16 %v3487, %v3484
    %v3509 = vpack.c.bf16 %v3495, %v3492
    %s3510 = scalar_lea.vmem %s8, 64
    %v3511 = vld [vmem:[%s3510] sm:$0xf]
    %v3512 = vld [vmem:[%s3510 + $0x4] sm:$0xf]
    %v3513 = vld [vmem:[%s3510 + $0x8] sm:$0xf]
    %v3514 = vld [vmem:[%s3510 + $0xc] sm:$0xf]
    %v3515 = vld [vmem:[%s3510 + $0x10] sm:$0xf]
    %v3516 = vld [vmem:[%s3510 + $0x14] sm:$0xf]
    %v3517 = vld [vmem:[%s3510 + $0x18] sm:$0xf]
    %v3518 = vld [vmem:[%s3510 + $0x1c] sm:$0xf]
    %v3519 = vld [vmem:[%s3510 + $0x20] sm:$0xf]
    %v3520 = vld [vmem:[%s3510 + $0x24] sm:$0xf]
    %v3521 = vld [vmem:[%s3510 + $0x28] sm:$0xf]
    %v3522 = vld [vmem:[%s3510 + $0x2c] sm:$0xf]
    %v3523 = vld [vmem:[%s3510 + $0x30] sm:$0xf]
    %v3524 = vld [vmem:[%s3510 + $0x34] sm:$0xf]
    %v3525 = vld [vmem:[%s3510 + $0x38] sm:$0xf]
    %v3526 = vld [vmem:[%s3510 + $0x3c] sm:$0xf]
    %v3531 = vunpack.c.l.b16 %v3511
    %v3532 = vunpack.c.l.b16 %v3512
    %v3533 = vunpack.c.l.b16 %v3513
    %v3534 = vunpack.c.l.b16 %v3514
    %v3535 = vpack.c.b16 %v3532, %v3531
    %v3536 = vpack.c.b16 %v3534, %v3533
    %3539 = vmatprep.subr.bf16.mxu0 0
    %3540 = vmatpush1.bf16.msra.mxu0 %v3535
    %3541 = vmatprep.subr.bf16.mxu0 0
    %3542 = vmatpush1.bf16.msra.mxu0 %v3536
    %3543 = vmatprep.subr.bf16.mxu0 0
    %3544 = vmatpush1.bf16.msra.mxu0 0
    %3545 = vmatprep.subr.bf16.mxu0 0
    %3546 = vmatpush1.bf16.msra.mxu0 0
    %3547 = vmatprep.subr.bf16.mxu0 0
    %3548 = vmatpush1.bf16.msra.mxu0 0
    %3549 = vmatprep.subr.bf16.mxu0 0
    %3550 = vmatpush1.bf16.msra.mxu0 0
    %3551 = vmatprep.subr.bf16.mxu0 0
    %3552 = vmatpush1.bf16.msra.mxu0 0
    %3553 = vmatprep.subr.bf16.mxu0 0
    %3554 = vmatpush1.bf16.msra.mxu0 0
    %3555 = vmatprep.subr.bf16.mxu0 0
    %3556 = vmatpush1.bf16.msra.mxu0 0
    %3557 = vmatprep.subr.bf16.mxu0 0
    %3558 = vmatpush1.bf16.msra.mxu0 0
    %3559 = vmatprep.subr.bf16.mxu0 0
    %3560 = vmatpush1.bf16.msra.mxu0 0
    %3561 = vmatprep.subr.bf16.mxu0 0
    %3562 = vmatpush1.bf16.msra.mxu0 0
    %3563 = vmatprep.subr.bf16.mxu0 0
    %3564 = vmatpush1.bf16.msra.mxu0 0
    %3565 = vmatprep.subr.bf16.mxu0 0
    %3566 = vmatpush1.bf16.msra.mxu0 0
    %3567 = vmatprep.subr.bf16.mxu0 0
    %3568 = vmatpush1.bf16.msra.mxu0 0
    %3569 = vmatprep.subr.bf16.mxu0 0
    %3570 = vmatpush1.bf16.msra.mxu0 0
    %3571 = vmatprep.mubr.bf16.mxu0 0
    %3572 = vmatmul.mubr.bf16.gmra.mrb[0].mxu0 %v2921
    %v3573 = vpop.f32.mrb[0].mxu0
    %v3574 = vadd.f32 0.0, %v3573
    %v3575 = vpop.f32.mrb[0].mxu0
    %v3576 = vpop.f32.mrb[0].mxu0
    %v3577 = vadd.f32 0.0, %v3576
    %v3578 = vpop.f32.mrb[0].mxu0
    %3579 = vmatprep.mubr.bf16.mxu0 0
    %3580 = vmatmul.mubr.bf16.gmra.mrb[0].mxu0 %v2924
    %v3581 = vpop.f32.mrb[0].mxu0
    %v3582 = vadd.f32 0.0, %v3581
    %v3583 = vpop.f32.mrb[0].mxu0
    %v3584 = vpop.f32.mrb[0].mxu0
    %v3585 = vadd.f32 0.0, %v3584
    %v3586 = vpop.f32.mrb[0].mxu0
    %3587 = vmatprep.mubr.bf16.mxu0 0
    %3588 = vmatmul.mubr.bf16.gmra.mrb[0].mxu0 %v2927
    %v3589 = vpop.f32.mrb[0].mxu0
    %v3590 = vadd.f32 0.0, %v3589
    %v3591 = vpop.f32.mrb[0].mxu0
    %v3592 = vpop.f32.mrb[0].mxu0
    %v3593 = vadd.f32 0.0, %v3592
    %v3594 = vpop.f32.mrb[0].mxu0
    %3595 = vdwg.mxu0
    %v3600 = vunpack.c.l.b16 %v3515
    %v3601 = vunpack.c.l.b16 %v3516
    %v3602 = vunpack.c.l.b16 %v3517
    %v3603 = vunpack.c.l.b16 %v3518
    %v3604 = vpack.c.b16 %v3601, %v3600
    %v3605 = vpack.c.b16 %v3603, %v3602
    %3608 = vmatprep.subr.bf16.mxu0 0
    %3609 = vmatpush1.bf16.msra.mxu0 %v3604
    %3610 = vmatprep.subr.bf16.mxu0 0
    %3611 = vmatpush1.bf16.msra.mxu0 %v3605
    %3612 = vmatprep.subr.bf16.mxu0 0
    %3613 = vmatpush1.bf16.msra.mxu0 0
    %3614 = vmatprep.subr.bf16.mxu0 0
    %3615 = vmatpush1.bf16.msra.mxu0 0
    %3616 = vmatprep.subr.bf16.mxu0 0
    %3617 = vmatpush1.bf16.msra.mxu0 0
    %3618 = vmatprep.subr.bf16.mxu0 0
    %3619 = vmatpush1.bf16.msra.mxu0 0
    %3620 = vmatprep.subr.bf16.mxu0 0
    %3621 = vmatpush1.bf16.msra.mxu0 0
    %3622 = vmatprep.subr.bf16.mxu0 0
    %3623 = vmatpush1.bf16.msra.mxu0 0
    %3624 = vmatprep.subr.bf16.mxu0 0
    %3625 = vmatpush1.bf16.msra.mxu0 0
    %3626 = vmatprep.subr.bf16.mxu0 0
    %3627 = vmatpush1.bf16.msra.mxu0 0
    %3628 = vmatprep.subr.bf16.mxu0 0
    %3629 = vmatpush1.bf16.msra.mxu0 0
    %3630 = vmatprep.subr.bf16.mxu0 0
    %3631 = vmatpush1.bf16.msra.mxu0 0
    %3632 = vmatprep.subr.bf16.mxu0 0
    %3633 = vmatpush1.bf16.msra.mxu0 0
    %3634 = vmatprep.subr.bf16.mxu0 0
    %3635 = vmatpush1.bf16.msra.mxu0 0
    %3636 = vmatprep.subr.bf16.mxu0 0
    %3637 = vmatpush1.bf16.msra.mxu0 0
    %3638 = vmatprep.subr.bf16.mxu0 0
    %3639 = vmatpush1.bf16.msra.mxu0 0
    %3640 = vmatprep.mubr.bf16.mxu0 0
    %3641 = vmatmul.mubr.bf16.gmra.mrb[0].mxu0 %v2921
    %v3642 = vpop.f32.mrb[0].mxu0
    %v3643 = vadd.f32 0.0, %v3642
    %v3644 = vpop.f32.mrb[0].mxu0
    %v3645 = vpop.f32.mrb[0].mxu0
    %v3646 = vadd.f32 0.0, %v3645
    %v3647 = vpop.f32.mrb[0].mxu0
    %3648 = vmatprep.mubr.bf16.mxu0 0
    %3649 = vmatmul.mubr.bf16.gmra.mrb[0].mxu0 %v2924
    %v3650 = vpop.f32.mrb[0].mxu0
    %v3651 = vadd.f32 0.0, %v3650
    %v3652 = vpop.f32.mrb[0].mxu0
    %v3653 = vpop.f32.mrb[0].mxu0
    %v3654 = vadd.f32 0.0, %v3653
    %v3655 = vpop.f32.mrb[0].mxu0
    %3656 = vmatprep.mubr.bf16.mxu0 0
    %3657 = vmatmul.mubr.bf16.gmra.mrb[0].mxu0 %v2927
    %v3658 = vpop.f32.mrb[0].mxu0
    %v3659 = vadd.f32 0.0, %v3658
    %v3660 = vpop.f32.mrb[0].mxu0
    %v3661 = vpop.f32.mrb[0].mxu0
    %v3662 = vadd.f32 0.0, %v3661
    %v3663 = vpop.f32.mrb[0].mxu0
    %3664 = vdwg.mxu0
    %v3669 = vunpack.c.l.b16 %v3519
    %v3670 = vunpack.c.l.b16 %v3520
    %v3671 = vunpack.c.l.b16 %v3521
    %v3672 = vunpack.c.l.b16 %v3522
    %v3673 = vpack.c.b16 %v3670, %v3669
    %v3674 = vpack.c.b16 %v3672, %v3671
    %3677 = vmatprep.subr.bf16.mxu0 0
    %3678 = vmatpush1.bf16.msra.mxu0 %v3673
    %3679 = vmatprep.subr.bf16.mxu0 0
    %3680 = vmatpush1.bf16.msra.mxu0 %v3674
    %3681 = vmatprep.subr.bf16.mxu0 0
    %3682 = vmatpush1.bf16.msra.mxu0 0
    %3683 = vmatprep.subr.bf16.mxu0 0
    %3684 = vmatpush1.bf16.msra.mxu0 0
    %3685 = vmatprep.subr.bf16.mxu0 0
    %3686 = vmatpush1.bf16.msra.mxu0 0
    %3687 = vmatprep.subr.bf16.mxu0 0
    %3688 = vmatpush1.bf16.msra.mxu0 0
    %3689 = vmatprep.subr.bf16.mxu0 0
    %3690 = vmatpush1.bf16.msra.mxu0 0
    %3691 = vmatprep.subr.bf16.mxu0 0
    %3692 = vmatpush1.bf16.msra.mxu0 0
    %3693 = vmatprep.subr.bf16.mxu0 0
    %3694 = vmatpush1.bf16.msra.mxu0 0
    %3695 = vmatprep.subr.bf16.mxu0 0
    %3696 = vmatpush1.bf16.msra.mxu0 0
    %3697 = vmatprep.subr.bf16.mxu0 0
    %3698 = vmatpush1.bf16.msra.mxu0 0
    %3699 = vmatprep.subr.bf16.mxu0 0
    %3700 = vmatpush1.bf16.msra.mxu0 0
    %3701 = vmatprep.subr.bf16.mxu0 0
    %3702 = vmatpush1.bf16.msra.mxu0 0
    %3703 = vmatprep.subr.bf16.mxu0 0
    %3704 = vmatpush1.bf16.msra.mxu0 0
    %3705 = vmatprep.subr.bf16.mxu0 0
    %3706 = vmatpush1.bf16.msra.mxu0 0
    %3707 = vmatprep.subr.bf16.mxu0 0
    %3708 = vmatpush1.bf16.msra.mxu0 0
    %3709 = vmatprep.mubr.bf16.mxu0 0
    %3710 = vmatmul.mubr.bf16.gmra.mrb[0].mxu0 %v2921
    %v3711 = vpop.f32.mrb[0].mxu0
    %v3712 = vadd.f32 0.0, %v3711
    %v3713 = vpop.f32.mrb[0].mxu0
    %v3714 = vpop.f32.mrb[0].mxu0
    %v3715 = vadd.f32 0.0, %v3714
    %v3716 = vpop.f32.mrb[0].mxu0
    %3717 = vmatprep.mubr.bf16.mxu0 0
    %3718 = vmatmul.mubr.bf16.gmra.mrb[0].mxu0 %v2924
    %v3719 = vpop.f32.mrb[0].mxu0
    %v3720 = vadd.f32 0.0, %v3719
    %v3721 = vpop.f32.mrb[0].mxu0
    %v3722 = vpop.f32.mrb[0].mxu0
    %v3723 = vadd.f32 0.0, %v3722
    %v3724 = vpop.f32.mrb[0].mxu0
    %3725 = vmatprep.mubr.bf16.mxu0 0
    %3726 = vmatmul.mubr.bf16.gmra.mrb[0].mxu0 %v2927
    %v3727 = vpop.f32.mrb[0].mxu0
    %v3728 = vadd.f32 0.0, %v3727
    %v3729 = vpop.f32.mrb[0].mxu0
    %v3730 = vpop.f32.mrb[0].mxu0
    %v3731 = vadd.f32 0.0, %v3730
    %v3732 = vpop.f32.mrb[0].mxu0
    %3733 = vdwg.mxu0
    %v3738 = vunpack.c.l.b16 %v3523
    %v3739 = vunpack.c.l.b16 %v3524
    %v3740 = vunpack.c.l.b16 %v3525
    %v3741 = vunpack.c.l.b16 %v3526
    %v3742 = vpack.c.b16 %v3739, %v3738
    %v3743 = vpack.c.b16 %v3741, %v3740
    %3746 = vmatprep.subr.bf16.mxu0 0
    %3747 = vmatpush1.bf16.msra.mxu0 %v3742
    %3748 = vmatprep.subr.bf16.mxu0 0
    %3749 = vmatpush1.bf16.msra.mxu0 %v3743
    %3750 = vmatprep.subr.bf16.mxu0 0
    %3751 = vmatpush1.bf16.msra.mxu0 0
    %3752 = vmatprep.subr.bf16.mxu0 0
    %3753 = vmatpush1.bf16.msra.mxu0 0
    %3754 = vmatprep.subr.bf16.mxu0 0
    %3755 = vmatpush1.bf16.msra.mxu0 0
    %3756 = vmatprep.subr.bf16.mxu0 0
    %3757 = vmatpush1.bf16.msra.mxu0 0
    %3758 = vmatprep.subr.bf16.mxu0 0
    %3759 = vmatpush1.bf16.msra.mxu0 0
    %3760 = vmatprep.subr.bf16.mxu0 0
    %3761 = vmatpush1.bf16.msra.mxu0 0
    %3762 = vmatprep.subr.bf16.mxu0 0
    %3763 = vmatpush1.bf16.msra.mxu0 0
    %3764 = vmatprep.subr.bf16.mxu0 0
    %3765 = vmatpush1.bf16.msra.mxu0 0
    %3766 = vmatprep.subr.bf16.mxu0 0
    %3767 = vmatpush1.bf16.msra.mxu0 0
    %3768 = vmatprep.subr.bf16.mxu0 0
    %3769 = vmatpush1.bf16.msra.mxu0 0
    %3770 = vmatprep.subr.bf16.mxu0 0
    %3771 = vmatpush1.bf16.msra.mxu0 0
    %3772 = vmatprep.subr.bf16.mxu0 0
    %3773 = vmatpush1.bf16.msra.mxu0 0
    %3774 = vmatprep.subr.bf16.mxu0 0
    %3775 = vmatpush1.bf16.msra.mxu0 0
    %3776 = vmatprep.subr.bf16.mxu0 0
    %3777 = vmatpush1.bf16.msra.mxu0 0
    %3778 = vmatprep.mubr.bf16.mxu0 0
    %3779 = vmatmul.mubr.bf16.gmra.mrb[0].mxu0 %v2921
    %v3780 = vpop.f32.mrb[0].mxu0
    %v3781 = vadd.f32 0.0, %v3780
    %v3782 = vpop.f32.mrb[0].mxu0
    %v3783 = vpop.f32.mrb[0].mxu0
    %v3784 = vadd.f32 0.0, %v3783
    %v3785 = vpop.f32.mrb[0].mxu0
    %3786 = vmatprep.mubr.bf16.mxu0 0
    %3787 = vmatmul.mubr.bf16.gmra.mrb[0].mxu0 %v2924
    %v3788 = vpop.f32.mrb[0].mxu0
    %v3789 = vadd.f32 0.0, %v3788
    %v3790 = vpop.f32.mrb[0].mxu0
    %v3791 = vpop.f32.mrb[0].mxu0
    %v3792 = vadd.f32 0.0, %v3791
    %v3793 = vpop.f32.mrb[0].mxu0
    %3794 = vmatprep.mubr.bf16.mxu0 0
    %3795 = vmatmul.mubr.bf16.gmra.mrb[0].mxu0 %v2927
    %v3796 = vpop.f32.mrb[0].mxu0
    %v3797 = vadd.f32 0.0, %v3796
    %v3798 = vpop.f32.mrb[0].mxu0
    %v3799 = vpop.f32.mrb[0].mxu0
    %v3800 = vadd.f32 0.0, %v3799
    %v3801 = vpop.f32.mrb[0].mxu0
    %3802 = vdwg.mxu0
    %v3803 = vpack.c.bf16 %v3577, %v3574
    %v3804 = vpack.c.bf16 %v3585, %v3582
    %v3805 = vpack.c.bf16 %v3593, %v3590
    %v3806 = vpack.c.bf16 %v3646, %v3643
    %v3807 = vpack.c.bf16 %v3654, %v3651
    %v3808 = vpack.c.bf16 %v3662, %v3659
    %v3809 = vpack.c.bf16 %v3715, %v3712
    %v3810 = vpack.c.bf16 %v3723, %v3720
    %v3811 = vpack.c.bf16 %v3731, %v3728
    %v3812 = vpack.c.bf16 %v3784, %v3781
    %v3813 = vpack.c.bf16 %v3792, %v3789
    %v3814 = vpack.c.bf16 %v3800, %v3797
    %v3816 = vsel %vm1224, %v3193, 0
    %v3819 = vsel %vm1224, %v3194, 0
    %v3822 = vsel %vm1224, %v3195, 0
    %v3825 = vsel %vm1224, %v3498, 0
    %v3828 = vsel %vm1224, %v3499, 0
    %v3831 = vsel %vm1224, %v3500, 0
    %3833 = vmatprep.subr.bf16.mxu0 0
    %3834 = vmatpush1.bf16.xpose.msra.mxu0 %v3825
    %3835 = vmatprep.subr.bf16.mxu0 0
    %3836 = vmatpush1.bf16.xpose.msra.mxu0 %v3828
    %3837 = vmatprep.subr.bf16.mxu0 0
    %3838 = vmatpush1.bf16.xpose.msra.mxu0 %v3831
    %3839 = vmatprep.subr.bf16.mxu0 0
    %3840 = vmatpush1.bf16.xpose.msra.mxu0 0
    %3841 = vmatprep.subr.bf16.mxu0 0
    %3842 = vmatpush1.bf16.xpose.msra.mxu0 0
    %3843 = vmatprep.subr.bf16.mxu0 0
    %3844 = vmatpush1.bf16.xpose.msra.mxu0 0
    %3845 = vmatprep.subr.bf16.mxu0 0
    %3846 = vmatpush1.bf16.xpose.msra.mxu0 0
    %3847 = vmatprep.subr.bf16.mxu0 0
    %3848 = vmatpush1.bf16.xpose.msra.mxu0 0
    %3849 = vmatprep.subr.bf16.mxu0 0
    %3850 = vmatpush1.bf16.xpose.msra.mxu0 0
    %3851 = vmatprep.subr.bf16.mxu0 0
    %3852 = vmatpush1.bf16.xpose.msra.mxu0 0
    %3853 = vmatprep.subr.bf16.mxu0 0
    %3854 = vmatpush1.bf16.xpose.msra.mxu0 0
    %3855 = vmatprep.subr.bf16.mxu0 0
    %3856 = vmatpush1.bf16.xpose.msra.mxu0 0
    %3857 = vmatprep.subr.bf16.mxu0 0
    %3858 = vmatpush1.bf16.xpose.msra.mxu0 0
    %3859 = vmatprep.subr.bf16.mxu0 0
    %3860 = vmatpush1.bf16.xpose.msra.mxu0 0
    %3861 = vmatprep.subr.bf16.mxu0 0
    %3862 = vmatpush1.bf16.xpose.msra.mxu0 0
    %3863 = vmatprep.subr.bf16.mxu0 0
    %3864 = vmatpush1.bf16.xpose.msra.mxu0 0
    %3865 = vmatprep.mubr.bf16.mxu0 0
    %3866 = vmatmul.mubr.bf16.gmra.mrb[0].mxu0 %v3816
    %v3867 = vpop.f32.mrb[0].mxu0
    %v3868 = vadd.f32 %v188, %v3867
    %v3869 = vpop.f32.mrb[0].mxu0
    %v3870 = vpop.f32.mrb[0].mxu0
    %v3871 = vadd.f32 %v189, %v3870
    %v3872 = vpop.f32.mrb[0].mxu0
    %3873 = vmatprep.mubr.bf16.mxu0 0
    %3874 = vmatmul.mubr.bf16.gmra.mrb[0].mxu0 %v3819
    %v3875 = vpop.f32.mrb[0].mxu0
    %v3876 = vadd.f32 %v190, %v3875
    %v3877 = vpop.f32.mrb[0].mxu0
    %v3878 = vpop.f32.mrb[0].mxu0
    %v3879 = vadd.f32 %v191, %v3878
    %v3880 = vpop.f32.mrb[0].mxu0
    %3881 = vmatprep.mubr.bf16.mxu0 0
    %3882 = vmatmul.mubr.bf16.gmra.mrb[0].mxu0 %v3822
    %v3883 = vpop.f32.mrb[0].mxu0
    %v3884 = vadd.f32 %v192, %v3883
    %v3885 = vpop.f32.mrb[0].mxu0
    %v3886 = vpop.f32.mrb[0].mxu0
    %v3887 = vadd.f32 %v193, %v3886
    %v3888 = vpop.f32.mrb[0].mxu0
    %3889 = vdwg.mxu0
    %v3891 = vsel %vm1224, %v3196, 0
    %v3894 = vsel %vm1224, %v3197, 0
    %v3897 = vsel %vm1224, %v3198, 0
    %v3900 = vsel %vm1224, %v3501, 0
    %v3903 = vsel %vm1224, %v3502, 0
    %v3906 = vsel %vm1224, %v3503, 0
    %3908 = vmatprep.subr.bf16.mxu0 0
    %3909 = vmatpush1.bf16.xpose.msra.mxu0 %v3900
    %3910 = vmatprep.subr.bf16.mxu0 0
    %3911 = vmatpush1.bf16.xpose.msra.mxu0 %v3903
    %3912 = vmatprep.subr.bf16.mxu0 0
    %3913 = vmatpush1.bf16.xpose.msra.mxu0 %v3906
    %3914 = vmatprep.subr.bf16.mxu0 0
    %3915 = vmatpush1.bf16.xpose.msra.mxu0 0
    %3916 = vmatprep.subr.bf16.mxu0 0
    %3917 = vmatpush1.bf16.xpose.msra.mxu0 0
    %3918 = vmatprep.subr.bf16.mxu0 0
    %3919 = vmatpush1.bf16.xpose.msra.mxu0 0
    %3920 = vmatprep.subr.bf16.mxu0 0
    %3921 = vmatpush1.bf16.xpose.msra.mxu0 0
    %3922 = vmatprep.subr.bf16.mxu0 0
    %3923 = vmatpush1.bf16.xpose.msra.mxu0 0
    %3924 = vmatprep.subr.bf16.mxu0 0
    %3925 = vmatpush1.bf16.xpose.msra.mxu0 0
    %3926 = vmatprep.subr.bf16.mxu0 0
    %3927 = vmatpush1.bf16.xpose.msra.mxu0 0
    %3928 = vmatprep.subr.bf16.mxu0 0
    %3929 = vmatpush1.bf16.xpose.msra.mxu0 0
    %3930 = vmatprep.subr.bf16.mxu0 0
    %3931 = vmatpush1.bf16.xpose.msra.mxu0 0
    %3932 = vmatprep.subr.bf16.mxu0 0
    %3933 = vmatpush1.bf16.xpose.msra.mxu0 0
    %3934 = vmatprep.subr.bf16.mxu0 0
    %3935 = vmatpush1.bf16.xpose.msra.mxu0 0
    %3936 = vmatprep.subr.bf16.mxu0 0
    %3937 = vmatpush1.bf16.xpose.msra.mxu0 0
    %3938 = vmatprep.subr.bf16.mxu0 0
    %3939 = vmatpush1.bf16.xpose.msra.mxu0 0
    %3940 = vmatprep.mubr.bf16.mxu0 0
    %3941 = vmatmul.mubr.bf16.gmra.mrb[0].mxu0 %v3891
    %v3942 = vpop.f32.mrb[0].mxu0
    %v3943 = vadd.f32 %v188, %v3942
    %v3944 = vpop.f32.mrb[0].mxu0
    %v3945 = vpop.f32.mrb[0].mxu0
    %v3946 = vadd.f32 %v189, %v3945
    %v3947 = vpop.f32.mrb[0].mxu0
    %3948 = vmatprep.mubr.bf16.mxu0 0
    %3949 = vmatmul.mubr.bf16.gmra.mrb[0].mxu0 %v3894
    %v3950 = vpop.f32.mrb[0].mxu0
    %v3951 = vadd.f32 %v190, %v3950
    %v3952 = vpop.f32.mrb[0].mxu0
    %v3953 = vpop.f32.mrb[0].mxu0
    %v3954 = vadd.f32 %v191, %v3953
    %v3955 = vpop.f32.mrb[0].mxu0
    %3956 = vmatprep.mubr.bf16.mxu0 0
    %3957 = vmatmul.mubr.bf16.gmra.mrb[0].mxu0 %v3897
    %v3958 = vpop.f32.mrb[0].mxu0
    %v3959 = vadd.f32 %v192, %v3958
    %v3960 = vpop.f32.mrb[0].mxu0
    %v3961 = vpop.f32.mrb[0].mxu0
    %v3962 = vadd.f32 %v193, %v3961
    %v3963 = vpop.f32.mrb[0].mxu0
    %3964 = vdwg.mxu0
    %v3966 = vsel %vm1224, %v3199, 0
    %v3969 = vsel %vm1224, %v3200, 0
    %v3972 = vsel %vm1224, %v3201, 0
    %v3975 = vsel %vm1224, %v3504, 0
    %v3978 = vsel %vm1224, %v3505, 0
    %v3981 = vsel %vm1224, %v3506, 0
    %3983 = vmatprep.subr.bf16.mxu0 0
    %3984 = vmatpush1.bf16.xpose.msra.mxu0 %v3975
    %3985 = vmatprep.subr.bf16.mxu0 0
    %3986 = vmatpush1.bf16.xpose.msra.mxu0 %v3978
    %3987 = vmatprep.subr.bf16.mxu0 0
    %3988 = vmatpush1.bf16.xpose.msra.mxu0 %v3981
    %3989 = vmatprep.subr.bf16.mxu0 0
    %3990 = vmatpush1.bf16.xpose.msra.mxu0 0
    %3991 = vmatprep.subr.bf16.mxu0 0
    %3992 = vmatpush1.bf16.xpose.msra.mxu0 0
    %3993 = vmatprep.subr.bf16.mxu0 0
    %3994 = vmatpush1.bf16.xpose.msra.mxu0 0
    %3995 = vmatprep.subr.bf16.mxu0 0
    %3996 = vmatpush1.bf16.xpose.msra.mxu0 0
    %3997 = vmatprep.subr.bf16.mxu0 0
    %3998 = vmatpush1.bf16.xpose.msra.mxu0 0
    %3999 = vmatprep.subr.bf16.mxu0 0
    %4000 = vmatpush1.bf16.xpose.msra.mxu0 0
    %4001 = vmatprep.subr.bf16.mxu0 0
    %4002 = vmatpush1.bf16.xpose.msra.mxu0 0
    %4003 = vmatprep.subr.bf16.mxu0 0
    %4004 = vmatpush1.bf16.xpose.msra.mxu0 0
    %4005 = vmatprep.subr.bf16.mxu0 0
    %4006 = vmatpush1.bf16.xpose.msra.mxu0 0
    %4007 = vmatprep.subr.bf16.mxu0 0
    %4008 = vmatpush1.bf16.xpose.msra.mxu0 0
    %4009 = vmatprep.subr.bf16.mxu0 0
    %4010 = vmatpush1.bf16.xpose.msra.mxu0 0
    %4011 = vmatprep.subr.bf16.mxu0 0
    %4012 = vmatpush1.bf16.xpose.msra.mxu0 0
    %4013 = vmatprep.subr.bf16.mxu0 0
    %4014 = vmatpush1.bf16.xpose.msra.mxu0 0
    %4015 = vmatprep.mubr.bf16.mxu0 0
    %4016 = vmatmul.mubr.bf16.gmra.mrb[0].mxu0 %v3966
    %v4017 = vpop.f32.mrb[0].mxu0
    %v4018 = vadd.f32 %v188, %v4017
    %v4019 = vpop.f32.mrb[0].mxu0
    %v4020 = vpop.f32.mrb[0].mxu0
    %v4021 = vadd.f32 %v189, %v4020
    %v4022 = vpop.f32.mrb[0].mxu0
    %4023 = vmatprep.mubr.bf16.mxu0 0
    %4024 = vmatmul.mubr.bf16.gmra.mrb[0].mxu0 %v3969
    %v4025 = vpop.f32.mrb[0].mxu0
    %v4026 = vadd.f32 %v190, %v4025
    %v4027 = vpop.f32.mrb[0].mxu0
    %v4028 = vpop.f32.mrb[0].mxu0
    %v4029 = vadd.f32 %v191, %v4028
    %v4030 = vpop.f32.mrb[0].mxu0
    %4031 = vmatprep.mubr.bf16.mxu0 0
    %4032 = vmatmul.mubr.bf16.gmra.mrb[0].mxu0 %v3972
    %v4033 = vpop.f32.mrb[0].mxu0
    %v4034 = vadd.f32 %v192, %v4033
    %v4035 = vpop.f32.mrb[0].mxu0
    %v4036 = vpop.f32.mrb[0].mxu0
    %v4037 = vadd.f32 %v193, %v4036
    %v4038 = vpop.f32.mrb[0].mxu0
    %4039 = vdwg.mxu0
    %v4041 = vsel %vm1224, %v3202, 0
    %v4044 = vsel %vm1224, %v3203, 0
    %v4047 = vsel %vm1224, %v3204, 0
    %v4050 = vsel %vm1224, %v3507, 0
    %v4053 = vsel %vm1224, %v3508, 0
    %v4056 = vsel %vm1224, %v3509, 0
    %4058 = vmatprep.subr.bf16.mxu0 0
    %4059 = vmatpush1.bf16.xpose.msra.mxu0 %v4050
    %4060 = vmatprep.subr.bf16.mxu0 0
    %4061 = vmatpush1.bf16.xpose.msra.mxu0 %v4053
    %4062 = vmatprep.subr.bf16.mxu0 0
    %4063 = vmatpush1.bf16.xpose.msra.mxu0 %v4056
    %4064 = vmatprep.subr.bf16.mxu0 0
    %4065 = vmatpush1.bf16.xpose.msra.mxu0 0
    %4066 = vmatprep.subr.bf16.mxu0 0
    %4067 = vmatpush1.bf16.xpose.msra.mxu0 0
    %4068 = vmatprep.subr.bf16.mxu0 0
    %4069 = vmatpush1.bf16.xpose.msra.mxu0 0
    %4070 = vmatprep.subr.bf16.mxu0 0
    %4071 = vmatpush1.bf16.xpose.msra.mxu0 0
    %4072 = vmatprep.subr.bf16.mxu0 0
    %4073 = vmatpush1.bf16.xpose.msra.mxu0 0
    %4074 = vmatprep.subr.bf16.mxu0 0
    %4075 = vmatpush1.bf16.xpose.msra.mxu0 0
    %4076 = vmatprep.subr.bf16.mxu0 0
    %4077 = vmatpush1.bf16.xpose.msra.mxu0 0
    %4078 = vmatprep.subr.bf16.mxu0 0
    %4079 = vmatpush1.bf16.xpose.msra.mxu0 0
    %4080 = vmatprep.subr.bf16.mxu0 0
    %4081 = vmatpush1.bf16.xpose.msra.mxu0 0
    %4082 = vmatprep.subr.bf16.mxu0 0
    %4083 = vmatpush1.bf16.xpose.msra.mxu0 0
    %4084 = vmatprep.subr.bf16.mxu0 0
    %4085 = vmatpush1.bf16.xpose.msra.mxu0 0
    %4086 = vmatprep.subr.bf16.mxu0 0
    %4087 = vmatpush1.bf16.xpose.msra.mxu0 0
    %4088 = vmatprep.subr.bf16.mxu0 0
    %4089 = vmatpush1.bf16.xpose.msra.mxu0 0
    %4090 = vmatprep.mubr.bf16.mxu0 0
    %4091 = vmatmul.mubr.bf16.gmra.mrb[0].mxu0 %v4041
    %v4092 = vpop.f32.mrb[0].mxu0
    %v4093 = vadd.f32 %v188, %v4092
    %v4094 = vpop.f32.mrb[0].mxu0
    %v4095 = vpop.f32.mrb[0].mxu0
    %v4096 = vadd.f32 %v189, %v4095
    %v4097 = vpop.f32.mrb[0].mxu0
    %4098 = vmatprep.mubr.bf16.mxu0 0
    %4099 = vmatmul.mubr.bf16.gmra.mrb[0].mxu0 %v4044
    %v4100 = vpop.f32.mrb[0].mxu0
    %v4101 = vadd.f32 %v190, %v4100
    %v4102 = vpop.f32.mrb[0].mxu0
    %v4103 = vpop.f32.mrb[0].mxu0
    %v4104 = vadd.f32 %v191, %v4103
    %v4105 = vpop.f32.mrb[0].mxu0
    %4106 = vmatprep.mubr.bf16.mxu0 0
    %4107 = vmatmul.mubr.bf16.gmra.mrb[0].mxu0 %v4047
    %v4108 = vpop.f32.mrb[0].mxu0
    %v4109 = vadd.f32 %v192, %v4108
    %v4110 = vpop.f32.mrb[0].mxu0
    %v4111 = vpop.f32.mrb[0].mxu0
    %v4112 = vadd.f32 %v193, %v4111
    %v4113 = vpop.f32.mrb[0].mxu0
    %4114 = vdwg.mxu0
    %v4115 = vsel %vm121, %v3868, -inf
    %4116 = vmax.xlane.f32.xlu0 %v4115
    %v4117 = vpop.xlane.xlu0 %4116
    %v4118 = vsel %vm121, %v3871, -inf
    %4119 = vmax.xlane.f32.xlu0 %v4118
    %v4120 = vpop.xlane.xlu0 %4119
    %v4121 = vsel %vm121, %v3876, -inf
    %4122 = vmax.xlane.f32.xlu0 %v4121
    %v4123 = vpop.xlane.xlu0 %4122
    %v4124 = vsel %vm121, %v3879, -inf
    %4125 = vmax.xlane.f32.xlu0 %v4124
    %v4126 = vpop.xlane.xlu0 %4125
    %v4127 = vsel %vm121, %v3884, -inf
    %4128 = vmax.xlane.f32.xlu0 %v4127
    %v4129 = vpop.xlane.xlu0 %4128
    %v4130 = vsel %vm121, %v3887, -inf
    %4131 = vmax.xlane.f32.xlu0 %v4130
    %v4132 = vpop.xlane.xlu0 %4131
    %v4133 = vsel %vm121, %v3943, -inf
    %4134 = vmax.xlane.f32.xlu0 %v4133
    %v4135 = vpop.xlane.xlu0 %4134
    %v4136 = vsel %vm121, %v3946, -inf
    %4137 = vmax.xlane.f32.xlu0 %v4136
    %v4138 = vpop.xlane.xlu0 %4137
    %v4139 = vsel %vm121, %v3951, -inf
    %4140 = vmax.xlane.f32.xlu0 %v4139
    %v4141 = vpop.xlane.xlu0 %4140
    %v4142 = vsel %vm121, %v3954, -inf
    %4143 = vmax.xlane.f32.xlu0 %v4142
    %v4144 = vpop.xlane.xlu0 %4143
    %v4145 = vsel %vm121, %v3959, -inf
    %4146 = vmax.xlane.f32.xlu0 %v4145
    %v4147 = vpop.xlane.xlu0 %4146
    %v4148 = vsel %vm121, %v3962, -inf
    %4149 = vmax.xlane.f32.xlu0 %v4148
    %v4150 = vpop.xlane.xlu0 %4149
    %v4151 = vsel %vm121, %v4018, -inf
    %4152 = vmax.xlane.f32.xlu0 %v4151
    %v4153 = vpop.xlane.xlu0 %4152
    %v4154 = vsel %vm121, %v4021, -inf
    %4155 = vmax.xlane.f32.xlu0 %v4154
    %v4156 = vpop.xlane.xlu0 %4155
    %v4157 = vsel %vm121, %v4026, -inf
    %4158 = vmax.xlane.f32.xlu0 %v4157
    %v4159 = vpop.xlane.xlu0 %4158
    %v4160 = vsel %vm121, %v4029, -inf
    %4161 = vmax.xlane.f32.xlu0 %v4160
    %v4162 = vpop.xlane.xlu0 %4161
    %v4163 = vsel %vm121, %v4034, -inf
    %4164 = vmax.xlane.f32.xlu0 %v4163
    %v4165 = vpop.xlane.xlu0 %4164
    %v4166 = vsel %vm121, %v4037, -inf
    %4167 = vmax.xlane.f32.xlu0 %v4166
    %v4168 = vpop.xlane.xlu0 %4167
    %v4169 = vsel %vm121, %v4093, -inf
    %4170 = vmax.xlane.f32.xlu0 %v4169
    %v4171 = vpop.xlane.xlu0 %4170
    %v4172 = vsel %vm121, %v4096, -inf
    %4173 = vmax.xlane.f32.xlu0 %v4172
    %v4174 = vpop.xlane.xlu0 %4173
    %v4175 = vsel %vm121, %v4101, -inf
    %4176 = vmax.xlane.f32.xlu0 %v4175
    %v4177 = vpop.xlane.xlu0 %4176
    %v4178 = vsel %vm121, %v4104, -inf
    %4179 = vmax.xlane.f32.xlu0 %v4178
    %v4180 = vpop.xlane.xlu0 %4179
    %v4181 = vsel %vm121, %v4109, -inf
    %4182 = vmax.xlane.f32.xlu0 %v4181
    %v4183 = vpop.xlane.xlu0 %4182
    %v4184 = vsel %vm121, %v4112, -inf
    %4185 = vmax.xlane.f32.xlu0 %v4184
    %v4186 = vpop.xlane.xlu0 %4185
    %v4187 = vsub.f32 %v3868, %v4117
    %v4188 = vsub.f32 %v3871, %v4120
    %v4189 = vsub.f32 %v3876, %v4123
    %v4190 = vsub.f32 %v3879, %v4126
    %v4191 = vsub.f32 %v3884, %v4129
    %v4192 = vsub.f32 %v3887, %v4132
    %v4193 = vsub.f32 %v3943, %v4135
    %v4194 = vsub.f32 %v3946, %v4138
    %v4195 = vsub.f32 %v3951, %v4141
    %v4196 = vsub.f32 %v3954, %v4144
    %v4197 = vsub.f32 %v3959, %v4147
    %v4198 = vsub.f32 %v3962, %v4150
    %v4199 = vsub.f32 %v4018, %v4153
    %v4200 = vsub.f32 %v4021, %v4156
    %v4201 = vsub.f32 %v4026, %v4159
    %v4202 = vsub.f32 %v4029, %v4162
    %v4203 = vsub.f32 %v4034, %v4165
    %v4204 = vsub.f32 %v4037, %v4168
    %v4205 = vsub.f32 %v4093, %v4171
    %v4206 = vsub.f32 %v4096, %v4174
    %v4207 = vsub.f32 %v4101, %v4177
    %v4208 = vsub.f32 %v4104, %v4180
    %v4209 = vsub.f32 %v4109, %v4183
    %v4210 = vsub.f32 %v4112, %v4186
    %v4211 = vmul.f32 %v4187, 1.442695
    %v4212 = vpow.pop %v4211
    %v4213 = vmul.f32 %v4188, 1.442695
    %v4214 = vpow.pop %v4213
    %v4215 = vmul.f32 %v4189, 1.442695
    %v4216 = vpow.pop %v4215
    %v4217 = vmul.f32 %v4190, 1.442695
    %v4218 = vpow.pop %v4217
    %v4219 = vmul.f32 %v4191, 1.442695
    %v4220 = vpow.pop %v4219
    %v4221 = vmul.f32 %v4192, 1.442695
    %v4222 = vpow.pop %v4221
    %v4223 = vmul.f32 %v4193, 1.442695
    %v4224 = vpow.pop %v4223
    %v4225 = vmul.f32 %v4194, 1.442695
    %v4226 = vpow.pop %v4225
    %v4227 = vmul.f32 %v4195, 1.442695
    %v4228 = vpow.pop %v4227
    %v4229 = vmul.f32 %v4196, 1.442695
    %v4230 = vpow.pop %v4229
    %v4231 = vmul.f32 %v4197, 1.442695
    %v4232 = vpow.pop %v4231
    %v4233 = vmul.f32 %v4198, 1.442695
    %v4234 = vpow.pop %v4233
    %v4235 = vmul.f32 %v4199, 1.442695
    %v4236 = vpow.pop %v4235
    %v4237 = vmul.f32 %v4200, 1.442695
    %v4238 = vpow.pop %v4237
    %v4239 = vmul.f32 %v4201, 1.442695
    %v4240 = vpow.pop %v4239
    %v4241 = vmul.f32 %v4202, 1.442695
    %v4242 = vpow.pop %v4241
    %v4243 = vmul.f32 %v4203, 1.442695
    %v4244 = vpow.pop %v4243
    %v4245 = vmul.f32 %v4204, 1.442695
    %v4246 = vpow.pop %v4245
    %v4247 = vmul.f32 %v4205, 1.442695
    %v4248 = vpow.pop %v4247
    %v4249 = vmul.f32 %v4206, 1.442695
    %v4250 = vpow.pop %v4249
    %v4251 = vmul.f32 %v4207, 1.442695
    %v4252 = vpow.pop %v4251
    %v4253 = vmul.f32 %v4208, 1.442695
    %v4254 = vpow.pop %v4253
    %v4255 = vmul.f32 %v4209, 1.442695
    %v4256 = vpow.pop %v4255
    %v4257 = vmul.f32 %v4210, 1.442695
    %v4258 = vpow.pop %v4257
    %v4259 = vsel %vm121, %v4212, 0.0
    %4260 = vadd.xlane.f32.xlu0 %v4259
    %v4261 = vpop.xlane.xlu0 %4260
    %v4262 = vsel %vm121, %v4214, 0.0
    %4263 = vadd.xlane.f32.xlu0 %v4262
    %v4264 = vpop.xlane.xlu0 %4263
    %v4265 = vsel %vm121, %v4216, 0.0
    %4266 = vadd.xlane.f32.xlu0 %v4265
    %v4267 = vpop.xlane.xlu0 %4266
    %v4268 = vsel %vm121, %v4218, 0.0
    %4269 = vadd.xlane.f32.xlu0 %v4268
    %v4270 = vpop.xlane.xlu0 %4269
    %v4271 = vsel %vm121, %v4220, 0.0
    %4272 = vadd.xlane.f32.xlu0 %v4271
    %v4273 = vpop.xlane.xlu0 %4272
    %v4274 = vsel %vm121, %v4222, 0.0
    %4275 = vadd.xlane.f32.xlu0 %v4274
    %v4276 = vpop.xlane.xlu0 %4275
    %v4277 = vsel %vm121, %v4224, 0.0
    %4278 = vadd.xlane.f32.xlu0 %v4277
    %v4279 = vpop.xlane.xlu0 %4278
    %v4280 = vsel %vm121, %v4226, 0.0
    %4281 = vadd.xlane.f32.xlu0 %v4280
    %v4282 = vpop.xlane.xlu0 %4281
    %v4283 = vsel %vm121, %v4228, 0.0
    %4284 = vadd.xlane.f32.xlu0 %v4283
    %v4285 = vpop.xlane.xlu0 %4284
    %v4286 = vsel %vm121, %v4230, 0.0
    %4287 = vadd.xlane.f32.xlu0 %v4286
    %v4288 = vpop.xlane.xlu0 %4287
    %v4289 = vsel %vm121, %v4232, 0.0
    %4290 = vadd.xlane.f32.xlu0 %v4289
    %v4291 = vpop.xlane.xlu0 %4290
    %v4292 = vsel %vm121, %v4234, 0.0
    %4293 = vadd.xlane.f32.xlu0 %v4292
    %v4294 = vpop.xlane.xlu0 %4293
    %v4295 = vsel %vm121, %v4236, 0.0
    %4296 = vadd.xlane.f32.xlu0 %v4295
    %v4297 = vpop.xlane.xlu0 %4296
    %v4298 = vsel %vm121, %v4238, 0.0
    %4299 = vadd.xlane.f32.xlu0 %v4298
    %v4300 = vpop.xlane.xlu0 %4299
    %v4301 = vsel %vm121, %v4240, 0.0
    %4302 = vadd.xlane.f32.xlu0 %v4301
    %v4303 = vpop.xlane.xlu0 %4302
    %v4304 = vsel %vm121, %v4242, 0.0
    %4305 = vadd.xlane.f32.xlu0 %v4304
    %v4306 = vpop.xlane.xlu0 %4305
    %v4307 = vsel %vm121, %v4244, 0.0
    %4308 = vadd.xlane.f32.xlu0 %v4307
    %v4309 = vpop.xlane.xlu0 %4308
    %v4310 = vsel %vm121, %v4246, 0.0
    %4311 = vadd.xlane.f32.xlu0 %v4310
    %v4312 = vpop.xlane.xlu0 %4311
    %v4313 = vsel %vm121, %v4248, 0.0
    %4314 = vadd.xlane.f32.xlu0 %v4313
    %v4315 = vpop.xlane.xlu0 %4314
    %v4316 = vsel %vm121, %v4250, 0.0
    %4317 = vadd.xlane.f32.xlu0 %v4316
    %v4318 = vpop.xlane.xlu0 %4317
    %v4319 = vsel %vm121, %v4252, 0.0
    %4320 = vadd.xlane.f32.xlu0 %v4319
    %v4321 = vpop.xlane.xlu0 %4320
    %v4322 = vsel %vm121, %v4254, 0.0
    %4323 = vadd.xlane.f32.xlu0 %v4322
    %v4324 = vpop.xlane.xlu0 %4323
    %v4325 = vsel %vm121, %v4256, 0.0
    %4326 = vadd.xlane.f32.xlu0 %v4325
    %v4327 = vpop.xlane.xlu0 %4326
    %v4328 = vsel %vm121, %v4258, 0.0
    %4329 = vadd.xlane.f32.xlu0 %v4328
    %v4330 = vpop.xlane.xlu0 %4329
    %v4331 = vrcp.pop %v4261
    %v4332 = vmul.f32 %v4212, %v4331
    %v4333 = vrcp.pop %v4264
    %v4334 = vmul.f32 %v4214, %v4333
    %v4335 = vrcp.pop %v4267
    %v4336 = vmul.f32 %v4216, %v4335
    %v4337 = vrcp.pop %v4270
    %v4338 = vmul.f32 %v4218, %v4337
    %v4339 = vrcp.pop %v4273
    %v4340 = vmul.f32 %v4220, %v4339
    %v4341 = vrcp.pop %v4276
    %v4342 = vmul.f32 %v4222, %v4341
    %v4343 = vrcp.pop %v4279
    %v4344 = vmul.f32 %v4224, %v4343
    %v4345 = vrcp.pop %v4282
    %v4346 = vmul.f32 %v4226, %v4345
    %v4347 = vrcp.pop %v4285
    %v4348 = vmul.f32 %v4228, %v4347
    %v4349 = vrcp.pop %v4288
    %v4350 = vmul.f32 %v4230, %v4349
    %v4351 = vrcp.pop %v4291
    %v4352 = vmul.f32 %v4232, %v4351
    %v4353 = vrcp.pop %v4294
    %v4354 = vmul.f32 %v4234, %v4353
    %v4355 = vrcp.pop %v4297
    %v4356 = vmul.f32 %v4236, %v4355
    %v4357 = vrcp.pop %v4300
    %v4358 = vmul.f32 %v4238, %v4357
    %v4359 = vrcp.pop %v4303
    %v4360 = vmul.f32 %v4240, %v4359
    %v4361 = vrcp.pop %v4306
    %v4362 = vmul.f32 %v4242, %v4361
    %v4363 = vrcp.pop %v4309
    %v4364 = vmul.f32 %v4244, %v4363
    %v4365 = vrcp.pop %v4312
    %v4366 = vmul.f32 %v4246, %v4365
    %v4367 = vrcp.pop %v4315
    %v4368 = vmul.f32 %v4248, %v4367
    %v4369 = vrcp.pop %v4318
    %v4370 = vmul.f32 %v4250, %v4369
    %v4371 = vrcp.pop %v4321
    %v4372 = vmul.f32 %v4252, %v4371
    %v4373 = vrcp.pop %v4324
    %v4374 = vmul.f32 %v4254, %v4373
    %v4375 = vrcp.pop %v4327
    %v4376 = vmul.f32 %v4256, %v4375
    %v4377 = vrcp.pop %v4330
    %v4378 = vmul.f32 %v4258, %v4377
    %v4379 = vpack.c.bf16 %v4334, %v4332
    %v4380 = vpack.c.bf16 %v4338, %v4336
    %v4381 = vpack.c.bf16 %v4342, %v4340
    %v4382 = vpack.c.bf16 %v4346, %v4344
    %v4383 = vpack.c.bf16 %v4350, %v4348
    %v4384 = vpack.c.bf16 %v4354, %v4352
    %v4385 = vpack.c.bf16 %v4358, %v4356
    %v4386 = vpack.c.bf16 %v4362, %v4360
    %v4387 = vpack.c.bf16 %v4366, %v4364
    %v4388 = vpack.c.bf16 %v4370, %v4368
    %v4389 = vpack.c.bf16 %v4374, %v4372
    %v4390 = vpack.c.bf16 %v4378, %v4376
    %v4392 = vsel %vm121, %v4379, 0
    %v4395 = vsel %vm121, %v4380, 0
    %v4398 = vsel %vm121, %v4381, 0
    %4400 = vmatprep.subr.bf16.mxu0 0
    %4401 = vmatpush1.bf16.msra.mxu0 %v3803
    %4402 = vmatprep.subr.bf16.mxu0 0
    %4403 = vmatpush1.bf16.msra.mxu0 %v3804
    %4404 = vmatprep.subr.bf16.mxu0 0
    %4405 = vmatpush1.bf16.msra.mxu0 %v3805
    %4406 = vmatprep.subr.bf16.mxu0 0
    %4407 = vmatpush1.bf16.msra.mxu0 0
    %4408 = vmatprep.subr.bf16.mxu0 0
    %4409 = vmatpush1.bf16.msra.mxu0 0
    %4410 = vmatprep.subr.bf16.mxu0 0
    %4411 = vmatpush1.bf16.msra.mxu0 0
    %4412 = vmatprep.subr.bf16.mxu0 0
    %4413 = vmatpush1.bf16.msra.mxu0 0
    %4414 = vmatprep.subr.bf16.mxu0 0
    %4415 = vmatpush1.bf16.msra.mxu0 0
    %4416 = vmatprep.subr.bf16.mxu0 0
    %4417 = vmatpush1.bf16.msra.mxu0 0
    %4418 = vmatprep.subr.bf16.mxu0 0
    %4419 = vmatpush1.bf16.msra.mxu0 0
    %4420 = vmatprep.subr.bf16.mxu0 0
    %4421 = vmatpush1.bf16.msra.mxu0 0
    %4422 = vmatprep.subr.bf16.mxu0 0
    %4423 = vmatpush1.bf16.msra.mxu0 0
    %4424 = vmatprep.subr.bf16.mxu0 0
    %4425 = vmatpush1.bf16.msra.mxu0 0
    %4426 = vmatprep.subr.bf16.mxu0 0
    %4427 = vmatpush1.bf16.msra.mxu0 0
    %4428 = vmatprep.subr.bf16.mxu0 0
    %4429 = vmatpush1.bf16.msra.mxu0 0
    %4430 = vmatprep.subr.bf16.mxu0 0
    %4431 = vmatpush1.bf16.msra.mxu0 0
    %4432 = vmatprep.mubr.bf16.mxu0 0
    %4433 = vmatmul.mubr.bf16.gmra.mrb[0].mxu0 %v4392
    %v4434 = vpop.f32.mrb[0].mxu0
    %v4435 = vadd.f32 0.0, %v4434
    %v4436 = vpop.f32.mrb[0].mxu0
    %v4437 = vpop.f32.mrb[0].mxu0
    %v4438 = vadd.f32 0.0, %v4437
    %v4439 = vpop.f32.mrb[0].mxu0
    %4440 = vmatprep.mubr.bf16.mxu0 0
    %4441 = vmatmul.mubr.bf16.gmra.mrb[0].mxu0 %v4395
    %v4442 = vpop.f32.mrb[0].mxu0
    %v4443 = vadd.f32 0.0, %v4442
    %v4444 = vpop.f32.mrb[0].mxu0
    %v4445 = vpop.f32.mrb[0].mxu0
    %v4446 = vadd.f32 0.0, %v4445
    %v4447 = vpop.f32.mrb[0].mxu0
    %4448 = vmatprep.mubr.bf16.mxu0 0
    %4449 = vmatmul.mubr.bf16.gmra.mrb[0].mxu0 %v4398
    %v4450 = vpop.f32.mrb[0].mxu0
    %v4451 = vadd.f32 0.0, %v4450
    %v4452 = vpop.f32.mrb[0].mxu0
    %v4453 = vpop.f32.mrb[0].mxu0
    %v4454 = vadd.f32 0.0, %v4453
    %v4455 = vpop.f32.mrb[0].mxu0
    %4456 = vdwg.mxu0
    %v4458 = vsel %vm121, %v4382, 0
    %v4461 = vsel %vm121, %v4383, 0
    %v4464 = vsel %vm121, %v4384, 0
    %4466 = vmatprep.subr.bf16.mxu0 0
    %4467 = vmatpush1.bf16.msra.mxu0 %v3806
    %4468 = vmatprep.subr.bf16.mxu0 0
    %4469 = vmatpush1.bf16.msra.mxu0 %v3807
    %4470 = vmatprep.subr.bf16.mxu0 0
    %4471 = vmatpush1.bf16.msra.mxu0 %v3808
    %4472 = vmatprep.subr.bf16.mxu0 0
    %4473 = vmatpush1.bf16.msra.mxu0 0
    %4474 = vmatprep.subr.bf16.mxu0 0
    %4475 = vmatpush1.bf16.msra.mxu0 0
    %4476 = vmatprep.subr.bf16.mxu0 0
    %4477 = vmatpush1.bf16.msra.mxu0 0
    %4478 = vmatprep.subr.bf16.mxu0 0
    %4479 = vmatpush1.bf16.msra.mxu0 0
    %4480 = vmatprep.subr.bf16.mxu0 0
    %4481 = vmatpush1.bf16.msra.mxu0 0
    %4482 = vmatprep.subr.bf16.mxu0 0
    %4483 = vmatpush1.bf16.msra.mxu0 0
    %4484 = vmatprep.subr.bf16.mxu0 0
    %4485 = vmatpush1.bf16.msra.mxu0 0
    %4486 = vmatprep.subr.bf16.mxu0 0
    %4487 = vmatpush1.bf16.msra.mxu0 0
    %4488 = vmatprep.subr.bf16.mxu0 0
    %4489 = vmatpush1.bf16.msra.mxu0 0
    %4490 = vmatprep.subr.bf16.mxu0 0
    %4491 = vmatpush1.bf16.msra.mxu0 0
    %4492 = vmatprep.subr.bf16.mxu0 0
    %4493 = vmatpush1.bf16.msra.mxu0 0
    %4494 = vmatprep.subr.bf16.mxu0 0
    %4495 = vmatpush1.bf16.msra.mxu0 0
    %4496 = vmatprep.subr.bf16.mxu0 0
    %4497 = vmatpush1.bf16.msra.mxu0 0
    %4498 = vmatprep.mubr.bf16.mxu0 0
    %4499 = vmatmul.mubr.bf16.gmra.mrb[0].mxu0 %v4458
    %v4500 = vpop.f32.mrb[0].mxu0
    %v4501 = vadd.f32 0.0, %v4500
    %v4502 = vpop.f32.mrb[0].mxu0
    %v4503 = vpop.f32.mrb[0].mxu0
    %v4504 = vadd.f32 0.0, %v4503
    %v4505 = vpop.f32.mrb[0].mxu0
    %4506 = vmatprep.mubr.bf16.mxu0 0
    %4507 = vmatmul.mubr.bf16.gmra.mrb[0].mxu0 %v4461
    %v4508 = vpop.f32.mrb[0].mxu0
    %v4509 = vadd.f32 0.0, %v4508
    %v4510 = vpop.f32.mrb[0].mxu0
    %v4511 = vpop.f32.mrb[0].mxu0
    %v4512 = vadd.f32 0.0, %v4511
    %v4513 = vpop.f32.mrb[0].mxu0
    %4514 = vmatprep.mubr.bf16.mxu0 0
    %4515 = vmatmul.mubr.bf16.gmra.mrb[0].mxu0 %v4464
    %v4516 = vpop.f32.mrb[0].mxu0
    %v4517 = vadd.f32 0.0, %v4516
    %v4518 = vpop.f32.mrb[0].mxu0
    %v4519 = vpop.f32.mrb[0].mxu0
    %v4520 = vadd.f32 0.0, %v4519
    %v4521 = vpop.f32.mrb[0].mxu0
    %4522 = vdwg.mxu0
    %v4524 = vsel %vm121, %v4385, 0
    %v4527 = vsel %vm121, %v4386, 0
    %v4530 = vsel %vm121, %v4387, 0
    %4532 = vmatprep.subr.bf16.mxu0 0
    %4533 = vmatpush1.bf16.msra.mxu0 %v3809
    %4534 = vmatprep.subr.bf16.mxu0 0
    %4535 = vmatpush1.bf16.msra.mxu0 %v3810
    %4536 = vmatprep.subr.bf16.mxu0 0
    %4537 = vmatpush1.bf16.msra.mxu0 %v3811
    %4538 = vmatprep.subr.bf16.mxu0 0
    %4539 = vmatpush1.bf16.msra.mxu0 0
    %4540 = vmatprep.subr.bf16.mxu0 0
    %4541 = vmatpush1.bf16.msra.mxu0 0
    %4542 = vmatprep.subr.bf16.mxu0 0
    %4543 = vmatpush1.bf16.msra.mxu0 0
    %4544 = vmatprep.subr.bf16.mxu0 0
    %4545 = vmatpush1.bf16.msra.mxu0 0
    %4546 = vmatprep.subr.bf16.mxu0 0
    %4547 = vmatpush1.bf16.msra.mxu0 0
    %4548 = vmatprep.subr.bf16.mxu0 0
    %4549 = vmatpush1.bf16.msra.mxu0 0
    %4550 = vmatprep.subr.bf16.mxu0 0
    %4551 = vmatpush1.bf16.msra.mxu0 0
    %4552 = vmatprep.subr.bf16.mxu0 0
    %4553 = vmatpush1.bf16.msra.mxu0 0
    %4554 = vmatprep.subr.bf16.mxu0 0
    %4555 = vmatpush1.bf16.msra.mxu0 0
    %4556 = vmatprep.subr.bf16.mxu0 0
    %4557 = vmatpush1.bf16.msra.mxu0 0
    %4558 = vmatprep.subr.bf16.mxu0 0
    %4559 = vmatpush1.bf16.msra.mxu0 0
    %4560 = vmatprep.subr.bf16.mxu0 0
    %4561 = vmatpush1.bf16.msra.mxu0 0
    %4562 = vmatprep.subr.bf16.mxu0 0
    %4563 = vmatpush1.bf16.msra.mxu0 0
    %4564 = vmatprep.mubr.bf16.mxu0 0
    %4565 = vmatmul.mubr.bf16.gmra.mrb[0].mxu0 %v4524
    %v4566 = vpop.f32.mrb[0].mxu0
    %v4567 = vadd.f32 0.0, %v4566
    %v4568 = vpop.f32.mrb[0].mxu0
    %v4569 = vpop.f32.mrb[0].mxu0
    %v4570 = vadd.f32 0.0, %v4569
    %v4571 = vpop.f32.mrb[0].mxu0
    %4572 = vmatprep.mubr.bf16.mxu0 0
    %4573 = vmatmul.mubr.bf16.gmra.mrb[0].mxu0 %v4527
    %v4574 = vpop.f32.mrb[0].mxu0
    %v4575 = vadd.f32 0.0, %v4574
    %v4576 = vpop.f32.mrb[0].mxu0
    %v4577 = vpop.f32.mrb[0].mxu0
    %v4578 = vadd.f32 0.0, %v4577
    %v4579 = vpop.f32.mrb[0].mxu0
    %4580 = vmatprep.mubr.bf16.mxu0 0
    %4581 = vmatmul.mubr.bf16.gmra.mrb[0].mxu0 %v4530
    %v4582 = vpop.f32.mrb[0].mxu0
    %v4583 = vadd.f32 0.0, %v4582
    %v4584 = vpop.f32.mrb[0].mxu0
    %v4585 = vpop.f32.mrb[0].mxu0
    %v4586 = vadd.f32 0.0, %v4585
    %v4587 = vpop.f32.mrb[0].mxu0
    %4588 = vdwg.mxu0
    %v4590 = vsel %vm121, %v4388, 0
    %v4593 = vsel %vm121, %v4389, 0
    %v4596 = vsel %vm121, %v4390, 0
    %4598 = vmatprep.subr.bf16.mxu0 0
    %4599 = vmatpush1.bf16.msra.mxu0 %v3812
    %4600 = vmatprep.subr.bf16.mxu0 0
    %4601 = vmatpush1.bf16.msra.mxu0 %v3813
    %4602 = vmatprep.subr.bf16.mxu0 0
    %4603 = vmatpush1.bf16.msra.mxu0 %v3814
    %4604 = vmatprep.subr.bf16.mxu0 0
    %4605 = vmatpush1.bf16.msra.mxu0 0
    %4606 = vmatprep.subr.bf16.mxu0 0
    %4607 = vmatpush1.bf16.msra.mxu0 0
    %4608 = vmatprep.subr.bf16.mxu0 0
    %4609 = vmatpush1.bf16.msra.mxu0 0
    %4610 = vmatprep.subr.bf16.mxu0 0
    %4611 = vmatpush1.bf16.msra.mxu0 0
    %4612 = vmatprep.subr.bf16.mxu0 0
    %4613 = vmatpush1.bf16.msra.mxu0 0
    %4614 = vmatprep.subr.bf16.mxu0 0
    %4615 = vmatpush1.bf16.msra.mxu0 0
    %4616 = vmatprep.subr.bf16.mxu0 0
    %4617 = vmatpush1.bf16.msra.mxu0 0
    %4618 = vmatprep.subr.bf16.mxu0 0
    %4619 = vmatpush1.bf16.msra.mxu0 0
    %4620 = vmatprep.subr.bf16.mxu0 0
    %4621 = vmatpush1.bf16.msra.mxu0 0
    %4622 = vmatprep.subr.bf16.mxu0 0
    %4623 = vmatpush1.bf16.msra.mxu0 0
    %4624 = vmatprep.subr.bf16.mxu0 0
    %4625 = vmatpush1.bf16.msra.mxu0 0
    %4626 = vmatprep.subr.bf16.mxu0 0
    %4627 = vmatpush1.bf16.msra.mxu0 0
    %4628 = vmatprep.subr.bf16.mxu0 0
    %4629 = vmatpush1.bf16.msra.mxu0 0
    %4630 = vmatprep.mubr.bf16.mxu0 0
    %4631 = vmatmul.mubr.bf16.gmra.mrb[0].mxu0 %v4590
    %v4632 = vpop.f32.mrb[0].mxu0
    %v4633 = vadd.f32 0.0, %v4632
    %v4634 = vpop.f32.mrb[0].mxu0
    %v4635 = vpop.f32.mrb[0].mxu0
    %v4636 = vadd.f32 0.0, %v4635
    %v4637 = vpop.f32.mrb[0].mxu0
    %4638 = vmatprep.mubr.bf16.mxu0 0
    %4639 = vmatmul.mubr.bf16.gmra.mrb[0].mxu0 %v4593
    %v4640 = vpop.f32.mrb[0].mxu0
    %v4641 = vadd.f32 0.0, %v4640
    %v4642 = vpop.f32.mrb[0].mxu0
    %v4643 = vpop.f32.mrb[0].mxu0
    %v4644 = vadd.f32 0.0, %v4643
    %v4645 = vpop.f32.mrb[0].mxu0
    %4646 = vmatprep.mubr.bf16.mxu0 0
    %4647 = vmatmul.mubr.bf16.gmra.mrb[0].mxu0 %v4596
    %v4648 = vpop.f32.mrb[0].mxu0
    %v4649 = vadd.f32 0.0, %v4648
    %v4650 = vpop.f32.mrb[0].mxu0
    %v4651 = vpop.f32.mrb[0].mxu0
    %v4652 = vadd.f32 0.0, %v4651
    %v4653 = vpop.f32.mrb[0].mxu0
    %4654 = vdwg.mxu0
    %v4655 = vpack.c.bf16 %v4438, %v4435
    %v4656 = vpack.c.bf16 %v4446, %v4443
    %v4657 = vpack.c.bf16 %v4454, %v4451
    %v4658 = vpack.c.bf16 %v4504, %v4501
    %v4659 = vpack.c.bf16 %v4512, %v4509
    %v4660 = vpack.c.bf16 %v4520, %v4517
    %v4661 = vpack.c.bf16 %v4570, %v4567
    %v4662 = vpack.c.bf16 %v4578, %v4575
    %v4663 = vpack.c.bf16 %v4586, %v4583
    %v4664 = vpack.c.bf16 %v4636, %v4633
    %v4665 = vpack.c.bf16 %v4644, %v4641
    %v4666 = vpack.c.bf16 %v4652, %v4649
    %s4667 = scalar_lea.vmem %s9, 16
    %v4668 = vld [vmem:[%s4667] sm:$0xf]
    %v4669 = vld [vmem:[%s4667 + $0x4] sm:$0xf]
    %v4670 = vld [vmem:[%s4667 + $0x8] sm:$0xf]
    %v4671 = vld [vmem:[%s4667 + $0xc] sm:$0xf]
    %v4673 = vsel %vm1224, %v4655, 0
    %v4676 = vsel %vm1224, %v4656, 0
    %v4679 = vsel %vm1224, %v4657, 0
    %v4682 = vsel %vm2090, %v4668, 0
    %4684 = vmatprep.subr.bf16.mxu0 0
    %4685 = vmatpush1.bf16.msra.mxu0 %v4682
    %4686 = vmatprep.subr.bf16.mxu0 0
    %4687 = vmatpush1.bf16.msra.mxu0 0
    %4688 = vmatprep.subr.bf16.mxu0 0
    %4689 = vmatpush1.bf16.msra.mxu0 0
    %4690 = vmatprep.subr.bf16.mxu0 0
    %4691 = vmatpush1.bf16.msra.mxu0 0
    %4692 = vmatprep.subr.bf16.mxu0 0
    %4693 = vmatpush1.bf16.msra.mxu0 0
    %4694 = vmatprep.subr.bf16.mxu0 0
    %4695 = vmatpush1.bf16.msra.mxu0 0
    %4696 = vmatprep.subr.bf16.mxu0 0
    %4697 = vmatpush1.bf16.msra.mxu0 0
    %4698 = vmatprep.subr.bf16.mxu0 0
    %4699 = vmatpush1.bf16.msra.mxu0 0
    %4700 = vmatprep.subr.bf16.mxu0 0
    %4701 = vmatpush1.bf16.msra.mxu0 0
    %4702 = vmatprep.subr.bf16.mxu0 0
    %4703 = vmatpush1.bf16.msra.mxu0 0
    %4704 = vmatprep.subr.bf16.mxu0 0
    %4705 = vmatpush1.bf16.msra.mxu0 0
    %4706 = vmatprep.subr.bf16.mxu0 0
    %4707 = vmatpush1.bf16.msra.mxu0 0
    %4708 = vmatprep.subr.bf16.mxu0 0
    %4709 = vmatpush1.bf16.msra.mxu0 0
    %4710 = vmatprep.subr.bf16.mxu0 0
    %4711 = vmatpush1.bf16.msra.mxu0 0
    %4712 = vmatprep.subr.bf16.mxu0 0
    %4713 = vmatpush1.bf16.msra.mxu0 0
    %4714 = vmatprep.subr.bf16.mxu0 0
    %4715 = vmatpush1.bf16.msra.mxu0 0
    %4716 = vmatprep.mubr.bf16.mxu0 0
    %4717 = vmatmul.mubr.bf16.gmra.mrb[0].mxu0 %v4673
    %v4718 = vpop.f32.mrb[0].mxu0
    %v4719 = vadd.f32 0.0, %v4718
    %v4720 = vpop.f32.mrb[0].mxu0
    %v4721 = vpop.f32.mrb[0].mxu0
    %v4722 = vadd.f32 0.0, %v4721
    %v4723 = vpop.f32.mrb[0].mxu0
    %4724 = vmatprep.mubr.bf16.mxu0 0
    %4725 = vmatmul.mubr.bf16.gmra.mrb[0].mxu0 %v4676
    %v4726 = vpop.f32.mrb[0].mxu0
    %v4727 = vadd.f32 0.0, %v4726
    %v4728 = vpop.f32.mrb[0].mxu0
    %v4729 = vpop.f32.mrb[0].mxu0
    %v4730 = vadd.f32 0.0, %v4729
    %v4731 = vpop.f32.mrb[0].mxu0
    %4732 = vmatprep.mubr.bf16.mxu0 0
    %4733 = vmatmul.mubr.bf16.gmra.mrb[0].mxu0 %v4679
    %v4734 = vpop.f32.mrb[0].mxu0
    %v4735 = vadd.f32 0.0, %v4734
    %v4736 = vpop.f32.mrb[0].mxu0
    %v4737 = vpop.f32.mrb[0].mxu0
    %v4738 = vadd.f32 0.0, %v4737
    %v4739 = vpop.f32.mrb[0].mxu0
    %4740 = vdwg.mxu0
    %v4742 = vsel %vm1224, %v4658, 0
    %v4745 = vsel %vm1224, %v4659, 0
    %v4748 = vsel %vm1224, %v4660, 0
    %v4751 = vsel %vm2090, %v4669, 0
    %4753 = vmatprep.subr.bf16.mxu0 0
    %4754 = vmatpush1.bf16.msra.mxu0 %v4751
    %4755 = vmatprep.subr.bf16.mxu0 0
    %4756 = vmatpush1.bf16.msra.mxu0 0
    %4757 = vmatprep.subr.bf16.mxu0 0
    %4758 = vmatpush1.bf16.msra.mxu0 0
    %4759 = vmatprep.subr.bf16.mxu0 0
    %4760 = vmatpush1.bf16.msra.mxu0 0
    %4761 = vmatprep.subr.bf16.mxu0 0
    %4762 = vmatpush1.bf16.msra.mxu0 0
    %4763 = vmatprep.subr.bf16.mxu0 0
    %4764 = vmatpush1.bf16.msra.mxu0 0
    %4765 = vmatprep.subr.bf16.mxu0 0
    %4766 = vmatpush1.bf16.msra.mxu0 0
    %4767 = vmatprep.subr.bf16.mxu0 0
    %4768 = vmatpush1.bf16.msra.mxu0 0
    %4769 = vmatprep.subr.bf16.mxu0 0
    %4770 = vmatpush1.bf16.msra.mxu0 0
    %4771 = vmatprep.subr.bf16.mxu0 0
    %4772 = vmatpush1.bf16.msra.mxu0 0
    %4773 = vmatprep.subr.bf16.mxu0 0
    %4774 = vmatpush1.bf16.msra.mxu0 0
    %4775 = vmatprep.subr.bf16.mxu0 0
    %4776 = vmatpush1.bf16.msra.mxu0 0
    %4777 = vmatprep.subr.bf16.mxu0 0
    %4778 = vmatpush1.bf16.msra.mxu0 0
    %4779 = vmatprep.subr.bf16.mxu0 0
    %4780 = vmatpush1.bf16.msra.mxu0 0
    %4781 = vmatprep.subr.bf16.mxu0 0
    %4782 = vmatpush1.bf16.msra.mxu0 0
    %4783 = vmatprep.subr.bf16.mxu0 0
    %4784 = vmatpush1.bf16.msra.mxu0 0
    %4785 = vmatprep.mubr.bf16.mxu0 0
    %4786 = vmatmul.mubr.bf16.gmra.mrb[0].mxu0 %v4742
    %v4787 = vpop.f32.mrb[0].mxu0
    %v4788 = vadd.f32 0.0, %v4787
    %v4789 = vpop.f32.mrb[0].mxu0
    %v4790 = vpop.f32.mrb[0].mxu0
    %v4791 = vadd.f32 0.0, %v4790
    %v4792 = vpop.f32.mrb[0].mxu0
    %4793 = vmatprep.mubr.bf16.mxu0 0
    %4794 = vmatmul.mubr.bf16.gmra.mrb[0].mxu0 %v4745
    %v4795 = vpop.f32.mrb[0].mxu0
    %v4796 = vadd.f32 0.0, %v4795
    %v4797 = vpop.f32.mrb[0].mxu0
    %v4798 = vpop.f32.mrb[0].mxu0
    %v4799 = vadd.f32 0.0, %v4798
    %v4800 = vpop.f32.mrb[0].mxu0
    %4801 = vmatprep.mubr.bf16.mxu0 0
    %4802 = vmatmul.mubr.bf16.gmra.mrb[0].mxu0 %v4748
    %v4803 = vpop.f32.mrb[0].mxu0
    %v4804 = vadd.f32 0.0, %v4803
    %v4805 = vpop.f32.mrb[0].mxu0
    %v4806 = vpop.f32.mrb[0].mxu0
    %v4807 = vadd.f32 0.0, %v4806
    %v4808 = vpop.f32.mrb[0].mxu0
    %4809 = vdwg.mxu0
    %v4811 = vsel %vm1224, %v4661, 0
    %v4814 = vsel %vm1224, %v4662, 0
    %v4817 = vsel %vm1224, %v4663, 0
    %v4820 = vsel %vm2090, %v4670, 0
    %4822 = vmatprep.subr.bf16.mxu0 0
    %4823 = vmatpush1.bf16.msra.mxu0 %v4820
    %4824 = vmatprep.subr.bf16.mxu0 0
    %4825 = vmatpush1.bf16.msra.mxu0 0
    %4826 = vmatprep.subr.bf16.mxu0 0
    %4827 = vmatpush1.bf16.msra.mxu0 0
    %4828 = vmatprep.subr.bf16.mxu0 0
    %4829 = vmatpush1.bf16.msra.mxu0 0
    %4830 = vmatprep.subr.bf16.mxu0 0
    %4831 = vmatpush1.bf16.msra.mxu0 0
    %4832 = vmatprep.subr.bf16.mxu0 0
    %4833 = vmatpush1.bf16.msra.mxu0 0
    %4834 = vmatprep.subr.bf16.mxu0 0
    %4835 = vmatpush1.bf16.msra.mxu0 0
    %4836 = vmatprep.subr.bf16.mxu0 0
    %4837 = vmatpush1.bf16.msra.mxu0 0
    %4838 = vmatprep.subr.bf16.mxu0 0
    %4839 = vmatpush1.bf16.msra.mxu0 0
    %4840 = vmatprep.subr.bf16.mxu0 0
    %4841 = vmatpush1.bf16.msra.mxu0 0
    %4842 = vmatprep.subr.bf16.mxu0 0
    %4843 = vmatpush1.bf16.msra.mxu0 0
    %4844 = vmatprep.subr.bf16.mxu0 0
    %4845 = vmatpush1.bf16.msra.mxu0 0
    %4846 = vmatprep.subr.bf16.mxu0 0
    %4847 = vmatpush1.bf16.msra.mxu0 0
    %4848 = vmatprep.subr.bf16.mxu0 0
    %4849 = vmatpush1.bf16.msra.mxu0 0
    %4850 = vmatprep.subr.bf16.mxu0 0
    %4851 = vmatpush1.bf16.msra.mxu0 0
    %4852 = vmatprep.subr.bf16.mxu0 0
    %4853 = vmatpush1.bf16.msra.mxu0 0
    %4854 = vmatprep.mubr.bf16.mxu0 0
    %4855 = vmatmul.mubr.bf16.gmra.mrb[0].mxu0 %v4811
    %v4856 = vpop.f32.mrb[0].mxu0
    %v4857 = vadd.f32 0.0, %v4856
    %v4858 = vpop.f32.mrb[0].mxu0
    %v4859 = vpop.f32.mrb[0].mxu0
    %v4860 = vadd.f32 0.0, %v4859
    %v4861 = vpop.f32.mrb[0].mxu0
    %4862 = vmatprep.mubr.bf16.mxu0 0
    %4863 = vmatmul.mubr.bf16.gmra.mrb[0].mxu0 %v4814
    %v4864 = vpop.f32.mrb[0].mxu0
    %v4865 = vadd.f32 0.0, %v4864
    %v4866 = vpop.f32.mrb[0].mxu0
    %v4867 = vpop.f32.mrb[0].mxu0
    %v4868 = vadd.f32 0.0, %v4867
    %v4869 = vpop.f32.mrb[0].mxu0
    %4870 = vmatprep.mubr.bf16.mxu0 0
    %4871 = vmatmul.mubr.bf16.gmra.mrb[0].mxu0 %v4817
    %v4872 = vpop.f32.mrb[0].mxu0
    %v4873 = vadd.f32 0.0, %v4872
    %v4874 = vpop.f32.mrb[0].mxu0
    %v4875 = vpop.f32.mrb[0].mxu0
    %v4876 = vadd.f32 0.0, %v4875
    %v4877 = vpop.f32.mrb[0].mxu0
    %4878 = vdwg.mxu0
    %v4880 = vsel %vm1224, %v4664, 0
    %v4883 = vsel %vm1224, %v4665, 0
    %v4886 = vsel %vm1224, %v4666, 0
    %v4889 = vsel %vm2090, %v4671, 0
    %4891 = vmatprep.subr.bf16.mxu0 0
    %4892 = vmatpush1.bf16.msra.mxu0 %v4889
    %4893 = vmatprep.subr.bf16.mxu0 0
    %4894 = vmatpush1.bf16.msra.mxu0 0
    %4895 = vmatprep.subr.bf16.mxu0 0
    %4896 = vmatpush1.bf16.msra.mxu0 0
    %4897 = vmatprep.subr.bf16.mxu0 0
    %4898 = vmatpush1.bf16.msra.mxu0 0
    %4899 = vmatprep.subr.bf16.mxu0 0
    %4900 = vmatpush1.bf16.msra.mxu0 0
    %4901 = vmatprep.subr.bf16.mxu0 0
    %4902 = vmatpush1.bf16.msra.mxu0 0
    %4903 = vmatprep.subr.bf16.mxu0 0
    %4904 = vmatpush1.bf16.msra.mxu0 0
    %4905 = vmatprep.subr.bf16.mxu0 0
    %4906 = vmatpush1.bf16.msra.mxu0 0
    %4907 = vmatprep.subr.bf16.mxu0 0
    %4908 = vmatpush1.bf16.msra.mxu0 0
    %4909 = vmatprep.subr.bf16.mxu0 0
    %4910 = vmatpush1.bf16.msra.mxu0 0
    %4911 = vmatprep.subr.bf16.mxu0 0
    %4912 = vmatpush1.bf16.msra.mxu0 0
    %4913 = vmatprep.subr.bf16.mxu0 0
    %4914 = vmatpush1.bf16.msra.mxu0 0
    %4915 = vmatprep.subr.bf16.mxu0 0
    %4916 = vmatpush1.bf16.msra.mxu0 0
    %4917 = vmatprep.subr.bf16.mxu0 0
    %4918 = vmatpush1.bf16.msra.mxu0 0
    %4919 = vmatprep.subr.bf16.mxu0 0
    %4920 = vmatpush1.bf16.msra.mxu0 0
    %4921 = vmatprep.subr.bf16.mxu0 0
    %4922 = vmatpush1.bf16.msra.mxu0 0
    %4923 = vmatprep.mubr.bf16.mxu0 0
    %4924 = vmatmul.mubr.bf16.gmra.mrb[0].mxu0 %v4880
    %v4925 = vpop.f32.mrb[0].mxu0
    %v4926 = vadd.f32 0.0, %v4925
    %v4927 = vpop.f32.mrb[0].mxu0
    %v4928 = vpop.f32.mrb[0].mxu0
    %v4929 = vadd.f32 0.0, %v4928
    %v4930 = vpop.f32.mrb[0].mxu0
    %4931 = vmatprep.mubr.bf16.mxu0 0
    %4932 = vmatmul.mubr.bf16.gmra.mrb[0].mxu0 %v4883
    %v4933 = vpop.f32.mrb[0].mxu0
    %v4934 = vadd.f32 0.0, %v4933
    %v4935 = vpop.f32.mrb[0].mxu0
    %v4936 = vpop.f32.mrb[0].mxu0
    %v4937 = vadd.f32 0.0, %v4936
    %v4938 = vpop.f32.mrb[0].mxu0
    %4939 = vmatprep.mubr.bf16.mxu0 0
    %4940 = vmatmul.mubr.bf16.gmra.mrb[0].mxu0 %v4886
    %v4941 = vpop.f32.mrb[0].mxu0
    %v4942 = vadd.f32 0.0, %v4941
    %v4943 = vpop.f32.mrb[0].mxu0
    %v4944 = vpop.f32.mrb[0].mxu0
    %v4945 = vadd.f32 0.0, %v4944
    %v4946 = vpop.f32.mrb[0].mxu0
    %4947 = vdwg.mxu0
    %v4948 = vsel %vm196, %v4719, 0.0
    %v4949 = vsel %vm196, %v4788, 0.0
    %v4950 = vadd.f32 %v4948, %v4949
    %v4951 = vsel %vm196, %v4857, 0.0
    %v4952 = vadd.f32 %v4950, %v4951
    %v4953 = vsel %vm196, %v4926, 0.0
    %v4954 = vadd.f32 %v4952, %v4953
    %v4955 = vsel %vm196, %v4722, 0.0
    %v4956 = vsel %vm196, %v4791, 0.0
    %v4957 = vadd.f32 %v4955, %v4956
    %v4958 = vsel %vm196, %v4860, 0.0
    %v4959 = vadd.f32 %v4957, %v4958
    %v4960 = vsel %vm196, %v4929, 0.0
    %v4961 = vadd.f32 %v4959, %v4960
    %v4962 = vsel %vm196, %v4727, 0.0
    %v4963 = vsel %vm196, %v4796, 0.0
    %v4964 = vadd.f32 %v4962, %v4963
    %v4965 = vsel %vm196, %v4865, 0.0
    %v4966 = vadd.f32 %v4964, %v4965
    %v4967 = vsel %vm196, %v4934, 0.0
    %v4968 = vadd.f32 %v4966, %v4967
    %v4969 = vsel %vm196, %v4730, 0.0
    %v4970 = vsel %vm196, %v4799, 0.0
    %v4971 = vadd.f32 %v4969, %v4970
    %v4972 = vsel %vm196, %v4868, 0.0
    %v4973 = vadd.f32 %v4971, %v4972
    %v4974 = vsel %vm196, %v4937, 0.0
    %v4975 = vadd.f32 %v4973, %v4974
    %v4976 = vsel %vm196, %v4735, 0.0
    %v4977 = vsel %vm196, %v4804, 0.0
    %v4978 = vadd.f32 %v4976, %v4977
    %v4979 = vsel %vm196, %v4873, 0.0
    %v4980 = vadd.f32 %v4978, %v4979
    %v4981 = vsel %vm196, %v4942, 0.0
    %v4982 = vadd.f32 %v4980, %v4981
    %v4983 = vsel %vm196, %v4738, 0.0
    %v4984 = vsel %vm196, %v4807, 0.0
    %v4985 = vadd.f32 %v4983, %v4984
    %v4986 = vsel %vm196, %v4876, 0.0
    %v4987 = vadd.f32 %v4985, %v4986
    %v4988 = vsel %vm196, %v4945, 0.0
    %v4989 = vadd.f32 %v4987, %v4988
    %v4990 = vadd.f32 %v2776, %v4954
    %v4991 = vadd.f32 %v2777, %v4961
    %v4992 = vadd.f32 %v2778, %v4968
    %v4993 = vadd.f32 %v2779, %v4975
    %v4994 = vadd.f32 %v2780, %v4982
    %v4995 = vadd.f32 %v2781, %v4989
    %s4996 = scalar_lea.vmem %s10, 1
    %v4997 = vld [vmem:[%s4996] sm:$0x1]
    %v4999 = vlaneseq
    %v5000 = vshrl.u32 %v4999, 7
    %v5001 = vsub.s32 0, %v5000
    %v5002 = vrot.slane %v4997, %v5001
    %v5004 = vadd.f32 %v4990, %v5002
    %v5005 = vadd.f32 %v4991, %v5002
    %v5006 = vadd.f32 %v4992, %v5002
    %v5007 = vadd.f32 %v4993, %v5002
    %v5008 = vadd.f32 %v4994, %v5002
    %v5009 = vadd.f32 %v4995, %v5002
    %s5010 = scalar_lea.vmem %s11, 1
    %v5011 = vld [vmem:[%s5010] sm:$0x1]
    %s5012 = scalar_lea.vmem %s12, 1
    %v5013 = vld [vmem:[%s5012] sm:$0x1]
    %v5014 = vsel %vm196, %v5004, 0.0
    %5015 = vadd.xlane.f32.xlu0 %v5014
    %v5016 = vpop.xlane.xlu0 %5015
    %v5017 = vsel %vm196, %v5005, 0.0
    %5018 = vadd.xlane.f32.xlu0 %v5017
    %v5019 = vpop.xlane.xlu0 %5018
    %v5020 = vsel %vm196, %v5006, 0.0
    %5021 = vadd.xlane.f32.xlu0 %v5020
    %v5022 = vpop.xlane.xlu0 %5021
    %v5023 = vsel %vm196, %v5007, 0.0
    %5024 = vadd.xlane.f32.xlu0 %v5023
    %v5025 = vpop.xlane.xlu0 %5024
    %v5026 = vsel %vm196, %v5008, 0.0
    %5027 = vadd.xlane.f32.xlu0 %v5026
    %v5028 = vpop.xlane.xlu0 %5027
    %v5029 = vsel %vm196, %v5009, 0.0
    %5030 = vadd.xlane.f32.xlu0 %v5029
    %v5031 = vpop.xlane.xlu0 %5030
    %v5032 = vmul.f32 %v5016, %v215
    %v5033 = vmul.f32 %v5019, %v215
    %v5034 = vmul.f32 %v5022, %v215
    %v5035 = vmul.f32 %v5025, %v215
    %v5036 = vmul.f32 %v5028, %v215
    %v5037 = vmul.f32 %v5031, %v215
    %v5038 = vsub.f32 %v5004, %v5032
    %v5039 = vsub.f32 %v5005, %v5033
    %v5040 = vsub.f32 %v5006, %v5034
    %v5041 = vsub.f32 %v5007, %v5035
    %v5042 = vsub.f32 %v5008, %v5036
    %v5043 = vsub.f32 %v5009, %v5037
    %v5044 = vmul.f32 %v5038, %v5038
    %v5045 = vmul.f32 %v5039, %v5039
    %v5046 = vmul.f32 %v5040, %v5040
    %v5047 = vmul.f32 %v5041, %v5041
    %v5048 = vmul.f32 %v5042, %v5042
    %v5049 = vmul.f32 %v5043, %v5043
    %v5050 = vsel %vm196, %v5044, 0.0
    %5051 = vadd.xlane.f32.xlu0 %v5050
    %v5052 = vpop.xlane.xlu0 %5051
    %v5053 = vsel %vm196, %v5045, 0.0
    %5054 = vadd.xlane.f32.xlu0 %v5053
    %v5055 = vpop.xlane.xlu0 %5054
    %v5056 = vsel %vm196, %v5046, 0.0
    %5057 = vadd.xlane.f32.xlu0 %v5056
    %v5058 = vpop.xlane.xlu0 %5057
    %v5059 = vsel %vm196, %v5047, 0.0
    %5060 = vadd.xlane.f32.xlu0 %v5059
    %v5061 = vpop.xlane.xlu0 %5060
    %v5062 = vsel %vm196, %v5048, 0.0
    %5063 = vadd.xlane.f32.xlu0 %v5062
    %v5064 = vpop.xlane.xlu0 %5063
    %v5065 = vsel %vm196, %v5049, 0.0
    %5066 = vadd.xlane.f32.xlu0 %v5065
    %v5067 = vpop.xlane.xlu0 %5066
    %v5068 = vmul.f32 %v5052, %v215
    %v5069 = vmul.f32 %v5055, %v215
    %v5070 = vmul.f32 %v5058, %v215
    %v5071 = vmul.f32 %v5061, %v215
    %v5072 = vmul.f32 %v5064, %v215
    %v5073 = vmul.f32 %v5067, %v215
    %v5074 = vadd.f32 %v5068, 1e-05
    %v5075 = vadd.f32 %v5069, 1e-05
    %v5076 = vadd.f32 %v5070, 1e-05
    %v5077 = vadd.f32 %v5071, 1e-05
    %v5078 = vadd.f32 %v5072, 1e-05
    %v5079 = vadd.f32 %v5073, 1e-05
    %v5080 = vrsqrt.pop %v5074
    %v5081 = vrsqrt.pop %v5075
    %v5082 = vrsqrt.pop %v5076
    %v5083 = vrsqrt.pop %v5077
    %v5084 = vrsqrt.pop %v5078
    %v5085 = vrsqrt.pop %v5079
    %v5086 = vmul.f32 %v5038, %v5080
    %v5087 = vmul.f32 %v5039, %v5081
    %v5088 = vmul.f32 %v5040, %v5082
    %v5089 = vmul.f32 %v5041, %v5083
    %v5090 = vmul.f32 %v5042, %v5084
    %v5091 = vmul.f32 %v5043, %v5085
    %v5093 = vlaneseq
    %v5094 = vshrl.u32 %v5093, 7
    %v5095 = vsub.s32 0, %v5094
    %v5096 = vrot.slane %v5011, %v5095
    %v5098 = vmul.f32 %v5086, %v5096
    %v5099 = vmul.f32 %v5087, %v5096
    %v5100 = vmul.f32 %v5088, %v5096
    %v5101 = vmul.f32 %v5089, %v5096
    %v5102 = vmul.f32 %v5090, %v5096
    %v5103 = vmul.f32 %v5091, %v5096
    %v5105 = vlaneseq
    %v5106 = vshrl.u32 %v5105, 7
    %v5107 = vsub.s32 0, %v5106
    %v5108 = vrot.slane %v5013, %v5107
    %v5110 = vadd.f32 %v5098, %v5108
    %v5111 = vadd.f32 %v5099, %v5108
    %v5112 = vadd.f32 %v5100, %v5108
    %v5113 = vadd.f32 %v5101, %v5108
    %v5114 = vadd.f32 %v5102, %v5108
    %v5115 = vadd.f32 %v5103, %v5108
    %v5116 = vpack.c.bf16 %v5111, %v5110
    %v5117 = vpack.c.bf16 %v5113, %v5112
    %v5118 = vpack.c.bf16 %v5115, %v5114
    %s5119 = scalar_lea.vmem %s13, 16
    %v5120 = vld [vmem:[%s5119] sm:$0xf]
    %v5121 = vld [vmem:[%s5119 + $0x4] sm:$0xf]
    %v5122 = vld [vmem:[%s5119 + $0x8] sm:$0xf]
    %v5123 = vld [vmem:[%s5119 + $0xc] sm:$0xf]
    %s5124 = scalar_lea.vmem %s14, 1
    %v5125 = vld [vmem:[%s5124] sm:$0x1]
    %v5127 = vlaneseq
    %v5128 = vshrl.u32 %v5127, 7
    %v5129 = vsub.s32 0, %v5128
    %v5130 = vrot.slane %v5125, %v5129
    %v5136 = vunpack.c.l.b16 %v5120
    %v5137 = vunpack.c.l.b16 %v5121
    %v5138 = vunpack.c.l.b16 %v5122
    %v5139 = vunpack.c.l.b16 %v5123
    %v5140 = vpack.c.b16 %v5137, %v5136
    %v5141 = vpack.c.b16 %v5139, %v5138
    %v5145 = vsel %vm196, %v5116, 0
    %v5148 = vsel %vm196, %v5117, 0
    %v5151 = vsel %vm196, %v5118, 0
    %5153 = vmatprep.subr.bf16.mxu0 0
    %5154 = vmatpush1.bf16.msra.mxu0 %v5140
    %5155 = vmatprep.subr.bf16.mxu0 0
    %5156 = vmatpush1.bf16.msra.mxu0 %v5141
    %5157 = vmatprep.subr.bf16.mxu0 0
    %5158 = vmatpush1.bf16.msra.mxu0 0
    %5159 = vmatprep.subr.bf16.mxu0 0
    %5160 = vmatpush1.bf16.msra.mxu0 0
    %5161 = vmatprep.subr.bf16.mxu0 0
    %5162 = vmatpush1.bf16.msra.mxu0 0
    %5163 = vmatprep.subr.bf16.mxu0 0
    %5164 = vmatpush1.bf16.msra.mxu0 0
    %5165 = vmatprep.subr.bf16.mxu0 0
    %5166 = vmatpush1.bf16.msra.mxu0 0
    %5167 = vmatprep.subr.bf16.mxu0 0
    %5168 = vmatpush1.bf16.msra.mxu0 0
    %5169 = vmatprep.subr.bf16.mxu0 0
    %5170 = vmatpush1.bf16.msra.mxu0 0
    %5171 = vmatprep.subr.bf16.mxu0 0
    %5172 = vmatpush1.bf16.msra.mxu0 0
    %5173 = vmatprep.subr.bf16.mxu0 0
    %5174 = vmatpush1.bf16.msra.mxu0 0
    %5175 = vmatprep.subr.bf16.mxu0 0
    %5176 = vmatpush1.bf16.msra.mxu0 0
    %5177 = vmatprep.subr.bf16.mxu0 0
    %5178 = vmatpush1.bf16.msra.mxu0 0
    %5179 = vmatprep.subr.bf16.mxu0 0
    %5180 = vmatpush1.bf16.msra.mxu0 0
    %5181 = vmatprep.subr.bf16.mxu0 0
    %5182 = vmatpush1.bf16.msra.mxu0 0
    %5183 = vmatprep.subr.bf16.mxu0 0
    %5184 = vmatpush1.bf16.msra.mxu0 0
    %5185 = vmatprep.mubr.bf16.mxu0 0
    %5186 = vmatmul.mubr.bf16.gmra.mrb[0].mxu0 %v5145
    %v5187 = vpop.f32.mrb[0].mxu0
    %v5188 = vadd.f32 %v5130, %v5187
    %v5189 = vpop.f32.mrb[0].mxu0
    %v5190 = vpop.f32.mrb[0].mxu0
    %v5191 = vadd.f32 %v5130, %v5190
    %v5192 = vpop.f32.mrb[0].mxu0
    %5193 = vmatprep.mubr.bf16.mxu0 0
    %5194 = vmatmul.mubr.bf16.gmra.mrb[0].mxu0 %v5148
    %v5195 = vpop.f32.mrb[0].mxu0
    %v5196 = vadd.f32 %v5130, %v5195
    %v5197 = vpop.f32.mrb[0].mxu0
    %v5198 = vpop.f32.mrb[0].mxu0
    %v5199 = vadd.f32 %v5130, %v5198
    %v5200 = vpop.f32.mrb[0].mxu0
    %5201 = vmatprep.mubr.bf16.mxu0 0
    %5202 = vmatmul.mubr.bf16.gmra.mrb[0].mxu0 %v5151
    %v5203 = vpop.f32.mrb[0].mxu0
    %v5204 = vadd.f32 %v5130, %v5203
    %v5205 = vpop.f32.mrb[0].mxu0
    %v5206 = vpop.f32.mrb[0].mxu0
    %v5207 = vadd.f32 %v5130, %v5206
    %v5208 = vpop.f32.mrb[0].mxu0
    %5209 = vdwg.mxu0
    %v5210 = vmul.f32 %v5188, 0.5
    %v5211 = vmul.f32 %v5191, 0.5
    %v5212 = vmul.f32 %v5196, 0.5
    %v5213 = vmul.f32 %v5199, 0.5
    %v5214 = vmul.f32 %v5204, 0.5
    %v5215 = vmul.f32 %v5207, 0.5
    %v5216 = vmul.f32 %v5188, 0.70710677
    %v5217 = vmul.f32 %v5191, 0.70710677
    %v5218 = vmul.f32 %v5196, 0.70710677
    %v5219 = vmul.f32 %v5199, 0.70710677
    %v5220 = vmul.f32 %v5204, 0.70710677
    %v5221 = vmul.f32 %v5207, 0.70710677
    %v5222 = verf.f32.pop %v5216
    %v5223 = verf.f32.pop %v5217
    %v5224 = verf.f32.pop %v5218
    %v5225 = verf.f32.pop %v5219
    %v5226 = verf.f32.pop %v5220
    %v5227 = verf.f32.pop %v5221
    %v5228 = vadd.f32 %v5222, 1.0
    %v5229 = vadd.f32 %v5223, 1.0
    %v5230 = vadd.f32 %v5224, 1.0
    %v5231 = vadd.f32 %v5225, 1.0
    %v5232 = vadd.f32 %v5226, 1.0
    %v5233 = vadd.f32 %v5227, 1.0
    %v5234 = vmul.f32 %v5210, %v5228
    %v5235 = vmul.f32 %v5211, %v5229
    %v5236 = vmul.f32 %v5212, %v5230
    %v5237 = vmul.f32 %v5213, %v5231
    %v5238 = vmul.f32 %v5214, %v5232
    %v5239 = vmul.f32 %v5215, %v5233
    %v5240 = vpack.c.bf16 %v5235, %v5234
    %v5241 = vpack.c.bf16 %v5237, %v5236
    %v5242 = vpack.c.bf16 %v5239, %v5238
    %s5243 = scalar_lea.vmem %s15, 64
    %v5244 = vld [vmem:[%s5243] sm:$0xf]
    %v5245 = vld [vmem:[%s5243 + $0x4] sm:$0xf]
    %v5246 = vld [vmem:[%s5243 + $0x8] sm:$0xf]
    %v5247 = vld [vmem:[%s5243 + $0xc] sm:$0xf]
    %v5248 = vld [vmem:[%s5243 + $0x10] sm:$0xf]
    %v5249 = vld [vmem:[%s5243 + $0x14] sm:$0xf]
    %v5250 = vld [vmem:[%s5243 + $0x18] sm:$0xf]
    %v5251 = vld [vmem:[%s5243 + $0x1c] sm:$0xf]
    %v5252 = vld [vmem:[%s5243 + $0x20] sm:$0xf]
    %v5253 = vld [vmem:[%s5243 + $0x24] sm:$0xf]
    %v5254 = vld [vmem:[%s5243 + $0x28] sm:$0xf]
    %v5255 = vld [vmem:[%s5243 + $0x2c] sm:$0xf]
    %v5256 = vld [vmem:[%s5243 + $0x30] sm:$0xf]
    %v5257 = vld [vmem:[%s5243 + $0x34] sm:$0xf]
    %v5258 = vld [vmem:[%s5243 + $0x38] sm:$0xf]
    %v5259 = vld [vmem:[%s5243 + $0x3c] sm:$0xf]
    %s5260 = scalar_lea.vmem %s16, 1
    %v5261 = vld [vmem:[%s5260] sm:$0x1]
    %v5263 = vlaneseq
    %v5264 = vshrl.u32 %v5263, 7
    %v5265 = vsub.s32 0, %v5264
    %v5266 = vrot.slane %v5261, %v5265
    %v5284 = vunpack.c.l.b16 %v5244
    %v5285 = vunpack.c.l.b16 %v5245
    %v5286 = vunpack.c.l.b16 %v5246
    %v5287 = vunpack.c.l.b16 %v5247
    %v5288 = vunpack.c.l.b16 %v5248
    %v5289 = vunpack.c.l.b16 %v5249
    %v5290 = vunpack.c.l.b16 %v5250
    %v5291 = vunpack.c.l.b16 %v5251
    %v5292 = vunpack.c.l.b16 %v5252
    %v5293 = vunpack.c.l.b16 %v5253
    %v5294 = vunpack.c.l.b16 %v5254
    %v5295 = vunpack.c.l.b16 %v5255
    %v5296 = vunpack.c.l.b16 %v5256
    %v5297 = vunpack.c.l.b16 %v5257
    %v5298 = vunpack.c.l.b16 %v5258
    %v5299 = vunpack.c.l.b16 %v5259
    %v5300 = vpack.c.b16 %v5285, %v5284
    %v5301 = vpack.c.b16 %v5287, %v5286
    %v5302 = vpack.c.b16 %v5289, %v5288
    %v5303 = vpack.c.b16 %v5291, %v5290
    %v5304 = vpack.c.b16 %v5293, %v5292
    %v5305 = vpack.c.b16 %v5295, %v5294
    %v5306 = vpack.c.b16 %v5297, %v5296
    %v5307 = vpack.c.b16 %v5299, %v5298
    %5316 = vmatprep.subr.bf16.mxu0 0
    %5317 = vmatpush1.bf16.msra.mxu0 %v5300
    %5318 = vmatprep.subr.bf16.mxu0 0
    %5319 = vmatpush1.bf16.msra.mxu0 %v5301
    %5320 = vmatprep.subr.bf16.mxu0 0
    %5321 = vmatpush1.bf16.msra.mxu0 %v5302
    %5322 = vmatprep.subr.bf16.mxu0 0
    %5323 = vmatpush1.bf16.msra.mxu0 %v5303
    %5324 = vmatprep.subr.bf16.mxu0 0
    %5325 = vmatpush1.bf16.msra.mxu0 %v5304
    %5326 = vmatprep.subr.bf16.mxu0 0
    %5327 = vmatpush1.bf16.msra.mxu0 %v5305
    %5328 = vmatprep.subr.bf16.mxu0 0
    %5329 = vmatpush1.bf16.msra.mxu0 %v5306
    %5330 = vmatprep.subr.bf16.mxu0 0
    %5331 = vmatpush1.bf16.msra.mxu0 %v5307
    %5332 = vmatprep.subr.bf16.mxu0 0
    %5333 = vmatpush1.bf16.msra.mxu0 0
    %5334 = vmatprep.subr.bf16.mxu0 0
    %5335 = vmatpush1.bf16.msra.mxu0 0
    %5336 = vmatprep.subr.bf16.mxu0 0
    %5337 = vmatpush1.bf16.msra.mxu0 0
    %5338 = vmatprep.subr.bf16.mxu0 0
    %5339 = vmatpush1.bf16.msra.mxu0 0
    %5340 = vmatprep.subr.bf16.mxu0 0
    %5341 = vmatpush1.bf16.msra.mxu0 0
    %5342 = vmatprep.subr.bf16.mxu0 0
    %5343 = vmatpush1.bf16.msra.mxu0 0
    %5344 = vmatprep.subr.bf16.mxu0 0
    %5345 = vmatpush1.bf16.msra.mxu0 0
    %5346 = vmatprep.subr.bf16.mxu0 0
    %5347 = vmatpush1.bf16.msra.mxu0 0
    %5348 = vmatprep.mubr.bf16.mxu0 0
    %5349 = vmatmul.mubr.bf16.gmra.mrb[0].mxu0 %v5240
    %v5350 = vpop.f32.mrb[0].mxu0
    %v5351 = vadd.f32 %v5266, %v5350
    %v5352 = vpop.f32.mrb[0].mxu0
    %v5353 = vpop.f32.mrb[0].mxu0
    %v5354 = vpop.f32.mrb[0].mxu0
    %5355 = vmatprep.mubr.bf16.mxu0 0
    %5356 = vmatmul.mubr.bf16.gmra.mrb[0].mxu0 %v5241
    %v5357 = vpop.f32.mrb[0].mxu0
    %v5358 = vpop.f32.mrb[0].mxu0
    %v5359 = vpop.f32.mrb[0].mxu0
    %v5360 = vadd.f32 %v5266, %v5359
    %v5361 = vpop.f32.mrb[0].mxu0
    %5362 = vmatprep.mubr.bf16.mxu0 0
    %5363 = vmatmul.mubr.bf16.gmra.mrb[0].mxu0 %v5242
    %v5364 = vpop.f32.mrb[0].mxu0
    %v5365 = vpop.f32.mrb[0].mxu0
    %v5366 = vpop.f32.mrb[0].mxu0
    %v5367 = vpop.f32.mrb[0].mxu0
    %5368 = vdwg.mxu0
    %v5369 = vadd.f32 %v5004, %v5351
    %v5370 = vadd.f32 %v5007, %v5360
    %v5372 = vrot.slane %v5370, 7
    %vm5374 = vcmask 1040384
    %v5375 = vsel %vm5374, %v5369, %v5372
    %v5376 = vld [vmem:[%s17] sm:$0x1]
    %v5377 = vld [vmem:[%s18] sm:$0x1]
    %vm5378 = vcmask 254976
    %v5379 = vsel %vm5378, %v5375, 0.0
    %5380 = vadd.xlane.f32.xlu0 %v5379
    %v5381 = vpop.xlane.xlu0 %5380
    %v5382 = vmul.f32 %v5381, %v215
    %v5383 = vsub.f32 %v5375, %v5382
    %v5384 = vmul.f32 %v5383, %v5383
    %v5385 = vsel %vm5378, %v5384, 0.0
    %5386 = vadd.xlane.f32.xlu0 %v5385
    %v5387 = vpop.xlane.xlu0 %5386
    %v5388 = vmul.f32 %v5387, %v215
    %v5389 = vadd.f32 %v5388, 1e-05
    %v5390 = vrsqrt.pop %v5389
    %v5391 = vmul.f32 %v5383, %v5390
    %v5393 = vlaneseq
    %v5394 = vshrl.u32 %v5393, 7
    %v5395 = vsub.s32 0, %v5394
    %v5396 = vrot.slane %v5376, %v5395
    %v5398 = vmul.f32 %v5391, %v5396
    %v5400 = vlaneseq
    %v5401 = vshrl.u32 %v5400, 7
    %v5402 = vsub.s32 0, %v5401
    %v5403 = vrot.slane %v5377, %v5402
    %v5405 = vadd.f32 %v5398, %v5403
    %v5406 = vpack.c.bf16 %v5405, %v5405
    %v5407 = vld [vmem:[%s19] sm:$0xf]
    %v5408 = vld [vmem:[%s19 + $0x4] sm:$0xf]
    %v5409 = vld [vmem:[%s19 + $0x8] sm:$0xf]
    %v5410 = vld [vmem:[%s19 + $0xc] sm:$0xf]
    %v5411 = vld [vmem:[%s20] sm:$0x1]
    %v5413 = vlaneseq
    %v5414 = vshrl.u32 %v5413, 7
    %v5415 = vsub.s32 0, %v5414
    %v5416 = vrot.slane %v5411, %v5415
    %v5422 = vunpack.c.l.b16 %v5407
    %v5423 = vunpack.c.l.b16 %v5408
    %v5424 = vunpack.c.l.b16 %v5409
    %v5425 = vunpack.c.l.b16 %v5410
    %v5426 = vpack.c.b16 %v5423, %v5422
    %v5427 = vpack.c.b16 %v5425, %v5424
    %v5431 = vsel %vm196, %v5406, 0
    %5433 = vmatprep.subr.bf16.mxu0 0
    %5434 = vmatpush1.bf16.msra.mxu0 %v5426
    %5435 = vmatprep.subr.bf16.mxu0 0
    %5436 = vmatpush1.bf16.msra.mxu0 %v5427
    %5437 = vmatprep.subr.bf16.mxu0 0
    %5438 = vmatpush1.bf16.msra.mxu0 0
    %5439 = vmatprep.subr.bf16.mxu0 0
    %5440 = vmatpush1.bf16.msra.mxu0 0
    %5441 = vmatprep.subr.bf16.mxu0 0
    %5442 = vmatpush1.bf16.msra.mxu0 0
    %5443 = vmatprep.subr.bf16.mxu0 0
    %5444 = vmatpush1.bf16.msra.mxu0 0
    %5445 = vmatprep.subr.bf16.mxu0 0
    %5446 = vmatpush1.bf16.msra.mxu0 0
    %5447 = vmatprep.subr.bf16.mxu0 0
    %5448 = vmatpush1.bf16.msra.mxu0 0
    %5449 = vmatprep.subr.bf16.mxu0 0
    %5450 = vmatpush1.bf16.msra.mxu0 0
    %5451 = vmatprep.subr.bf16.mxu0 0
    %5452 = vmatpush1.bf16.msra.mxu0 0
    %5453 = vmatprep.subr.bf16.mxu0 0
    %5454 = vmatpush1.bf16.msra.mxu0 0
    %5455 = vmatprep.subr.bf16.mxu0 0
    %5456 = vmatpush1.bf16.msra.mxu0 0
    %5457 = vmatprep.subr.bf16.mxu0 0
    %5458 = vmatpush1.bf16.msra.mxu0 0
    %5459 = vmatprep.subr.bf16.mxu0 0
    %5460 = vmatpush1.bf16.msra.mxu0 0
    %5461 = vmatprep.subr.bf16.mxu0 0
    %5462 = vmatpush1.bf16.msra.mxu0 0
    %5463 = vmatprep.subr.bf16.mxu0 0
    %5464 = vmatpush1.bf16.msra.mxu0 0
    %5465 = vmatprep.mubr.bf16.mxu0 0
    %5466 = vmatmul.mubr.bf16.gmra.mrb[0].mxu0 %v5431
    %v5467 = vpop.f32.mrb[0].mxu0
    %v5468 = vadd.f32 %v5416, %v5467
    %v5469 = vpop.f32.mrb[0].mxu0
    %v5470 = vpop.f32.mrb[0].mxu0
    %v5471 = vpop.f32.mrb[0].mxu0
    %5472 = vdwg.mxu0
    %vm5473 = vcmask 74752
    %5474 = vst.msk [vmem:[#allocation2] sm:$0x3] %vm5473, %v5468
    // Predicated region
    $region86: #{vit_forward.1} parent=1 // pred_check
      _
    $region87: #{vit_forward.1} parent=1 // pred_check_branch
      %5476 = sbr.rel (0) target = $region89
    $region88: #{vit_forward.1} parent=1 // pred_region
      %s5478 = ssub.s32 32, 32
      %5479 = vsyncadd [#allocation3], %s5478
      %s5481 = sshll.u32 [#allocation2], 4
      %s5482 = int_to_ptr.vmem [resolvable:$true] %s5481
      %5484 = dma.vmem_to_hbm [thread:$0]  %s5482, 32, %s21, [#allocation3]
    $region89: #{vit_forward.1} parent=1 // pred_fallthru
      _
    // Predicated region
    $region90: #{vit_forward.1} parent=1 // pred_check
      _
    $region91: #{vit_forward.1} parent=1 // pred_check_branch
      %5486 = sbr.rel (0) target = $region93
    $region92: #{vit_forward.1} parent=1 // pred_region
      %5487 = dma.done [#allocation3], 32
    $region93: #{vit_forward.1} parent=1 // pred_fallthru
      _
    %5488 = vsyncpa [#allocation3], 1

</llo_original>
